<compile_context>
chip_gen: v6e
topology: v6e:2x2x1
jax: 0.10.0
libtpu: 0.0.40
codegen_flags: <defaults>
</compile_context>

<pallas_src>
import functools

import jax
import jax.numpy as jnp
from jax import lax
from jax.experimental import pallas as pl
from jax.experimental.pallas import tpu as pltpu

LANES = 128


def _conv_lhs(slabs, nd, H):
    """Build the K-stacked conv LHS from h-padded activation slabs.

    slabs: list of nd+2 values of shape (Hp, L) (Hp = H+2, zero h-pad rows).
    Returns (nd*H, 9*L): row block d holds output depth d, column block
    kd*3+kh holds the (kd, kh) tap, i.e. slabs[d+kd][kh:kh+H, :].
    """
    cols = []
    for kd in range(3):
        for kh in range(3):
            cols.append(jnp.concatenate(
                [slabs[d + kd][kh:kh + H, :] for d in range(nd)], axis=0))
    return jnp.concatenate(cols, axis=1)


def _block_kernel(xf_ref, xc_ref, xb_ref, sb_ref, w_ref, out_ref, *, D, H, TD):
    """Fused bn1->relu->conv1->bn2->relu->conv2->(+x) for TD depth slices.

    Grid (N, ceil(D/TD)).  xf/xc/xb are raw padded-layout x blocks covering
    global depths [gd0-2, gd0+TD+2) (2-slice halos, clamped at the edges and
    zeroed by the in-kernel depth mask).  sb holds the folded BN scale/bias
    rows (s1, b1, s2, b2); w holds the two (9*128, 128) banded conv weights.
    """
    Hp = H + 2
    L = out_ref.shape[-1]
    gd0 = pl.program_id(1) * TD                     # first output depth

    sb = sb_ref[...]
    s1, b1 = sb[0:1, :], sb[1:2, :]                 # (1, L) -> row broadcast
    s2, b2 = sb[2:3, :], sb[3:4, :]
    w1, w2 = w_ref[0], w_ref[1]                     # (9*L, L) each

    xc = xc_ref[...]                                # (TD, Hp, L)
    xa = jnp.concatenate([xf_ref[...], xc, xb_ref[...]], axis=0)  # (TD+4,Hp,L)

    # bn1 + relu; zero the depth/height pad positions.  (The conv's W padding
    # is baked into the zero rows/cols of the banded weights, so the nonzero
    # relu(b1) values in the W-pad lanes never reach the output.)
    d_idx = lax.broadcasted_iota(jnp.int32, (TD + 4, 1, 1), 0) + (gd0 - 2)
    dmask = jnp.logical_and(d_idx >= 0, d_idx < D).astype(jnp.float32)
    h_idx = lax.broadcasted_iota(jnp.int32, (1, Hp, 1), 1)
    hmask = jnp.logical_and(h_idx >= 1, h_idx <= H).astype(jnp.float32)
    a1 = (jnp.maximum(xa * s1 + b1, 0.0) * (dmask * hmask)).astype(w1.dtype)

    # conv1: ONE K-stacked matmul, M = (TD+2)*H rows, K = 9*L.
    a1_slabs = [a1[t] for t in range(TD + 4)]
    c1 = jnp.dot(_conv_lhs(a1_slabs, TD + 2, H), w1,
                 preferred_element_type=jnp.float32)        # ((TD+2)*H, L)

    # bn2 + relu per intermediate depth slice (global depth gd0-1+d2);
    # slices that are conv2's depth zero-padding are masked to 0, and each
    # slab gets explicit zero h-pad rows for conv2's tap windows.
    zrow = jnp.zeros((1, L), w1.dtype)
    a2_slabs = []
    for d2 in range(TD + 2):
        g = gd0 + (d2 - 1)
        valid = jnp.logical_and(g >= 0, g < D).astype(jnp.float32)
        blk = jnp.maximum(c1[d2 * H:(d2 + 1) * H, :] * s2 + b2, 0.0) * valid
        a2_slabs.append(
            jnp.concatenate([zrow, blk.astype(w1.dtype), zrow], axis=0))

    # conv2: ONE K-stacked matmul, M = TD*H rows, then identity residual.
    c2 = jnp.dot(_conv_lhs(a2_slabs, TD, H), w2,
                 preferred_element_type=jnp.float32)        # (TD*H, L)
    for d in range(TD):
        out_ref[d] = (c2[d * H:(d + 1) * H, :]
                      + xc[d, 1:H + 1, :]).astype(out_ref.dtype)


def _banded_stacked_weights(w, W, WPAD, dtype):
    """(3,3,3,Cin,Cout) DHWIO -> (9*WPAD*Cin, WPAD*Cout), block-banded, K-stacked.

    Row (kd*3+kh)*WPAD*Cin + w_in*Cin + ci, col w_out*Cout + co holds
    w[kd, kh, w_in-w_out+1, ci, co] for |w_in-w_out| <= 1 and 1 <= w_in,
    w_out <= W; all other entries are zero, which bakes the conv's
    W-direction zero padding into the matmul.
    """
    _, _, _, Cin, Cout = w.shape
    B = jnp.zeros((3, 3, WPAD * Cin, WPAD * Cout), jnp.float32)
    for kw in range(3):
        for wo in range(1, W + 1):
            wi = wo + kw - 1
            if 1 <= wi <= W:
                B = B.at[:, :, wi * Cin:(wi + 1) * Cin,
                         wo * Cout:(wo + 1) * Cout].set(w[:, :, kw])
    return B.reshape(9 * WPAD * Cin, WPAD * Cout).astype(dtype)


def _pick_depth_tiling(D, H):
    """Depth slices per grid step: aim for >=256 MXU rows, keep TD even."""
    target = max(2, min(32, -(-256 // H)))    # even upper bound on TD
    nb = max(1, -(-D // target))              # number of depth blocks
    td = -(-D // nb)
    td += td % 2                              # even -> 2-slice halo alignment
    return td, nb, nb * td                    # (TD, grid blocks, padded depth)


@functools.partial(jax.jit, static_argnames=("compute_dtype",))
def preact_basic_block(x_ncdhw, params, compute_dtype=jnp.bfloat16):
    """x_ncdhw: (N, C, D, H, W) float32 (PyTorch layout).  Returns same layout."""
    x = jnp.transpose(x_ncdhw, (0, 2, 3, 4, 1)).astype(jnp.float32)  # NDHWC
    N, D, H, W, Cin = x.shape
    w1, w2 = params["w1"], params["w2"]   # (3,3,3,Cin,Cout), (3,3,3,Cout,Cout)
    Cout = w1.shape[-1]
    assert Cin == Cout, "identity residual requires in_planes == planes"
    assert LANES % Cin == 0 and (W + 2) * Cin <= LANES, (
        "lane-folded layout requires (W+2)*C <= 128 and C | 128")
    WPAD = LANES // Cin
    Hp = H + 2

    TD, nb, D_pad = _pick_depth_tiling(D, H)
    hd = TD // 2                  # depth halo blocks are 2 slices wide
    nhalo = D_pad // 2

    # Fold BatchNorm (inference) into per-channel scale/bias, tiled over lanes
    # and merged into a single (4, 128) operand: rows = s1, b1, s2, b2.
    eps = 1e-5
    s1 = params["gamma1"] / jnp.sqrt(params["var1"] + eps)
    b1 = params["beta1"] - params["mean1"] * s1
    s2 = params["gamma2"] / jnp.sqrt(params["var2"] + eps)
    b2 = params["beta2"] - params["mean2"] * s2
    sb = jnp.stack([jnp.tile(s1, WPAD), jnp.tile(b1, WPAD),
                    jnp.tile(s2, WPAD), jnp.tile(b2, WPAD)], axis=0)

    # Lane-dense layout: (N, D_pad, Hp, WPAD*C) with real data at depth < D,
    # h in 1..H, w-block in 1..W; everything else zero.
    xp = jnp.pad(x, ((0, 0), (0, D_pad - D), (1, 1), (1, WPAD - W - 1), (0, 0)))
    xp = xp.reshape(N, D_pad, Hp, LANES)

    w1s = _banded_stacked_weights(w1, W, WPAD, compute_dtype)  # (9*128, 128)
    w2s = _banded_stacked_weights(w2, W, WPAD, compute_dtype)
    wst = jnp.stack([w1s, w2s], axis=0)                        # (2, 9*128, 128)

    in_specs = [
        # front depth halo (2 slices), clamped at the lower edge
        pl.BlockSpec((None, 2, Hp, LANES),
                     lambda n, i: (n, jnp.maximum(i * hd - 1, 0), 0, 0)),
        # center block (TD slices)
        pl.BlockSpec((None, TD, Hp, LANES), lambda n, i: (n, i, 0, 0)),
        # back depth halo (2 slices), clamped at the upper edge
        pl.BlockSpec((None, 2, Hp, LANES),
                     lambda n, i: (n, jnp.minimum(i * hd + hd, nhalo - 1), 0, 0)),
        # folded BN scale/bias (constant across the grid -> DMAed once)
        pl.BlockSpec((4, LANES), lambda n, i: (0, 0)),
        # banded, K-stacked conv weights (constant across the grid)
        pl.BlockSpec((2, 9 * LANES, LANES), lambda n, i: (0, 0, 0)),
    ]
    out_spec = pl.BlockSpec((None, TD, H, LANES), lambda n, i: (n, i, 0, 0))

    itemsize = jnp.dtype(compute_dtype).itemsize
    flops = 2 * N * nb * ((TD + 2) * H + TD * H) * (9 * LANES) * LANES
    bytes_accessed = (N * nb * (TD + 4) * Hp * LANES * 4
                      + 2 * 9 * LANES * LANES * itemsize + 4 * LANES * 4
                      + N * D_pad * H * LANES * 4)

    out = pl.pallas_call(
        functools.partial(_block_kernel, D=D, H=H, TD=TD),
        grid=(N, nb),
        in_specs=in_specs,
        out_specs=out_spec,
        out_shape=jax.ShapeDtypeStruct((N, D_pad, H, LANES), jnp.float32),
        compiler_params=pltpu.CompilerParams(
            dimension_semantics=("parallel", "parallel"),
            vmem_limit_bytes=32 * 1024 * 1024),
        cost_estimate=pl.CostEstimate(flops=flops, transcendentals=0,
                                      bytes_accessed=bytes_accessed),
    )(xp, xp, xp, sb, wst)

    # Drop depth padding, un-fold the lane axis (drop W padding), back to NCDHW.
    out = out[:, :D].reshape(N, D, H, WPAD, Cout)[:, :, :, 1:W + 1, :]
    return jnp.transpose(out, (0, 4, 1, 2, 3))


def reference(x_ncdhw, params, conv_dtype=jnp.float32):
    """Pure-JAX reference of the same forward pass (for verification)."""
    x = jnp.transpose(x_ncdhw, (0, 2, 3, 4, 1)).astype(jnp.float32)
    eps = 1e-5
    s1 = params["gamma1"] / jnp.sqrt(params["var1"] + eps)
    b1 = params["beta1"] - params["mean1"] * s1
    s2 = params["gamma2"] / jnp.sqrt(params["var2"] + eps)
    b2 = params["beta2"] - params["mean2"] * s2
    dn = ("NDHWC", "DHWIO", "NDHWC")
    pad = ((1, 1), (1, 1), (1, 1))
    a1 = jnp.maximum(x * s1 + b1, 0.0)
    c1 = lax.conv_general_dilated(a1.astype(conv_dtype),
                                  params["w1"].astype(conv_dtype),
                                  (1, 1, 1), pad, dimension_numbers=dn,
                                  preferred_element_type=jnp.float32,
                                  precision=lax.Precision.HIGHEST)
    a2 = jnp.maximum(c1 * s2 + b2, 0.0)
    c2 = lax.conv_general_dilated(a2.astype(conv_dtype),
                                  params["w2"].astype(conv_dtype),
                                  (1, 1, 1), pad, dimension_numbers=dn,
                                  preferred_element_type=jnp.float32,
                                  precision=lax.Precision.HIGHEST)
    out = c2 + x
    return jnp.transpose(out, (0, 4, 1, 2, 3))


if __name__ == "__main__":
    key = jax.random.PRNGKey(0)
    N, Cin, D, H, W = 2, 8, 8, 8, 8
    planes = Cin   # stride=1, downsample=None -> planes must equal in_planes
    ks = jax.random.split(key, 11)

    x = jax.random.normal(ks[0], (N, Cin, D, H, W), jnp.float32)
    params = dict(
        w1=0.1 * jax.random.normal(ks[1], (3, 3, 3, Cin, planes), jnp.float32),
        w2=0.1 * jax.random.normal(ks[2], (3, 3, 3, planes, planes), jnp.float32),
        gamma1=1.0 + 0.1 * jax.random.normal(ks[3], (Cin,), jnp.float32),
        beta1=0.1 * jax.random.normal(ks[4], (Cin,), jnp.float32),
        mean1=0.1 * jax.random.normal(ks[5], (Cin,), jnp.float32),
        var1=jax.random.uniform(ks[6], (Cin,), jnp.float32, 0.5, 1.5),
        gamma2=1.0 + 0.1 * jax.random.normal(ks[7], (planes,), jnp.float32),
        beta2=0.1 * jax.random.normal(ks[8], (planes,), jnp.float32),
        mean2=0.1 * jax.random.normal(ks[9], (planes,), jnp.float32),
        var2=jax.random.uniform(ks[10], (planes,), jnp.float32, 0.5, 1.5),
    )

    # f32-matmul path: tight check against the f32 reference.
    out_f32 = jax.block_until_ready(
        preact_basic_block(x, params, compute_dtype=jnp.float32))
    ref_f32 = jax.block_until_ready(reference(x, params, jnp.float32))
    assert out_f32.shape == (N, planes, D, H, W), out_f32.shape
    err_f32 = float(jnp.max(jnp.abs(out_f32 - ref_f32)))
    assert err_f32 < 5e-3, f"f32 max abs err {err_f32}"

    # bf16-matmul fast path (default) against a reference whose conv operands
    # are rounded to bf16 the same way (f32 accumulation in both).
    out_bf16 = jax.block_until_ready(preact_basic_block(x, params))
    ref_bf16 = jax.block_until_ready(reference(x, params, jnp.bfloat16))
    err_bf16 = float(jnp.max(jnp.abs(out_bf16 - ref_bf16)))
    assert err_bf16 < 3e-2, f"bf16 max abs err {err_bf16}"

    print("KERNEL_OK")
</pallas_src>

<mosaic_0001>
module attributes {stable_mosaic.version = 11 : i64} {
  func.func @_block_kernel(%arg0: i32, %arg1: i32, %arg2: memref<1x2x10x128xf32, #tpu.memory_space<vmem>>, %arg3: memref<1x8x10x128xf32, #tpu.memory_space<vmem>>, %arg4: memref<1x2x10x128xf32, #tpu.memory_space<vmem>>, %arg5: memref<4x128xf32, #tpu.memory_space<vmem>>, %arg6: memref<2x1152x128xf32, #tpu.memory_space<vmem>>, %arg7: memref<1x8x8x128xf32, #tpu.memory_space<vmem>>) attributes {dimension_semantics = [#tpu.dimension_semantics<parallel>, #tpu.dimension_semantics<parallel>], iteration_bounds = array<i64: 2, 1>, scalar_prefetch = 0 : i64, scratch_operands = 0 : i64, tpu.core_type = #tpu.core_type<tc>, window_params = [{transform_indices = @transform_0, window_bounds = array<i64: 1, 2, 10, 128>}, {transform_indices = @transform_1, window_bounds = array<i64: 1, 8, 10, 128>}, {transform_indices = @transform_2, window_bounds = array<i64: 1, 2, 10, 128>}, {pipeline_mode = #tpu.pipeline_mode<synchronous>, transform_indices = @transform_3, window_bounds = array<i64: 4, 128>}, {pipeline_mode = #tpu.pipeline_mode<synchronous>, transform_indices = @transform_4, window_bounds = array<i64: 2, 1152, 128>}, {transform_indices = @transform_5, window_bounds = array<i64: 1, 8, 8, 128>}]} {
    %c8_i32 = arith.constant 8 : i32
    %0 = arith.muli %arg1, %c8_i32 : i32
    %c0 = arith.constant 0 : index
    %c0_0 = arith.constant 0 : index
    %1 = vector.load %arg5[%c0, %c0_0] : memref<4x128xf32, #tpu.memory_space<vmem>>, vector<4x128xf32>
    %2 = vector.extract_strided_slice %1 {offsets = [0, 0], sizes = [1, 128], strides = [1, 1]} : vector<4x128xf32> to vector<1x128xf32>
    %3 = vector.extract_strided_slice %1 {offsets = [1, 0], sizes = [1, 128], strides = [1, 1]} : vector<4x128xf32> to vector<1x128xf32>
    %4 = vector.extract_strided_slice %1 {offsets = [2, 0], sizes = [1, 128], strides = [1, 1]} : vector<4x128xf32> to vector<1x128xf32>
    %5 = vector.extract_strided_slice %1 {offsets = [3, 0], sizes = [1, 128], strides = [1, 1]} : vector<4x128xf32> to vector<1x128xf32>
    %c0_1 = arith.constant 0 : index
    %c0_2 = arith.constant 0 : index
    %c0_3 = arith.constant 0 : index
    %6 = vector.load %arg6[%c0_1, %c0_2, %c0_3] : memref<2x1152x128xf32, #tpu.memory_space<vmem>>, vector<1x1152x128xf32>
    %7 = vector.shape_cast %6 : vector<1x1152x128xf32> to vector<1152x128xf32>
    %c1 = arith.constant 1 : index
    %c0_4 = arith.constant 0 : index
    %c0_5 = arith.constant 0 : index
    %8 = vector.load %arg6[%c1, %c0_4, %c0_5] : memref<2x1152x128xf32, #tpu.memory_space<vmem>>, vector<1x1152x128xf32>
    %9 = vector.shape_cast %8 : vector<1x1152x128xf32> to vector<1152x128xf32>
    %c0_6 = arith.constant 0 : index
    %c0_7 = arith.constant 0 : index
    %c0_8 = arith.constant 0 : index
    %c0_9 = arith.constant 0 : index
    %10 = vector.load %arg3[%c0_6, %c0_7, %c0_8, %c0_9] : memref<1x8x10x128xf32, #tpu.memory_space<vmem>>, vector<1x8x10x128xf32>
    %11 = vector.shape_cast %10 : vector<1x8x10x128xf32> to vector<8x10x128xf32>
    %c0_10 = arith.constant 0 : index
    %c0_11 = arith.constant 0 : index
    %c0_12 = arith.constant 0 : index
    %c0_13 = arith.constant 0 : index
    %12 = vector.load %arg2[%c0_10, %c0_11, %c0_12, %c0_13] : memref<1x2x10x128xf32, #tpu.memory_space<vmem>>, vector<1x2x10x128xf32>
    %13 = vector.shape_cast %12 : vector<1x2x10x128xf32> to vector<2x10x128xf32>
    %c0_14 = arith.constant 0 : index
    %c0_15 = arith.constant 0 : index
    %c0_16 = arith.constant 0 : index
    %c0_17 = arith.constant 0 : index
    %14 = vector.load %arg4[%c0_14, %c0_15, %c0_16, %c0_17] : memref<1x2x10x128xf32, #tpu.memory_space<vmem>>, vector<1x2x10x128xf32>
    %15 = vector.shape_cast %14 : vector<1x2x10x128xf32> to vector<2x10x128xf32>
    %16 = tpu.concatenate %13, %11, %15 in 0 : vector<2x10x128xf32>, vector<8x10x128xf32>, vector<2x10x128xf32> -> vector<12x10x128xf32>
    %17 = tpu.iota {dimensions = array<i32: 0>} : vector<12x1x1xi32>
    %c2_i32 = arith.constant 2 : i32
    %18 = arith.subi %0, %c2_i32 : i32
    %19 = vector.broadcast %18 : i32 to vector<12x1x1xi32>
    %20 = arith.addi %17, %19 : vector<12x1x1xi32>
    %c0_i32 = arith.constant 0 : i32
    %21 = vector.broadcast %c0_i32 : i32 to vector<12x1x1xi32>
    %22 = arith.cmpi sge, %20, %21 : vector<12x1x1xi32>
    %c8_i32_18 = arith.constant 8 : i32
    %23 = vector.broadcast %c8_i32_18 : i32 to vector<12x1x1xi32>
    %24 = arith.cmpi slt, %20, %23 : vector<12x1x1xi32>
    %25 = arith.andi %22, %24 : vector<12x1x1xi1>
    %26 = arith.extui %25 : vector<12x1x1xi1> to vector<12x1x1xi32>
    %27 = arith.sitofp %26 : vector<12x1x1xi32> to vector<12x1x1xf32>
    %28 = tpu.iota {dimensions = array<i32: 1>} : vector<1x10x1xi32>
    %c1_i32 = arith.constant 1 : i32
    %29 = vector.broadcast %c1_i32 : i32 to vector<1x10x1xi32>
    %30 = arith.cmpi sge, %28, %29 : vector<1x10x1xi32>
    %c8_i32_19 = arith.constant 8 : i32
    %31 = vector.broadcast %c8_i32_19 : i32 to vector<1x10x1xi32>
    %32 = arith.cmpi sle, %28, %31 : vector<1x10x1xi32>
    %33 = arith.andi %30, %32 : vector<1x10x1xi1>
    %34 = arith.extui %33 : vector<1x10x1xi1> to vector<1x10x1xi32>
    %35 = arith.sitofp %34 : vector<1x10x1xi32> to vector<1x10x1xf32>
    %36 = vector.shape_cast %2 : vector<1x128xf32> to vector<1x1x128xf32>
    %37 = vector.broadcast %36 : vector<1x1x128xf32> to vector<12x10x128xf32>
    %38 = arith.mulf %16, %37 : vector<12x10x128xf32>
    %39 = vector.shape_cast %3 : vector<1x128xf32> to vector<1x1x128xf32>
    %40 = vector.broadcast %39 : vector<1x1x128xf32> to vector<12x10x128xf32>
    %41 = arith.addf %38, %40 : vector<12x10x128xf32>
    %cst = arith.constant 0.000000e+00 : f32
    %42 = vector.broadcast %cst : f32 to vector<12x10x128xf32>
    %43 = arith.maximumf %41, %42 : vector<12x10x128xf32>
    %44 = vector.broadcast %27 : vector<12x1x1xf32> to vector<12x10x1xf32>
    %45 = vector.broadcast %35 : vector<1x10x1xf32> to vector<12x10x1xf32>
    %46 = arith.mulf %44, %45 : vector<12x10x1xf32>
    %47 = vector.broadcast %46 : vector<12x10x1xf32> to vector<12x10x128xf32>
    %48 = arith.mulf %43, %47 : vector<12x10x128xf32>
    %49 = vector.extract_strided_slice %48 {offsets = [0, 0, 0], sizes = [1, 10, 128], strides = [1, 1, 1]} : vector<12x10x128xf32> to vector<1x10x128xf32>
    %50 = vector.shape_cast %49 : vector<1x10x128xf32> to vector<10x128xf32>
    %51 = vector.extract_strided_slice %48 {offsets = [1, 0, 0], sizes = [1, 10, 128], strides = [1, 1, 1]} : vector<12x10x128xf32> to vector<1x10x128xf32>
    %52 = vector.shape_cast %51 : vector<1x10x128xf32> to vector<10x128xf32>
    %53 = vector.extract_strided_slice %48 {offsets = [2, 0, 0], sizes = [1, 10, 128], strides = [1, 1, 1]} : vector<12x10x128xf32> to vector<1x10x128xf32>
    %54 = vector.shape_cast %53 : vector<1x10x128xf32> to vector<10x128xf32>
    %55 = vector.extract_strided_slice %48 {offsets = [3, 0, 0], sizes = [1, 10, 128], strides = [1, 1, 1]} : vector<12x10x128xf32> to vector<1x10x128xf32>
    %56 = vector.shape_cast %55 : vector<1x10x128xf32> to vector<10x128xf32>
    %57 = vector.extract_strided_slice %48 {offsets = [4, 0, 0], sizes = [1, 10, 128], strides = [1, 1, 1]} : vector<12x10x128xf32> to vector<1x10x128xf32>
    %58 = vector.shape_cast %57 : vector<1x10x128xf32> to vector<10x128xf32>
    %59 = vector.extract_strided_slice %48 {offsets = [5, 0, 0], sizes = [1, 10, 128], strides = [1, 1, 1]} : vector<12x10x128xf32> to vector<1x10x128xf32>
    %60 = vector.shape_cast %59 : vector<1x10x128xf32> to vector<10x128xf32>
    %61 = vector.extract_strided_slice %48 {offsets = [6, 0, 0], sizes = [1, 10, 128], strides = [1, 1, 1]} : vector<12x10x128xf32> to vector<1x10x128xf32>
    %62 = vector.shape_cast %61 : vector<1x10x128xf32> to vector<10x128xf32>
    %63 = vector.extract_strided_slice %48 {offsets = [7, 0, 0], sizes = [1, 10, 128], strides = [1, 1, 1]} : vector<12x10x128xf32> to vector<1x10x128xf32>
    %64 = vector.shape_cast %63 : vector<1x10x128xf32> to vector<10x128xf32>
    %65 = vector.extract_strided_slice %48 {offsets = [8, 0, 0], sizes = [1, 10, 128], strides = [1, 1, 1]} : vector<12x10x128xf32> to vector<1x10x128xf32>
    %66 = vector.shape_cast %65 : vector<1x10x128xf32> to vector<10x128xf32>
    %67 = vector.extract_strided_slice %48 {offsets = [9, 0, 0], sizes = [1, 10, 128], strides = [1, 1, 1]} : vector<12x10x128xf32> to vector<1x10x128xf32>
    %68 = vector.shape_cast %67 : vector<1x10x128xf32> to vector<10x128xf32>
    %69 = vector.extract_strided_slice %48 {offsets = [10, 0, 0], sizes = [1, 10, 128], strides = [1, 1, 1]} : vector<12x10x128xf32> to vector<1x10x128xf32>
    %70 = vector.shape_cast %69 : vector<1x10x128xf32> to vector<10x128xf32>
    %71 = vector.extract_strided_slice %48 {offsets = [11, 0, 0], sizes = [1, 10, 128], strides = [1, 1, 1]} : vector<12x10x128xf32> to vector<1x10x128xf32>
    %72 = vector.shape_cast %71 : vector<1x10x128xf32> to vector<10x128xf32>
    %73 = vector.extract_strided_slice %50 {offsets = [0, 0], sizes = [8, 128], strides = [1, 1]} : vector<10x128xf32> to vector<8x128xf32>
    %74 = vector.extract_strided_slice %52 {offsets = [0, 0], sizes = [8, 128], strides = [1, 1]} : vector<10x128xf32> to vector<8x128xf32>
    %75 = vector.extract_strided_slice %54 {offsets = [0, 0], sizes = [8, 128], strides = [1, 1]} : vector<10x128xf32> to vector<8x128xf32>
    %76 = vector.extract_strided_slice %56 {offsets = [0, 0], sizes = [8, 128], strides = [1, 1]} : vector<10x128xf32> to vector<8x128xf32>
    %77 = vector.extract_strided_slice %58 {offsets = [0, 0], sizes = [8, 128], strides = [1, 1]} : vector<10x128xf32> to vector<8x128xf32>
    %78 = vector.extract_strided_slice %60 {offsets = [0, 0], sizes = [8, 128], strides = [1, 1]} : vector<10x128xf32> to vector<8x128xf32>
    %79 = vector.extract_strided_slice %62 {offsets = [0, 0], sizes = [8, 128], strides = [1, 1]} : vector<10x128xf32> to vector<8x128xf32>
    %80 = vector.extract_strided_slice %64 {offsets = [0, 0], sizes = [8, 128], strides = [1, 1]} : vector<10x128xf32> to vector<8x128xf32>
    %81 = vector.extract_strided_slice %66 {offsets = [0, 0], sizes = [8, 128], strides = [1, 1]} : vector<10x128xf32> to vector<8x128xf32>
    %82 = vector.extract_strided_slice %68 {offsets = [0, 0], sizes = [8, 128], strides = [1, 1]} : vector<10x128xf32> to vector<8x128xf32>
    %83 = tpu.concatenate %73, %74, %75, %76, %77, %78, %79, %80, %81, %82 in 0 : vector<8x128xf32>, vector<8x128xf32>, vector<8x128xf32>, vector<8x128xf32>, vector<8x128xf32>, vector<8x128xf32>, vector<8x128xf32>, vector<8x128xf32>, vector<8x128xf32>, vector<8x128xf32> -> vector<80x128xf32>
    %84 = vector.extract_strided_slice %50 {offsets = [1, 0], sizes = [8, 128], strides = [1, 1]} : vector<10x128xf32> to vector<8x128xf32>
    %85 = vector.extract_strided_slice %52 {offsets = [1, 0], sizes = [8, 128], strides = [1, 1]} : vector<10x128xf32> to vector<8x128xf32>
    %86 = vector.extract_strided_slice %54 {offsets = [1, 0], sizes = [8, 128], strides = [1, 1]} : vector<10x128xf32> to vector<8x128xf32>
    %87 = vector.extract_strided_slice %56 {offsets = [1, 0], sizes = [8, 128], strides = [1, 1]} : vector<10x128xf32> to vector<8x128xf32>
    %88 = vector.extract_strided_slice %58 {offsets = [1, 0], sizes = [8, 128], strides = [1, 1]} : vector<10x128xf32> to vector<8x128xf32>
    %89 = vector.extract_strided_slice %60 {offsets = [1, 0], sizes = [8, 128], strides = [1, 1]} : vector<10x128xf32> to vector<8x128xf32>
    %90 = vector.extract_strided_slice %62 {offsets = [1, 0], sizes = [8, 128], strides = [1, 1]} : vector<10x128xf32> to vector<8x128xf32>
    %91 = vector.extract_strided_slice %64 {offsets = [1, 0], sizes = [8, 128], strides = [1, 1]} : vector<10x128xf32> to vector<8x128xf32>
    %92 = vector.extract_strided_slice %66 {offsets = [1, 0], sizes = [8, 128], strides = [1, 1]} : vector<10x128xf32> to vector<8x128xf32>
    %93 = vector.extract_strided_slice %68 {offsets = [1, 0], sizes = [8, 128], strides = [1, 1]} : vector<10x128xf32> to vector<8x128xf32>
    %94 = tpu.concatenate %84, %85, %86, %87, %88, %89, %90, %91, %92, %93 in 0 : vector<8x128xf32>, vector<8x128xf32>, vector<8x128xf32>, vector<8x128xf32>, vector<8x128xf32>, vector<8x128xf32>, vector<8x128xf32>, vector<8x128xf32>, vector<8x128xf32>, vector<8x128xf32> -> vector<80x128xf32>
    %95 = vector.extract_strided_slice %50 {offsets = [2, 0], sizes = [8, 128], strides = [1, 1]} : vector<10x128xf32> to vector<8x128xf32>
    %96 = vector.extract_strided_slice %52 {offsets = [2, 0], sizes = [8, 128], strides = [1, 1]} : vector<10x128xf32> to vector<8x128xf32>
    %97 = vector.extract_strided_slice %54 {offsets = [2, 0], sizes = [8, 128], strides = [1, 1]} : vector<10x128xf32> to vector<8x128xf32>
    %98 = vector.extract_strided_slice %56 {offsets = [2, 0], sizes = [8, 128], strides = [1, 1]} : vector<10x128xf32> to vector<8x128xf32>
    %99 = vector.extract_strided_slice %58 {offsets = [2, 0], sizes = [8, 128], strides = [1, 1]} : vector<10x128xf32> to vector<8x128xf32>
    %100 = vector.extract_strided_slice %60 {offsets = [2, 0], sizes = [8, 128], strides = [1, 1]} : vector<10x128xf32> to vector<8x128xf32>
    %101 = vector.extract_strided_slice %62 {offsets = [2, 0], sizes = [8, 128], strides = [1, 1]} : vector<10x128xf32> to vector<8x128xf32>
    %102 = vector.extract_strided_slice %64 {offsets = [2, 0], sizes = [8, 128], strides = [1, 1]} : vector<10x128xf32> to vector<8x128xf32>
    %103 = vector.extract_strided_slice %66 {offsets = [2, 0], sizes = [8, 128], strides = [1, 1]} : vector<10x128xf32> to vector<8x128xf32>
    %104 = vector.extract_strided_slice %68 {offsets = [2, 0], sizes = [8, 128], strides = [1, 1]} : vector<10x128xf32> to vector<8x128xf32>
    %105 = tpu.concatenate %95, %96, %97, %98, %99, %100, %101, %102, %103, %104 in 0 : vector<8x128xf32>, vector<8x128xf32>, vector<8x128xf32>, vector<8x128xf32>, vector<8x128xf32>, vector<8x128xf32>, vector<8x128xf32>, vector<8x128xf32>, vector<8x128xf32>, vector<8x128xf32> -> vector<80x128xf32>
    %106 = vector.extract_strided_slice %52 {offsets = [0, 0], sizes = [8, 128], strides = [1, 1]} : vector<10x128xf32> to vector<8x128xf32>
    %107 = vector.extract_strided_slice %54 {offsets = [0, 0], sizes = [8, 128], strides = [1, 1]} : vector<10x128xf32> to vector<8x128xf32>
    %108 = vector.extract_strided_slice %56 {offsets = [0, 0], sizes = [8, 128], strides = [1, 1]} : vector<10x128xf32> to vector<8x128xf32>
    %109 = vector.extract_strided_slice %58 {offsets = [0, 0], sizes = [8, 128], strides = [1, 1]} : vector<10x128xf32> to vector<8x128xf32>
    %110 = vector.extract_strided_slice %60 {offsets = [0, 0], sizes = [8, 128], strides = [1, 1]} : vector<10x128xf32> to vector<8x128xf32>
    %111 = vector.extract_strided_slice %62 {offsets = [0, 0], sizes = [8, 128], strides = [1, 1]} : vector<10x128xf32> to vector<8x128xf32>
    %112 = vector.extract_strided_slice %64 {offsets = [0, 0], sizes = [8, 128], strides = [1, 1]} : vector<10x128xf32> to vector<8x128xf32>
    %113 = vector.extract_strided_slice %66 {offsets = [0, 0], sizes = [8, 128], strides = [1, 1]} : vector<10x128xf32> to vector<8x128xf32>
    %114 = vector.extract_strided_slice %68 {offsets = [0, 0], sizes = [8, 128], strides = [1, 1]} : vector<10x128xf32> to vector<8x128xf32>
    %115 = vector.extract_strided_slice %70 {offsets = [0, 0], sizes = [8, 128], strides = [1, 1]} : vector<10x128xf32> to vector<8x128xf32>
    %116 = tpu.concatenate %106, %107, %108, %109, %110, %111, %112, %113, %114, %115 in 0 : vector<8x128xf32>, vector<8x128xf32>, vector<8x128xf32>, vector<8x128xf32>, vector<8x128xf32>, vector<8x128xf32>, vector<8x128xf32>, vector<8x128xf32>, vector<8x128xf32>, vector<8x128xf32> -> vector<80x128xf32>
    %117 = vector.extract_strided_slice %52 {offsets = [1, 0], sizes = [8, 128], strides = [1, 1]} : vector<10x128xf32> to vector<8x128xf32>
    %118 = vector.extract_strided_slice %54 {offsets = [1, 0], sizes = [8, 128], strides = [1, 1]} : vector<10x128xf32> to vector<8x128xf32>
    %119 = vector.extract_strided_slice %56 {offsets = [1, 0], sizes = [8, 128], strides = [1, 1]} : vector<10x128xf32> to vector<8x128xf32>
    %120 = vector.extract_strided_slice %58 {offsets = [1, 0], sizes = [8, 128], strides = [1, 1]} : vector<10x128xf32> to vector<8x128xf32>
    %121 = vector.extract_strided_slice %60 {offsets = [1, 0], sizes = [8, 128], strides = [1, 1]} : vector<10x128xf32> to vector<8x128xf32>
    %122 = vector.extract_strided_slice %62 {offsets = [1, 0], sizes = [8, 128], strides = [1, 1]} : vector<10x128xf32> to vector<8x128xf32>
    %123 = vector.extract_strided_slice %64 {offsets = [1, 0], sizes = [8, 128], strides = [1, 1]} : vector<10x128xf32> to vector<8x128xf32>
    %124 = vector.extract_strided_slice %66 {offsets = [1, 0], sizes = [8, 128], strides = [1, 1]} : vector<10x128xf32> to vector<8x128xf32>
    %125 = vector.extract_strided_slice %68 {offsets = [1, 0], sizes = [8, 128], strides = [1, 1]} : vector<10x128xf32> to vector<8x128xf32>
    %126 = vector.extract_strided_slice %70 {offsets = [1, 0], sizes = [8, 128], strides = [1, 1]} : vector<10x128xf32> to vector<8x128xf32>
    %127 = tpu.concatenate %117, %118, %119, %120, %121, %122, %123, %124, %125, %126 in 0 : vector<8x128xf32>, vector<8x128xf32>, vector<8x128xf32>, vector<8x128xf32>, vector<8x128xf32>, vector<8x128xf32>, vector<8x128xf32>, vector<8x128xf32>, vector<8x128xf32>, vector<8x128xf32> -> vector<80x128xf32>
    %128 = vector.extract_strided_slice %52 {offsets = [2, 0], sizes = [8, 128], strides = [1, 1]} : vector<10x128xf32> to vector<8x128xf32>
    %129 = vector.extract_strided_slice %54 {offsets = [2, 0], sizes = [8, 128], strides = [1, 1]} : vector<10x128xf32> to vector<8x128xf32>
    %130 = vector.extract_strided_slice %56 {offsets = [2, 0], sizes = [8, 128], strides = [1, 1]} : vector<10x128xf32> to vector<8x128xf32>
    %131 = vector.extract_strided_slice %58 {offsets = [2, 0], sizes = [8, 128], strides = [1, 1]} : vector<10x128xf32> to vector<8x128xf32>
    %132 = vector.extract_strided_slice %60 {offsets = [2, 0], sizes = [8, 128], strides = [1, 1]} : vector<10x128xf32> to vector<8x128xf32>
    %133 = vector.extract_strided_slice %62 {offsets = [2, 0], sizes = [8, 128], strides = [1, 1]} : vector<10x128xf32> to vector<8x128xf32>
    %134 = vector.extract_strided_slice %64 {offsets = [2, 0], sizes = [8, 128], strides = [1, 1]} : vector<10x128xf32> to vector<8x128xf32>
    %135 = vector.extract_strided_slice %66 {offsets = [2, 0], sizes = [8, 128], strides = [1, 1]} : vector<10x128xf32> to vector<8x128xf32>
    %136 = vector.extract_strided_slice %68 {offsets = [2, 0], sizes = [8, 128], strides = [1, 1]} : vector<10x128xf32> to vector<8x128xf32>
    %137 = vector.extract_strided_slice %70 {offsets = [2, 0], sizes = [8, 128], strides = [1, 1]} : vector<10x128xf32> to vector<8x128xf32>
    %138 = tpu.concatenate %128, %129, %130, %131, %132, %133, %134, %135, %136, %137 in 0 : vector<8x128xf32>, vector<8x128xf32>, vector<8x128xf32>, vector<8x128xf32>, vector<8x128xf32>, vector<8x128xf32>, vector<8x128xf32>, vector<8x128xf32>, vector<8x128xf32>, vector<8x128xf32> -> vector<80x128xf32>
    %139 = vector.extract_strided_slice %54 {offsets = [0, 0], sizes = [8, 128], strides = [1, 1]} : vector<10x128xf32> to vector<8x128xf32>
    %140 = vector.extract_strided_slice %56 {offsets = [0, 0], sizes = [8, 128], strides = [1, 1]} : vector<10x128xf32> to vector<8x128xf32>
    %141 = vector.extract_strided_slice %58 {offsets = [0, 0], sizes = [8, 128], strides = [1, 1]} : vector<10x128xf32> to vector<8x128xf32>
    %142 = vector.extract_strided_slice %60 {offsets = [0, 0], sizes = [8, 128], strides = [1, 1]} : vector<10x128xf32> to vector<8x128xf32>
    %143 = vector.extract_strided_slice %62 {offsets = [0, 0], sizes = [8, 128], strides = [1, 1]} : vector<10x128xf32> to vector<8x128xf32>
    %144 = vector.extract_strided_slice %64 {offsets = [0, 0], sizes = [8, 128], strides = [1, 1]} : vector<10x128xf32> to vector<8x128xf32>
    %145 = vector.extract_strided_slice %66 {offsets = [0, 0], sizes = [8, 128], strides = [1, 1]} : vector<10x128xf32> to vector<8x128xf32>
    %146 = vector.extract_strided_slice %68 {offsets = [0, 0], sizes = [8, 128], strides = [1, 1]} : vector<10x128xf32> to vector<8x128xf32>
    %147 = vector.extract_strided_slice %70 {offsets = [0, 0], sizes = [8, 128], strides = [1, 1]} : vector<10x128xf32> to vector<8x128xf32>
    %148 = vector.extract_strided_slice %72 {offsets = [0, 0], sizes = [8, 128], strides = [1, 1]} : vector<10x128xf32> to vector<8x128xf32>
    %149 = tpu.concatenate %139, %140, %141, %142, %143, %144, %145, %146, %147, %148 in 0 : vector<8x128xf32>, vector<8x128xf32>, vector<8x128xf32>, vector<8x128xf32>, vector<8x128xf32>, vector<8x128xf32>, vector<8x128xf32>, vector<8x128xf32>, vector<8x128xf32>, vector<8x128xf32> -> vector<80x128xf32>
    %150 = vector.extract_strided_slice %54 {offsets = [1, 0], sizes = [8, 128], strides = [1, 1]} : vector<10x128xf32> to vector<8x128xf32>
    %151 = vector.extract_strided_slice %56 {offsets = [1, 0], sizes = [8, 128], strides = [1, 1]} : vector<10x128xf32> to vector<8x128xf32>
    %152 = vector.extract_strided_slice %58 {offsets = [1, 0], sizes = [8, 128], strides = [1, 1]} : vector<10x128xf32> to vector<8x128xf32>
    %153 = vector.extract_strided_slice %60 {offsets = [1, 0], sizes = [8, 128], strides = [1, 1]} : vector<10x128xf32> to vector<8x128xf32>
    %154 = vector.extract_strided_slice %62 {offsets = [1, 0], sizes = [8, 128], strides = [1, 1]} : vector<10x128xf32> to vector<8x128xf32>
    %155 = vector.extract_strided_slice %64 {offsets = [1, 0], sizes = [8, 128], strides = [1, 1]} : vector<10x128xf32> to vector<8x128xf32>
    %156 = vector.extract_strided_slice %66 {offsets = [1, 0], sizes = [8, 128], strides = [1, 1]} : vector<10x128xf32> to vector<8x128xf32>
    %157 = vector.extract_strided_slice %68 {offsets = [1, 0], sizes = [8, 128], strides = [1, 1]} : vector<10x128xf32> to vector<8x128xf32>
    %158 = vector.extract_strided_slice %70 {offsets = [1, 0], sizes = [8, 128], strides = [1, 1]} : vector<10x128xf32> to vector<8x128xf32>
    %159 = vector.extract_strided_slice %72 {offsets = [1, 0], sizes = [8, 128], strides = [1, 1]} : vector<10x128xf32> to vector<8x128xf32>
    %160 = tpu.concatenate %150, %151, %152, %153, %154, %155, %156, %157, %158, %159 in 0 : vector<8x128xf32>, vector<8x128xf32>, vector<8x128xf32>, vector<8x128xf32>, vector<8x128xf32>, vector<8x128xf32>, vector<8x128xf32>, vector<8x128xf32>, vector<8x128xf32>, vector<8x128xf32> -> vector<80x128xf32>
    %161 = vector.extract_strided_slice %54 {offsets = [2, 0], sizes = [8, 128], strides = [1, 1]} : vector<10x128xf32> to vector<8x128xf32>
    %162 = vector.extract_strided_slice %56 {offsets = [2, 0], sizes = [8, 128], strides = [1, 1]} : vector<10x128xf32> to vector<8x128xf32>
    %163 = vector.extract_strided_slice %58 {offsets = [2, 0], sizes = [8, 128], strides = [1, 1]} : vector<10x128xf32> to vector<8x128xf32>
    %164 = vector.extract_strided_slice %60 {offsets = [2, 0], sizes = [8, 128], strides = [1, 1]} : vector<10x128xf32> to vector<8x128xf32>
    %165 = vector.extract_strided_slice %62 {offsets = [2, 0], sizes = [8, 128], strides = [1, 1]} : vector<10x128xf32> to vector<8x128xf32>
    %166 = vector.extract_strided_slice %64 {offsets = [2, 0], sizes = [8, 128], strides = [1, 1]} : vector<10x128xf32> to vector<8x128xf32>
    %167 = vector.extract_strided_slice %66 {offsets = [2, 0], sizes = [8, 128], strides = [1, 1]} : vector<10x128xf32> to vector<8x128xf32>
    %168 = vector.extract_strided_slice %68 {offsets = [2, 0], sizes = [8, 128], strides = [1, 1]} : vector<10x128xf32> to vector<8x128xf32>
    %169 = vector.extract_strided_slice %70 {offsets = [2, 0], sizes = [8, 128], strides = [1, 1]} : vector<10x128xf32> to vector<8x128xf32>
    %170 = vector.extract_strided_slice %72 {offsets = [2, 0], sizes = [8, 128], strides = [1, 1]} : vector<10x128xf32> to vector<8x128xf32>
    %171 = tpu.concatenate %161, %162, %163, %164, %165, %166, %167, %168, %169, %170 in 0 : vector<8x128xf32>, vector<8x128xf32>, vector<8x128xf32>, vector<8x128xf32>, vector<8x128xf32>, vector<8x128xf32>, vector<8x128xf32>, vector<8x128xf32>, vector<8x128xf32>, vector<8x128xf32> -> vector<80x128xf32>
    %172 = tpu.concatenate %83, %94, %105, %116, %127, %138, %149, %160, %171 in 1 : vector<80x128xf32>, vector<80x128xf32>, vector<80x128xf32>, vector<80x128xf32>, vector<80x128xf32>, vector<80x128xf32>, vector<80x128xf32>, vector<80x128xf32>, vector<80x128xf32> -> vector<80x1152xf32>
    %cst_20 = arith.constant dense<0.000000e+00> : vector<80x128xf32>
    %173 = tpu.matmul %172, %7, %cst_20 {dimension_numbers = #tpu.dot_dimension_numbers<[1], [0], [0], [1], [0, 0, 1, 1], [], []>} : vector<80x1152xf32>, vector<1152x128xf32>, vector<80x128xf32> -> vector<80x128xf32>
    %cst_21 = arith.constant 0.000000e+00 : f32
    %174 = vector.broadcast %cst_21 : f32 to vector<1x128xf32>
    %c-1_i32 = arith.constant -1 : i32
    %175 = arith.addi %0, %c-1_i32 : i32
    %c0_i32_22 = arith.constant 0 : i32
    %176 = arith.cmpi sge, %175, %c0_i32_22 : i32
    %c8_i32_23 = arith.constant 8 : i32
    %177 = arith.cmpi slt, %175, %c8_i32_23 : i32
    %178 = arith.andi %176, %177 : i1
    %179 = arith.extui %178 : i1 to i32
    %180 = arith.sitofp %179 : i32 to f32
    %181 = vector.extract_strided_slice %173 {offsets = [0, 0], sizes = [8, 128], strides = [1, 1]} : vector<80x128xf32> to vector<8x128xf32>
    %182 = vector.broadcast %4 : vector<1x128xf32> to vector<8x128xf32>
    %183 = arith.mulf %181, %182 : vector<8x128xf32>
    %184 = vector.broadcast %5 : vector<1x128xf32> to vector<8x128xf32>
    %185 = arith.addf %183, %184 : vector<8x128xf32>
    %cst_24 = arith.constant 0.000000e+00 : f32
    %186 = vector.broadcast %cst_24 : f32 to vector<8x128xf32>
    %187 = arith.maximumf %185, %186 : vector<8x128xf32>
    %188 = vector.broadcast %180 : f32 to vector<8x128xf32>
    %189 = arith.mulf %187, %188 : vector<8x128xf32>
    %190 = tpu.concatenate %174, %189, %174 in 0 : vector<1x128xf32>, vector<8x128xf32>, vector<1x128xf32> -> vector<10x128xf32>
    %c0_i32_25 = arith.constant 0 : i32
    %191 = arith.addi %0, %c0_i32_25 : i32
    %c0_i32_26 = arith.constant 0 : i32
    %192 = arith.cmpi sge, %191, %c0_i32_26 : i32
    %c8_i32_27 = arith.constant 8 : i32
    %193 = arith.cmpi slt, %191, %c8_i32_27 : i32
    %194 = arith.andi %192, %193 : i1
    %195 = arith.extui %194 : i1 to i32
    %196 = arith.sitofp %195 : i32 to f32
    %197 = vector.extract_strided_slice %173 {offsets = [8, 0], sizes = [8, 128], strides = [1, 1]} : vector<80x128xf32> to vector<8x128xf32>
    %198 = vector.broadcast %4 : vector<1x128xf32> to vector<8x128xf32>
    %199 = arith.mulf %197, %198 : vector<8x128xf32>
    %200 = vector.broadcast %5 : vector<1x128xf32> to vector<8x128xf32>
    %201 = arith.addf %199, %200 : vector<8x128xf32>
    %cst_28 = arith.constant 0.000000e+00 : f32
    %202 = vector.broadcast %cst_28 : f32 to vector<8x128xf32>
    %203 = arith.maximumf %201, %202 : vector<8x128xf32>
    %204 = vector.broadcast %196 : f32 to vector<8x128xf32>
    %205 = arith.mulf %203, %204 : vector<8x128xf32>
    %206 = tpu.concatenate %174, %205, %174 in 0 : vector<1x128xf32>, vector<8x128xf32>, vector<1x128xf32> -> vector<10x128xf32>
    %c1_i32_29 = arith.constant 1 : i32
    %207 = arith.addi %0, %c1_i32_29 : i32
    %c0_i32_30 = arith.constant 0 : i32
    %208 = arith.cmpi sge, %207, %c0_i32_30 : i32
    %c8_i32_31 = arith.constant 8 : i32
    %209 = arith.cmpi slt, %207, %c8_i32_31 : i32
    %210 = arith.andi %208, %209 : i1
    %211 = arith.extui %210 : i1 to i32
    %212 = arith.sitofp %211 : i32 to f32
    %213 = vector.extract_strided_slice %173 {offsets = [16, 0], sizes = [8, 128], strides = [1, 1]} : vector<80x128xf32> to vector<8x128xf32>
    %214 = vector.broadcast %4 : vector<1x128xf32> to vector<8x128xf32>
    %215 = arith.mulf %213, %214 : vector<8x128xf32>
    %216 = vector.broadcast %5 : vector<1x128xf32> to vector<8x128xf32>
    %217 = arith.addf %215, %216 : vector<8x128xf32>
    %cst_32 = arith.constant 0.000000e+00 : f32
    %218 = vector.broadcast %cst_32 : f32 to vector<8x128xf32>
    %219 = arith.maximumf %217, %218 : vector<8x128xf32>
    %220 = vector.broadcast %212 : f32 to vector<8x128xf32>
    %221 = arith.mulf %219, %220 : vector<8x128xf32>
    %222 = tpu.concatenate %174, %221, %174 in 0 : vector<1x128xf32>, vector<8x128xf32>, vector<1x128xf32> -> vector<10x128xf32>
    %c2_i32_33 = arith.constant 2 : i32
    %223 = arith.addi %0, %c2_i32_33 : i32
    %c0_i32_34 = arith.constant 0 : i32
    %224 = arith.cmpi sge, %223, %c0_i32_34 : i32
    %c8_i32_35 = arith.constant 8 : i32
    %225 = arith.cmpi slt, %223, %c8_i32_35 : i32
    %226 = arith.andi %224, %225 : i1
    %227 = arith.extui %226 : i1 to i32
    %228 = arith.sitofp %227 : i32 to f32
    %229 = vector.extract_strided_slice %173 {offsets = [24, 0], sizes = [8, 128], strides = [1, 1]} : vector<80x128xf32> to vector<8x128xf32>
    %230 = vector.broadcast %4 : vector<1x128xf32> to vector<8x128xf32>
    %231 = arith.mulf %229, %230 : vector<8x128xf32>
    %232 = vector.broadcast %5 : vector<1x128xf32> to vector<8x128xf32>
    %233 = arith.addf %231, %232 : vector<8x128xf32>
    %cst_36 = arith.constant 0.000000e+00 : f32
    %234 = vector.broadcast %cst_36 : f32 to vector<8x128xf32>
    %235 = arith.maximumf %233, %234 : vector<8x128xf32>
    %236 = vector.broadcast %228 : f32 to vector<8x128xf32>
    %237 = arith.mulf %235, %236 : vector<8x128xf32>
    %238 = tpu.concatenate %174, %237, %174 in 0 : vector<1x128xf32>, vector<8x128xf32>, vector<1x128xf32> -> vector<10x128xf32>
    %c3_i32 = arith.constant 3 : i32
    %239 = arith.addi %0, %c3_i32 : i32
    %c0_i32_37 = arith.constant 0 : i32
    %240 = arith.cmpi sge, %239, %c0_i32_37 : i32
    %c8_i32_38 = arith.constant 8 : i32
    %241 = arith.cmpi slt, %239, %c8_i32_38 : i32
    %242 = arith.andi %240, %241 : i1
    %243 = arith.extui %242 : i1 to i32
    %244 = arith.sitofp %243 : i32 to f32
    %245 = vector.extract_strided_slice %173 {offsets = [32, 0], sizes = [8, 128], strides = [1, 1]} : vector<80x128xf32> to vector<8x128xf32>
    %246 = vector.broadcast %4 : vector<1x128xf32> to vector<8x128xf32>
    %247 = arith.mulf %245, %246 : vector<8x128xf32>
    %248 = vector.broadcast %5 : vector<1x128xf32> to vector<8x128xf32>
    %249 = arith.addf %247, %248 : vector<8x128xf32>
    %cst_39 = arith.constant 0.000000e+00 : f32
    %250 = vector.broadcast %cst_39 : f32 to vector<8x128xf32>
    %251 = arith.maximumf %249, %250 : vector<8x128xf32>
    %252 = vector.broadcast %244 : f32 to vector<8x128xf32>
    %253 = arith.mulf %251, %252 : vector<8x128xf32>
    %254 = tpu.concatenate %174, %253, %174 in 0 : vector<1x128xf32>, vector<8x128xf32>, vector<1x128xf32> -> vector<10x128xf32>
    %c4_i32 = arith.constant 4 : i32
    %255 = arith.addi %0, %c4_i32 : i32
    %c0_i32_40 = arith.constant 0 : i32
    %256 = arith.cmpi sge, %255, %c0_i32_40 : i32
    %c8_i32_41 = arith.constant 8 : i32
    %257 = arith.cmpi slt, %255, %c8_i32_41 : i32
    %258 = arith.andi %256, %257 : i1
    %259 = arith.extui %258 : i1 to i32
    %260 = arith.sitofp %259 : i32 to f32
    %261 = vector.extract_strided_slice %173 {offsets = [40, 0], sizes = [8, 128], strides = [1, 1]} : vector<80x128xf32> to vector<8x128xf32>
    %262 = vector.broadcast %4 : vector<1x128xf32> to vector<8x128xf32>
    %263 = arith.mulf %261, %262 : vector<8x128xf32>
    %264 = vector.broadcast %5 : vector<1x128xf32> to vector<8x128xf32>
    %265 = arith.addf %263, %264 : vector<8x128xf32>
    %cst_42 = arith.constant 0.000000e+00 : f32
    %266 = vector.broadcast %cst_42 : f32 to vector<8x128xf32>
    %267 = arith.maximumf %265, %266 : vector<8x128xf32>
    %268 = vector.broadcast %260 : f32 to vector<8x128xf32>
    %269 = arith.mulf %267, %268 : vector<8x128xf32>
    %270 = tpu.concatenate %174, %269, %174 in 0 : vector<1x128xf32>, vector<8x128xf32>, vector<1x128xf32> -> vector<10x128xf32>
    %c5_i32 = arith.constant 5 : i32
    %271 = arith.addi %0, %c5_i32 : i32
    %c0_i32_43 = arith.constant 0 : i32
    %272 = arith.cmpi sge, %271, %c0_i32_43 : i32
    %c8_i32_44 = arith.constant 8 : i32
    %273 = arith.cmpi slt, %271, %c8_i32_44 : i32
    %274 = arith.andi %272, %273 : i1
    %275 = arith.extui %274 : i1 to i32
    %276 = arith.sitofp %275 : i32 to f32
    %277 = vector.extract_strided_slice %173 {offsets = [48, 0], sizes = [8, 128], strides = [1, 1]} : vector<80x128xf32> to vector<8x128xf32>
    %278 = vector.broadcast %4 : vector<1x128xf32> to vector<8x128xf32>
    %279 = arith.mulf %277, %278 : vector<8x128xf32>
    %280 = vector.broadcast %5 : vector<1x128xf32> to vector<8x128xf32>
    %281 = arith.addf %279, %280 : vector<8x128xf32>
    %cst_45 = arith.constant 0.000000e+00 : f32
    %282 = vector.broadcast %cst_45 : f32 to vector<8x128xf32>
    %283 = arith.maximumf %281, %282 : vector<8x128xf32>
    %284 = vector.broadcast %276 : f32 to vector<8x128xf32>
    %285 = arith.mulf %283, %284 : vector<8x128xf32>
    %286 = tpu.concatenate %174, %285, %174 in 0 : vector<1x128xf32>, vector<8x128xf32>, vector<1x128xf32> -> vector<10x128xf32>
    %c6_i32 = arith.constant 6 : i32
    %287 = arith.addi %0, %c6_i32 : i32
    %c0_i32_46 = arith.constant 0 : i32
    %288 = arith.cmpi sge, %287, %c0_i32_46 : i32
    %c8_i32_47 = arith.constant 8 : i32
    %289 = arith.cmpi slt, %287, %c8_i32_47 : i32
    %290 = arith.andi %288, %289 : i1
    %291 = arith.extui %290 : i1 to i32
    %292 = arith.sitofp %291 : i32 to f32
    %293 = vector.extract_strided_slice %173 {offsets = [56, 0], sizes = [8, 128], strides = [1, 1]} : vector<80x128xf32> to vector<8x128xf32>
    %294 = vector.broadcast %4 : vector<1x128xf32> to vector<8x128xf32>
    %295 = arith.mulf %293, %294 : vector<8x128xf32>
    %296 = vector.broadcast %5 : vector<1x128xf32> to vector<8x128xf32>
    %297 = arith.addf %295, %296 : vector<8x128xf32>
    %cst_48 = arith.constant 0.000000e+00 : f32
    %298 = vector.broadcast %cst_48 : f32 to vector<8x128xf32>
    %299 = arith.maximumf %297, %298 : vector<8x128xf32>
    %300 = vector.broadcast %292 : f32 to vector<8x128xf32>
    %301 = arith.mulf %299, %300 : vector<8x128xf32>
    %302 = tpu.concatenate %174, %301, %174 in 0 : vector<1x128xf32>, vector<8x128xf32>, vector<1x128xf32> -> vector<10x128xf32>
    %c7_i32 = arith.constant 7 : i32
    %303 = arith.addi %0, %c7_i32 : i32
    %c0_i32_49 = arith.constant 0 : i32
    %304 = arith.cmpi sge, %303, %c0_i32_49 : i32
    %c8_i32_50 = arith.constant 8 : i32
    %305 = arith.cmpi slt, %303, %c8_i32_50 : i32
    %306 = arith.andi %304, %305 : i1
    %307 = arith.extui %306 : i1 to i32
    %308 = arith.sitofp %307 : i32 to f32
    %309 = vector.extract_strided_slice %173 {offsets = [64, 0], sizes = [8, 128], strides = [1, 1]} : vector<80x128xf32> to vector<8x128xf32>
    %310 = vector.broadcast %4 : vector<1x128xf32> to vector<8x128xf32>
    %311 = arith.mulf %309, %310 : vector<8x128xf32>
    %312 = vector.broadcast %5 : vector<1x128xf32> to vector<8x128xf32>
    %313 = arith.addf %311, %312 : vector<8x128xf32>
    %cst_51 = arith.constant 0.000000e+00 : f32
    %314 = vector.broadcast %cst_51 : f32 to vector<8x128xf32>
    %315 = arith.maximumf %313, %314 : vector<8x128xf32>
    %316 = vector.broadcast %308 : f32 to vector<8x128xf32>
    %317 = arith.mulf %315, %316 : vector<8x128xf32>
    %318 = tpu.concatenate %174, %317, %174 in 0 : vector<1x128xf32>, vector<8x128xf32>, vector<1x128xf32> -> vector<10x128xf32>
    %c8_i32_52 = arith.constant 8 : i32
    %319 = arith.addi %0, %c8_i32_52 : i32
    %c0_i32_53 = arith.constant 0 : i32
    %320 = arith.cmpi sge, %319, %c0_i32_53 : i32
    %c8_i32_54 = arith.constant 8 : i32
    %321 = arith.cmpi slt, %319, %c8_i32_54 : i32
    %322 = arith.andi %320, %321 : i1
    %323 = arith.extui %322 : i1 to i32
    %324 = arith.sitofp %323 : i32 to f32
    %325 = vector.extract_strided_slice %173 {offsets = [72, 0], sizes = [8, 128], strides = [1, 1]} : vector<80x128xf32> to vector<8x128xf32>
    %326 = vector.broadcast %4 : vector<1x128xf32> to vector<8x128xf32>
    %327 = arith.mulf %325, %326 : vector<8x128xf32>
    %328 = vector.broadcast %5 : vector<1x128xf32> to vector<8x128xf32>
    %329 = arith.addf %327, %328 : vector<8x128xf32>
    %cst_55 = arith.constant 0.000000e+00 : f32
    %330 = vector.broadcast %cst_55 : f32 to vector<8x128xf32>
    %331 = arith.maximumf %329, %330 : vector<8x128xf32>
    %332 = vector.broadcast %324 : f32 to vector<8x128xf32>
    %333 = arith.mulf %331, %332 : vector<8x128xf32>
    %334 = tpu.concatenate %174, %333, %174 in 0 : vector<1x128xf32>, vector<8x128xf32>, vector<1x128xf32> -> vector<10x128xf32>
    %335 = vector.extract_strided_slice %190 {offsets = [0, 0], sizes = [8, 128], strides = [1, 1]} : vector<10x128xf32> to vector<8x128xf32>
    %336 = vector.extract_strided_slice %206 {offsets = [0, 0], sizes = [8, 128], strides = [1, 1]} : vector<10x128xf32> to vector<8x128xf32>
    %337 = vector.extract_strided_slice %222 {offsets = [0, 0], sizes = [8, 128], strides = [1, 1]} : vector<10x128xf32> to vector<8x128xf32>
    %338 = vector.extract_strided_slice %238 {offsets = [0, 0], sizes = [8, 128], strides = [1, 1]} : vector<10x128xf32> to vector<8x128xf32>
    %339 = vector.extract_strided_slice %254 {offsets = [0, 0], sizes = [8, 128], strides = [1, 1]} : vector<10x128xf32> to vector<8x128xf32>
    %340 = vector.extract_strided_slice %270 {offsets = [0, 0], sizes = [8, 128], strides = [1, 1]} : vector<10x128xf32> to vector<8x128xf32>
    %341 = vector.extract_strided_slice %286 {offsets = [0, 0], sizes = [8, 128], strides = [1, 1]} : vector<10x128xf32> to vector<8x128xf32>
    %342 = vector.extract_strided_slice %302 {offsets = [0, 0], sizes = [8, 128], strides = [1, 1]} : vector<10x128xf32> to vector<8x128xf32>
    %343 = tpu.concatenate %335, %336, %337, %338, %339, %340, %341, %342 in 0 : vector<8x128xf32>, vector<8x128xf32>, vector<8x128xf32>, vector<8x128xf32>, vector<8x128xf32>, vector<8x128xf32>, vector<8x128xf32>, vector<8x128xf32> -> vector<64x128xf32>
    %344 = vector.extract_strided_slice %190 {offsets = [1, 0], sizes = [8, 128], strides = [1, 1]} : vector<10x128xf32> to vector<8x128xf32>
    %345 = vector.extract_strided_slice %206 {offsets = [1, 0], sizes = [8, 128], strides = [1, 1]} : vector<10x128xf32> to vector<8x128xf32>
    %346 = vector.extract_strided_slice %222 {offsets = [1, 0], sizes = [8, 128], strides = [1, 1]} : vector<10x128xf32> to vector<8x128xf32>
    %347 = vector.extract_strided_slice %238 {offsets = [1, 0], sizes = [8, 128], strides = [1, 1]} : vector<10x128xf32> to vector<8x128xf32>
    %348 = vector.extract_strided_slice %254 {offsets = [1, 0], sizes = [8, 128], strides = [1, 1]} : vector<10x128xf32> to vector<8x128xf32>
    %349 = vector.extract_strided_slice %270 {offsets = [1, 0], sizes = [8, 128], strides = [1, 1]} : vector<10x128xf32> to vector<8x128xf32>
    %350 = vector.extract_strided_slice %286 {offsets = [1, 0], sizes = [8, 128], strides = [1, 1]} : vector<10x128xf32> to vector<8x128xf32>
    %351 = vector.extract_strided_slice %302 {offsets = [1, 0], sizes = [8, 128], strides = [1, 1]} : vector<10x128xf32> to vector<8x128xf32>
    %352 = tpu.concatenate %344, %345, %346, %347, %348, %349, %350, %351 in 0 : vector<8x128xf32>, vector<8x128xf32>, vector<8x128xf32>, vector<8x128xf32>, vector<8x128xf32>, vector<8x128xf32>, vector<8x128xf32>, vector<8x128xf32> -> vector<64x128xf32>
    %353 = vector.extract_strided_slice %190 {offsets = [2, 0], sizes = [8, 128], strides = [1, 1]} : vector<10x128xf32> to vector<8x128xf32>
    %354 = vector.extract_strided_slice %206 {offsets = [2, 0], sizes = [8, 128], strides = [1, 1]} : vector<10x128xf32> to vector<8x128xf32>
    %355 = vector.extract_strided_slice %222 {offsets = [2, 0], sizes = [8, 128], strides = [1, 1]} : vector<10x128xf32> to vector<8x128xf32>
    %356 = vector.extract_strided_slice %238 {offsets = [2, 0], sizes = [8, 128], strides = [1, 1]} : vector<10x128xf32> to vector<8x128xf32>
    %357 = vector.extract_strided_slice %254 {offsets = [2, 0], sizes = [8, 128], strides = [1, 1]} : vector<10x128xf32> to vector<8x128xf32>
    %358 = vector.extract_strided_slice %270 {offsets = [2, 0], sizes = [8, 128], strides = [1, 1]} : vector<10x128xf32> to vector<8x128xf32>
    %359 = vector.extract_strided_slice %286 {offsets = [2, 0], sizes = [8, 128], strides = [1, 1]} : vector<10x128xf32> to vector<8x128xf32>
    %360 = vector.extract_strided_slice %302 {offsets = [2, 0], sizes = [8, 128], strides = [1, 1]} : vector<10x128xf32> to vector<8x128xf32>
    %361 = tpu.concatenate %353, %354, %355, %356, %357, %358, %359, %360 in 0 : vector<8x128xf32>, vector<8x128xf32>, vector<8x128xf32>, vector<8x128xf32>, vector<8x128xf32>, vector<8x128xf32>, vector<8x128xf32>, vector<8x128xf32> -> vector<64x128xf32>
    %362 = vector.extract_strided_slice %206 {offsets = [0, 0], sizes = [8, 128], strides = [1, 1]} : vector<10x128xf32> to vector<8x128xf32>
    %363 = vector.extract_strided_slice %222 {offsets = [0, 0], sizes = [8, 128], strides = [1, 1]} : vector<10x128xf32> to vector<8x128xf32>
    %364 = vector.extract_strided_slice %238 {offsets = [0, 0], sizes = [8, 128], strides = [1, 1]} : vector<10x128xf32> to vector<8x128xf32>
    %365 = vector.extract_strided_slice %254 {offsets = [0, 0], sizes = [8, 128], strides = [1, 1]} : vector<10x128xf32> to vector<8x128xf32>
    %366 = vector.extract_strided_slice %270 {offsets = [0, 0], sizes = [8, 128], strides = [1, 1]} : vector<10x128xf32> to vector<8x128xf32>
    %367 = vector.extract_strided_slice %286 {offsets = [0, 0], sizes = [8, 128], strides = [1, 1]} : vector<10x128xf32> to vector<8x128xf32>
    %368 = vector.extract_strided_slice %302 {offsets = [0, 0], sizes = [8, 128], strides = [1, 1]} : vector<10x128xf32> to vector<8x128xf32>
    %369 = vector.extract_strided_slice %318 {offsets = [0, 0], sizes = [8, 128], strides = [1, 1]} : vector<10x128xf32> to vector<8x128xf32>
    %370 = tpu.concatenate %362, %363, %364, %365, %366, %367, %368, %369 in 0 : vector<8x128xf32>, vector<8x128xf32>, vector<8x128xf32>, vector<8x128xf32>, vector<8x128xf32>, vector<8x128xf32>, vector<8x128xf32>, vector<8x128xf32> -> vector<64x128xf32>
    %371 = vector.extract_strided_slice %206 {offsets = [1, 0], sizes = [8, 128], strides = [1, 1]} : vector<10x128xf32> to vector<8x128xf32>
    %372 = vector.extract_strided_slice %222 {offsets = [1, 0], sizes = [8, 128], strides = [1, 1]} : vector<10x128xf32> to vector<8x128xf32>
    %373 = vector.extract_strided_slice %238 {offsets = [1, 0], sizes = [8, 128], strides = [1, 1]} : vector<10x128xf32> to vector<8x128xf32>
    %374 = vector.extract_strided_slice %254 {offsets = [1, 0], sizes = [8, 128], strides = [1, 1]} : vector<10x128xf32> to vector<8x128xf32>
    %375 = vector.extract_strided_slice %270 {offsets = [1, 0], sizes = [8, 128], strides = [1, 1]} : vector<10x128xf32> to vector<8x128xf32>
    %376 = vector.extract_strided_slice %286 {offsets = [1, 0], sizes = [8, 128], strides = [1, 1]} : vector<10x128xf32> to vector<8x128xf32>
    %377 = vector.extract_strided_slice %302 {offsets = [1, 0], sizes = [8, 128], strides = [1, 1]} : vector<10x128xf32> to vector<8x128xf32>
    %378 = vector.extract_strided_slice %318 {offsets = [1, 0], sizes = [8, 128], strides = [1, 1]} : vector<10x128xf32> to vector<8x128xf32>
    %379 = tpu.concatenate %371, %372, %373, %374, %375, %376, %377, %378 in 0 : vector<8x128xf32>, vector<8x128xf32>, vector<8x128xf32>, vector<8x128xf32>, vector<8x128xf32>, vector<8x128xf32>, vector<8x128xf32>, vector<8x128xf32> -> vector<64x128xf32>
    %380 = vector.extract_strided_slice %206 {offsets = [2, 0], sizes = [8, 128], strides = [1, 1]} : vector<10x128xf32> to vector<8x128xf32>
    %381 = vector.extract_strided_slice %222 {offsets = [2, 0], sizes = [8, 128], strides = [1, 1]} : vector<10x128xf32> to vector<8x128xf32>
    %382 = vector.extract_strided_slice %238 {offsets = [2, 0], sizes = [8, 128], strides = [1, 1]} : vector<10x128xf32> to vector<8x128xf32>
    %383 = vector.extract_strided_slice %254 {offsets = [2, 0], sizes = [8, 128], strides = [1, 1]} : vector<10x128xf32> to vector<8x128xf32>
    %384 = vector.extract_strided_slice %270 {offsets = [2, 0], sizes = [8, 128], strides = [1, 1]} : vector<10x128xf32> to vector<8x128xf32>
    %385 = vector.extract_strided_slice %286 {offsets = [2, 0], sizes = [8, 128], strides = [1, 1]} : vector<10x128xf32> to vector<8x128xf32>
    %386 = vector.extract_strided_slice %302 {offsets = [2, 0], sizes = [8, 128], strides = [1, 1]} : vector<10x128xf32> to vector<8x128xf32>
    %387 = vector.extract_strided_slice %318 {offsets = [2, 0], sizes = [8, 128], strides = [1, 1]} : vector<10x128xf32> to vector<8x128xf32>
    %388 = tpu.concatenate %380, %381, %382, %383, %384, %385, %386, %387 in 0 : vector<8x128xf32>, vector<8x128xf32>, vector<8x128xf32>, vector<8x128xf32>, vector<8x128xf32>, vector<8x128xf32>, vector<8x128xf32>, vector<8x128xf32> -> vector<64x128xf32>
    %389 = vector.extract_strided_slice %222 {offsets = [0, 0], sizes = [8, 128], strides = [1, 1]} : vector<10x128xf32> to vector<8x128xf32>
    %390 = vector.extract_strided_slice %238 {offsets = [0, 0], sizes = [8, 128], strides = [1, 1]} : vector<10x128xf32> to vector<8x128xf32>
    %391 = vector.extract_strided_slice %254 {offsets = [0, 0], sizes = [8, 128], strides = [1, 1]} : vector<10x128xf32> to vector<8x128xf32>
    %392 = vector.extract_strided_slice %270 {offsets = [0, 0], sizes = [8, 128], strides = [1, 1]} : vector<10x128xf32> to vector<8x128xf32>
    %393 = vector.extract_strided_slice %286 {offsets = [0, 0], sizes = [8, 128], strides = [1, 1]} : vector<10x128xf32> to vector<8x128xf32>
    %394 = vector.extract_strided_slice %302 {offsets = [0, 0], sizes = [8, 128], strides = [1, 1]} : vector<10x128xf32> to vector<8x128xf32>
    %395 = vector.extract_strided_slice %318 {offsets = [0, 0], sizes = [8, 128], strides = [1, 1]} : vector<10x128xf32> to vector<8x128xf32>
    %396 = vector.extract_strided_slice %334 {offsets = [0, 0], sizes = [8, 128], strides = [1, 1]} : vector<10x128xf32> to vector<8x128xf32>
    %397 = tpu.concatenate %389, %390, %391, %392, %393, %394, %395, %396 in 0 : vector<8x128xf32>, vector<8x128xf32>, vector<8x128xf32>, vector<8x128xf32>, vector<8x128xf32>, vector<8x128xf32>, vector<8x128xf32>, vector<8x128xf32> -> vector<64x128xf32>
    %398 = vector.extract_strided_slice %222 {offsets = [1, 0], sizes = [8, 128], strides = [1, 1]} : vector<10x128xf32> to vector<8x128xf32>
    %399 = vector.extract_strided_slice %238 {offsets = [1, 0], sizes = [8, 128], strides = [1, 1]} : vector<10x128xf32> to vector<8x128xf32>
    %400 = vector.extract_strided_slice %254 {offsets = [1, 0], sizes = [8, 128], strides = [1, 1]} : vector<10x128xf32> to vector<8x128xf32>
    %401 = vector.extract_strided_slice %270 {offsets = [1, 0], sizes = [8, 128], strides = [1, 1]} : vector<10x128xf32> to vector<8x128xf32>
    %402 = vector.extract_strided_slice %286 {offsets = [1, 0], sizes = [8, 128], strides = [1, 1]} : vector<10x128xf32> to vector<8x128xf32>
    %403 = vector.extract_strided_slice %302 {offsets = [1, 0], sizes = [8, 128], strides = [1, 1]} : vector<10x128xf32> to vector<8x128xf32>
    %404 = vector.extract_strided_slice %318 {offsets = [1, 0], sizes = [8, 128], strides = [1, 1]} : vector<10x128xf32> to vector<8x128xf32>
    %405 = vector.extract_strided_slice %334 {offsets = [1, 0], sizes = [8, 128], strides = [1, 1]} : vector<10x128xf32> to vector<8x128xf32>
    %406 = tpu.concatenate %398, %399, %400, %401, %402, %403, %404, %405 in 0 : vector<8x128xf32>, vector<8x128xf32>, vector<8x128xf32>, vector<8x128xf32>, vector<8x128xf32>, vector<8x128xf32>, vector<8x128xf32>, vector<8x128xf32> -> vector<64x128xf32>
    %407 = vector.extract_strided_slice %222 {offsets = [2, 0], sizes = [8, 128], strides = [1, 1]} : vector<10x128xf32> to vector<8x128xf32>
    %408 = vector.extract_strided_slice %238 {offsets = [2, 0], sizes = [8, 128], strides = [1, 1]} : vector<10x128xf32> to vector<8x128xf32>
    %409 = vector.extract_strided_slice %254 {offsets = [2, 0], sizes = [8, 128], strides = [1, 1]} : vector<10x128xf32> to vector<8x128xf32>
    %410 = vector.extract_strided_slice %270 {offsets = [2, 0], sizes = [8, 128], strides = [1, 1]} : vector<10x128xf32> to vector<8x128xf32>
    %411 = vector.extract_strided_slice %286 {offsets = [2, 0], sizes = [8, 128], strides = [1, 1]} : vector<10x128xf32> to vector<8x128xf32>
    %412 = vector.extract_strided_slice %302 {offsets = [2, 0], sizes = [8, 128], strides = [1, 1]} : vector<10x128xf32> to vector<8x128xf32>
    %413 = vector.extract_strided_slice %318 {offsets = [2, 0], sizes = [8, 128], strides = [1, 1]} : vector<10x128xf32> to vector<8x128xf32>
    %414 = vector.extract_strided_slice %334 {offsets = [2, 0], sizes = [8, 128], strides = [1, 1]} : vector<10x128xf32> to vector<8x128xf32>
    %415 = tpu.concatenate %407, %408, %409, %410, %411, %412, %413, %414 in 0 : vector<8x128xf32>, vector<8x128xf32>, vector<8x128xf32>, vector<8x128xf32>, vector<8x128xf32>, vector<8x128xf32>, vector<8x128xf32>, vector<8x128xf32> -> vector<64x128xf32>
    %416 = tpu.concatenate %343, %352, %361, %370, %379, %388, %397, %406, %415 in 1 : vector<64x128xf32>, vector<64x128xf32>, vector<64x128xf32>, vector<64x128xf32>, vector<64x128xf32>, vector<64x128xf32>, vector<64x128xf32>, vector<64x128xf32>, vector<64x128xf32> -> vector<64x1152xf32>
    %cst_56 = arith.constant dense<0.000000e+00> : vector<64x128xf32>
    %417 = tpu.matmul %416, %9, %cst_56 {dimension_numbers = #tpu.dot_dimension_numbers<[1], [0], [0], [1], [0, 0, 1, 1], [], []>} : vector<64x1152xf32>, vector<1152x128xf32>, vector<64x128xf32> -> vector<64x128xf32>
    %418 = vector.extract_strided_slice %417 {offsets = [0, 0], sizes = [8, 128], strides = [1, 1]} : vector<64x128xf32> to vector<8x128xf32>
    %419 = vector.extract_strided_slice %11 {offsets = [0, 1, 0], sizes = [1, 8, 128], strides = [1, 1, 1]} : vector<8x10x128xf32> to vector<1x8x128xf32>
    %420 = vector.shape_cast %419 : vector<1x8x128xf32> to vector<8x128xf32>
    %421 = arith.addf %418, %420 : vector<8x128xf32>
    %c0_57 = arith.constant 0 : index
    %c0_58 = arith.constant 0 : index
    %c0_59 = arith.constant 0 : index
    %c0_60 = arith.constant 0 : index
    %422 = vector.load %arg7[%c0_57, %c0_58, %c0_59, %c0_60] : memref<1x8x8x128xf32, #tpu.memory_space<vmem>>, vector<1x1x8x128xf32>
    %423 = vector.shape_cast %422 : vector<1x1x8x128xf32> to vector<8x128xf32>
    %424 = vector.shape_cast %421 : vector<8x128xf32> to vector<1x1x8x128xf32>
    tpu.vector_store %arg7[%c0_57, %c0_58, %c0_59, %c0_60], %424 {strides = array<i32>} : memref<1x8x8x128xf32, #tpu.memory_space<vmem>>, vector<1x1x8x128xf32>,
    %425 = vector.extract_strided_slice %417 {offsets = [8, 0], sizes = [8, 128], strides = [1, 1]} : vector<64x128xf32> to vector<8x128xf32>
    %426 = vector.extract_strided_slice %11 {offsets = [1, 1, 0], sizes = [1, 8, 128], strides = [1, 1, 1]} : vector<8x10x128xf32> to vector<1x8x128xf32>
    %427 = vector.shape_cast %426 : vector<1x8x128xf32> to vector<8x128xf32>
    %428 = arith.addf %425, %427 : vector<8x128xf32>
    %c0_61 = arith.constant 0 : index
    %c1_62 = arith.constant 1 : index
    %c0_63 = arith.constant 0 : index
    %c0_64 = arith.constant 0 : index
    %429 = vector.load %arg7[%c0_61, %c1_62, %c0_63, %c0_64] : memref<1x8x8x128xf32, #tpu.memory_space<vmem>>, vector<1x1x8x128xf32>
    %430 = vector.shape_cast %429 : vector<1x1x8x128xf32> to vector<8x128xf32>
    %431 = vector.shape_cast %428 : vector<8x128xf32> to vector<1x1x8x128xf32>
    tpu.vector_store %arg7[%c0_61, %c1_62, %c0_63, %c0_64], %431 {strides = array<i32>} : memref<1x8x8x128xf32, #tpu.memory_space<vmem>>, vector<1x1x8x128xf32>,
    %432 = vector.extract_strided_slice %417 {offsets = [16, 0], sizes = [8, 128], strides = [1, 1]} : vector<64x128xf32> to vector<8x128xf32>
    %433 = vector.extract_strided_slice %11 {offsets = [2, 1, 0], sizes = [1, 8, 128], strides = [1, 1, 1]} : vector<8x10x128xf32> to vector<1x8x128xf32>
    %434 = vector.shape_cast %433 : vector<1x8x128xf32> to vector<8x128xf32>
    %435 = arith.addf %432, %434 : vector<8x128xf32>
    %c0_65 = arith.constant 0 : index
    %c2 = arith.constant 2 : index
    %c0_66 = arith.constant 0 : index
    %c0_67 = arith.constant 0 : index
    %436 = vector.load %arg7[%c0_65, %c2, %c0_66, %c0_67] : memref<1x8x8x128xf32, #tpu.memory_space<vmem>>, vector<1x1x8x128xf32>
    %437 = vector.shape_cast %436 : vector<1x1x8x128xf32> to vector<8x128xf32>
    %438 = vector.shape_cast %435 : vector<8x128xf32> to vector<1x1x8x128xf32>
    tpu.vector_store %arg7[%c0_65, %c2, %c0_66, %c0_67], %438 {strides = array<i32>} : memref<1x8x8x128xf32, #tpu.memory_space<vmem>>, vector<1x1x8x128xf32>,
    %439 = vector.extract_strided_slice %417 {offsets = [24, 0], sizes = [8, 128], strides = [1, 1]} : vector<64x128xf32> to vector<8x128xf32>
    %440 = vector.extract_strided_slice %11 {offsets = [3, 1, 0], sizes = [1, 8, 128], strides = [1, 1, 1]} : vector<8x10x128xf32> to vector<1x8x128xf32>
    %441 = vector.shape_cast %440 : vector<1x8x128xf32> to vector<8x128xf32>
    %442 = arith.addf %439, %441 : vector<8x128xf32>
    %c0_68 = arith.constant 0 : index
    %c3 = arith.constant 3 : index
    %c0_69 = arith.constant 0 : index
    %c0_70 = arith.constant 0 : index
    %443 = vector.load %arg7[%c0_68, %c3, %c0_69, %c0_70] : memref<1x8x8x128xf32, #tpu.memory_space<vmem>>, vector<1x1x8x128xf32>
    %444 = vector.shape_cast %443 : vector<1x1x8x128xf32> to vector<8x128xf32>
    %445 = vector.shape_cast %442 : vector<8x128xf32> to vector<1x1x8x128xf32>
    tpu.vector_store %arg7[%c0_68, %c3, %c0_69, %c0_70], %445 {strides = array<i32>} : memref<1x8x8x128xf32, #tpu.memory_space<vmem>>, vector<1x1x8x128xf32>,
    %446 = vector.extract_strided_slice %417 {offsets = [32, 0], sizes = [8, 128], strides = [1, 1]} : vector<64x128xf32> to vector<8x128xf32>
    %447 = vector.extract_strided_slice %11 {offsets = [4, 1, 0], sizes = [1, 8, 128], strides = [1, 1, 1]} : vector<8x10x128xf32> to vector<1x8x128xf32>
    %448 = vector.shape_cast %447 : vector<1x8x128xf32> to vector<8x128xf32>
    %449 = arith.addf %446, %448 : vector<8x128xf32>
    %c0_71 = arith.constant 0 : index
    %c4 = arith.constant 4 : index
    %c0_72 = arith.constant 0 : index
    %c0_73 = arith.constant 0 : index
    %450 = vector.load %arg7[%c0_71, %c4, %c0_72, %c0_73] : memref<1x8x8x128xf32, #tpu.memory_space<vmem>>, vector<1x1x8x128xf32>
    %451 = vector.shape_cast %450 : vector<1x1x8x128xf32> to vector<8x128xf32>
    %452 = vector.shape_cast %449 : vector<8x128xf32> to vector<1x1x8x128xf32>
    tpu.vector_store %arg7[%c0_71, %c4, %c0_72, %c0_73], %452 {strides = array<i32>} : memref<1x8x8x128xf32, #tpu.memory_space<vmem>>, vector<1x1x8x128xf32>,
    %453 = vector.extract_strided_slice %417 {offsets = [40, 0], sizes = [8, 128], strides = [1, 1]} : vector<64x128xf32> to vector<8x128xf32>
    %454 = vector.extract_strided_slice %11 {offsets = [5, 1, 0], sizes = [1, 8, 128], strides = [1, 1, 1]} : vector<8x10x128xf32> to vector<1x8x128xf32>
    %455 = vector.shape_cast %454 : vector<1x8x128xf32> to vector<8x128xf32>
    %456 = arith.addf %453, %455 : vector<8x128xf32>
    %c0_74 = arith.constant 0 : index
    %c5 = arith.constant 5 : index
    %c0_75 = arith.constant 0 : index
    %c0_76 = arith.constant 0 : index
    %457 = vector.load %arg7[%c0_74, %c5, %c0_75, %c0_76] : memref<1x8x8x128xf32, #tpu.memory_space<vmem>>, vector<1x1x8x128xf32>
    %458 = vector.shape_cast %457 : vector<1x1x8x128xf32> to vector<8x128xf32>
    %459 = vector.shape_cast %456 : vector<8x128xf32> to vector<1x1x8x128xf32>
    tpu.vector_store %arg7[%c0_74, %c5, %c0_75, %c0_76], %459 {strides = array<i32>} : memref<1x8x8x128xf32, #tpu.memory_space<vmem>>, vector<1x1x8x128xf32>,
    %460 = vector.extract_strided_slice %417 {offsets = [48, 0], sizes = [8, 128], strides = [1, 1]} : vector<64x128xf32> to vector<8x128xf32>
    %461 = vector.extract_strided_slice %11 {offsets = [6, 1, 0], sizes = [1, 8, 128], strides = [1, 1, 1]} : vector<8x10x128xf32> to vector<1x8x128xf32>
    %462 = vector.shape_cast %461 : vector<1x8x128xf32> to vector<8x128xf32>
    %463 = arith.addf %460, %462 : vector<8x128xf32>
    %c0_77 = arith.constant 0 : index
    %c6 = arith.constant 6 : index
    %c0_78 = arith.constant 0 : index
    %c0_79 = arith.constant 0 : index
    %464 = vector.load %arg7[%c0_77, %c6, %c0_78, %c0_79] : memref<1x8x8x128xf32, #tpu.memory_space<vmem>>, vector<1x1x8x128xf32>
    %465 = vector.shape_cast %464 : vector<1x1x8x128xf32> to vector<8x128xf32>
    %466 = vector.shape_cast %463 : vector<8x128xf32> to vector<1x1x8x128xf32>
    tpu.vector_store %arg7[%c0_77, %c6, %c0_78, %c0_79], %466 {strides = array<i32>} : memref<1x8x8x128xf32, #tpu.memory_space<vmem>>, vector<1x1x8x128xf32>,
    %467 = vector.extract_strided_slice %417 {offsets = [56, 0], sizes = [8, 128], strides = [1, 1]} : vector<64x128xf32> to vector<8x128xf32>
    %468 = vector.extract_strided_slice %11 {offsets = [7, 1, 0], sizes = [1, 8, 128], strides = [1, 1, 1]} : vector<8x10x128xf32> to vector<1x8x128xf32>
    %469 = vector.shape_cast %468 : vector<1x8x128xf32> to vector<8x128xf32>
    %470 = arith.addf %467, %469 : vector<8x128xf32>
    %c0_80 = arith.constant 0 : index
    %c7 = arith.constant 7 : index
    %c0_81 = arith.constant 0 : index
    %c0_82 = arith.constant 0 : index
    %471 = vector.load %arg7[%c0_80, %c7, %c0_81, %c0_82] : memref<1x8x8x128xf32, #tpu.memory_space<vmem>>, vector<1x1x8x128xf32>
    %472 = vector.shape_cast %471 : vector<1x1x8x128xf32> to vector<8x128xf32>
    %473 = vector.shape_cast %470 : vector<8x128xf32> to vector<1x1x8x128xf32>
    tpu.vector_store %arg7[%c0_80, %c7, %c0_81, %c0_82], %473 {strides = array<i32>} : memref<1x8x8x128xf32, #tpu.memory_space<vmem>>, vector<1x1x8x128xf32>,
    return
  }
  func.func @transform_0(%arg0: i32, %arg1: i32) -> (i32, i32, i32, i32) {
    %c4_i32 = arith.constant 4 : i32
    %0 = arith.muli %arg1, %c4_i32 : i32
    %c1_i32 = arith.constant 1 : i32
    %1 = arith.subi %0, %c1_i32 : i32
    %c0_i32 = arith.constant 0 : i32
    %2 = arith.maxsi %1, %c0_i32 : i32
    %c0_i32_0 = arith.constant 0 : i32
    %c0_i32_1 = arith.constant 0 : i32
    %c0_i32_2 = arith.constant 0 : i32
    return %arg0, %2, %c0_i32_0, %c0_i32_1 : i32, i32, i32, i32
  }
  func.func @transform_1(%arg0: i32, %arg1: i32) -> (i32, i32, i32, i32) {
    %c0_i32 = arith.constant 0 : i32
    %c0_i32_0 = arith.constant 0 : i32
    %c0_i32_1 = arith.constant 0 : i32
    return %arg0, %arg1, %c0_i32, %c0_i32_0 : i32, i32, i32, i32
  }
  func.func @transform_2(%arg0: i32, %arg1: i32) -> (i32, i32, i32, i32) {
    %c4_i32 = arith.constant 4 : i32
    %0 = arith.muli %arg1, %c4_i32 : i32
    %c4_i32_0 = arith.constant 4 : i32
    %1 = arith.addi %0, %c4_i32_0 : i32
    %c3_i32 = arith.constant 3 : i32
    %2 = arith.minsi %1, %c3_i32 : i32
    %c0_i32 = arith.constant 0 : i32
    %c0_i32_1 = arith.constant 0 : i32
    %c0_i32_2 = arith.constant 0 : i32
    return %arg0, %2, %c0_i32, %c0_i32_1 : i32, i32, i32, i32
  }
  func.func @transform_3(%arg0: i32, %arg1: i32) -> (i32, i32) {
    %c0_i32 = arith.constant 0 : i32
    %c0_i32_0 = arith.constant 0 : i32
    %c0_i32_1 = arith.constant 0 : i32
    return %c0_i32, %c0_i32_0 : i32, i32
  }
  func.func @transform_4(%arg0: i32, %arg1: i32) -> (i32, i32, i32) {
    %c0_i32 = arith.constant 0 : i32
    %c0_i32_0 = arith.constant 0 : i32
    %c0_i32_1 = arith.constant 0 : i32
    %c0_i32_2 = arith.constant 0 : i32
    return %c0_i32, %c0_i32_0, %c0_i32_1 : i32, i32, i32
  }
  func.func @transform_5(%arg0: i32, %arg1: i32) -> (i32, i32, i32, i32) {
    %c0_i32 = arith.constant 0 : i32
    %c0_i32_0 = arith.constant 0 : i32
    %c0_i32_1 = arith.constant 0 : i32
    return %arg0, %arg1, %c0_i32, %c0_i32_0 : i32, i32, i32, i32
  }
}

</mosaic_0001>

<llo_original>
// kernel: tile.35
$region0: #{tile.35}
  #allocation0 [shape = 's32[1]{0}', space=sflag, size = 0x4, scoped, tag = 'scoped memory for tile.35']
  %s0 = inlined_call_operand.vmem [shape: f32[8], index: 0, kind: input, shape index: {}]
  %s1 = inlined_call_operand.vmem [shape: f32[16,8], index: 1, kind: output, shape index: {}]
  // Predicated region
  $region2: #{tile.35} parent=0 // pred_check
    _
  $region3: #{tile.35} parent=0 // pred_check_branch
    %3 = sbr.rel (0) target = $region5
  $region4: #{tile.35} parent=0 // pred_region
    _
  $region5: #{tile.35} parent=0 // pred_fallthru
    _
  %v4 = vld [vmem:[%s0] ss:$0 sm:$0xff]
  %5 = vst [vmem:[%s1] sm:$0xff] %v4
  %s6 = scalar_lea.vmem %s1, 8
  %7 = vst [vmem:[%s6] sm:$0xff] %v4

// kernel: tile.39
$region0: #{tile.39}
  %s0 = inlined_call_operand.vmem [shape: f32[16,8], index: 0, kind: input, shape index: {}]
  %s1 = inlined_call_operand.vmem [shape: f32[1,128], index: 1, kind: output, shape index: {}]
  $region1: #{tile.39} parent=0
    #allocation0 [shape = 'u8[4096]{0}', space=vmem, size = 0x1000, scoped, tag = 'scoped mem for output reshape']
    %v2 = vld [vmem:[%s0] sm:$0x1]
    %vm3 = vcmask 64512
    %4 = vst.msk [vmem:[#allocation0] sm:$0x1] %vm3, %v2
    %s5 = scalar_lea.vmem %s0, 15
    %v6 = vld [vmem:[%s5] sm:$0x1]
    %7 = vrot.lane.b32.xlu0 %v6, 120
    %v8 = vpop.permute.xlu0 %7
    %vm9 = vcmask 1048512
    %10 = vst.msk [vmem:[#allocation0] sm:$0x1] %vm9, %v8
    %s11 = scalar_lea.vmem %s0, 14
    %v12 = vld [vmem:[%s11] sm:$0x1]
    %13 = vrot.lane.b32.xlu0 %v12, 112
    %v14 = vpop.permute.xlu0 %13
    %vm15 = vcmask 982912
    %16 = vst.msk [vmem:[#allocation0] sm:$0x1] %vm15, %v14
    %s17 = scalar_lea.vmem %s0, 13
    %v18 = vld [vmem:[%s17] sm:$0x1]
    %19 = vrot.lane.b32.xlu0 %v18, 104
    %v20 = vpop.permute.xlu0 %19
    %vm21 = vcmask 917312
    %22 = vst.msk [vmem:[#allocation0] sm:$0x1] %vm21, %v20
    %s23 = scalar_lea.vmem %s0, 12
    %v24 = vld [vmem:[%s23] sm:$0x1]
    %25 = vrot.lane.b32.xlu0 %v24, 96
    %v26 = vpop.permute.xlu0 %25
    %vm27 = vcmask 851712
    %28 = vst.msk [vmem:[#allocation0] sm:$0x1] %vm27, %v26
    %s29 = scalar_lea.vmem %s0, 11
    %v30 = vld [vmem:[%s29] sm:$0x1]
    %31 = vrot.lane.b32.xlu0 %v30, 88
    %v32 = vpop.permute.xlu0 %31
    %vm33 = vcmask 786112
    %34 = vst.msk [vmem:[#allocation0] sm:$0x1] %vm33, %v32
    %s35 = scalar_lea.vmem %s0, 10
    %v36 = vld [vmem:[%s35] sm:$0x1]
    %37 = vrot.lane.b32.xlu0 %v36, 80
    %v38 = vpop.permute.xlu0 %37
    %vm39 = vcmask 720512
    %40 = vst.msk [vmem:[#allocation0] sm:$0x1] %vm39, %v38
    %s41 = scalar_lea.vmem %s0, 9
    %v42 = vld [vmem:[%s41] sm:$0x1]
    %43 = vrot.lane.b32.xlu0 %v42, 72
    %v44 = vpop.permute.xlu0 %43
    %vm45 = vcmask 654912
    %46 = vst.msk [vmem:[#allocation0] sm:$0x1] %vm45, %v44
    %s47 = scalar_lea.vmem %s0, 8
    %v48 = vld [vmem:[%s47] sm:$0x1]
    %49 = vrot.lane.b32.xlu0 %v48, 64
    %v50 = vpop.permute.xlu0 %49
    %vm51 = vcmask 589312
    %52 = vst.msk [vmem:[#allocation0] sm:$0x1] %vm51, %v50
    %s53 = scalar_lea.vmem %s0, 7
    %v54 = vld [vmem:[%s53] sm:$0x1]
    %55 = vrot.lane.b32.xlu0 %v54, 56
    %v56 = vpop.permute.xlu0 %55
    %vm57 = vcmask 523712
    %58 = vst.msk [vmem:[#allocation0] sm:$0x1] %vm57, %v56
    %s59 = scalar_lea.vmem %s0, 6
    %v60 = vld [vmem:[%s59] sm:$0x1]
    %61 = vrot.lane.b32.xlu0 %v60, 48
    %v62 = vpop.permute.xlu0 %61
    %vm63 = vcmask 458112
    %64 = vst.msk [vmem:[#allocation0] sm:$0x1] %vm63, %v62
    %s65 = scalar_lea.vmem %s0, 5
    %v66 = vld [vmem:[%s65] sm:$0x1]
    %67 = vrot.lane.b32.xlu0 %v66, 40
    %v68 = vpop.permute.xlu0 %67
    %vm69 = vcmask 392512
    %70 = vst.msk [vmem:[#allocation0] sm:$0x1] %vm69, %v68
    %s71 = scalar_lea.vmem %s0, 4
    %v72 = vld [vmem:[%s71] sm:$0x1]
    %73 = vrot.lane.b32.xlu0 %v72, 32
    %v74 = vpop.permute.xlu0 %73
    %vm75 = vcmask 326912
    %76 = vst.msk [vmem:[#allocation0] sm:$0x1] %vm75, %v74
    %s77 = scalar_lea.vmem %s0, 3
    %v78 = vld [vmem:[%s77] sm:$0x1]
    %79 = vrot.lane.b32.xlu0 %v78, 24
    %v80 = vpop.permute.xlu0 %79
    %vm81 = vcmask 261312
    %82 = vst.msk [vmem:[#allocation0] sm:$0x1] %vm81, %v80
    %s83 = scalar_lea.vmem %s0, 2
    %v84 = vld [vmem:[%s83] sm:$0x1]
    %85 = vrot.lane.b32.xlu0 %v84, 16
    %v86 = vpop.permute.xlu0 %85
    %vm87 = vcmask 195712
    %88 = vst.msk [vmem:[#allocation0] sm:$0x1] %vm87, %v86
    %s89 = scalar_lea.vmem %s0, 1
    %v90 = vld [vmem:[%s89] sm:$0x1]
    %91 = vrot.lane.b32.xlu0 %v90, 8
    %v92 = vpop.permute.xlu0 %91
    %vm93 = vcmask 130112
    %94 = vst.msk [vmem:[#allocation0] sm:$0x1] %vm93, %v92
    %s96 = sshll.u32 1, 1
    %s97 = ssub.s32 %s96, 1
    %v99 = vld [vmem:[#allocation0] sm:%s97]
    %s100 = sshll.u32 1, 1
    %s101 = ssub.s32 %s100, 1
    %102 = vst [vmem:[%s1] sm:%s101] %v99

// kernel: preact_basic_block.1
$region0: #{preact_basic_block.1}
  #allocation0 [shape = 'u32[]', space=smem, size = 0x4, offset = 0x4, fixed_abs, tag = 'smem constant byte address 0x4 - core index']
  #allocation1 [shape = 'u32[144,128]{1,0:T(1,128)}', space=vmem, size = 0x12000, scoped, tag = 'internal scratch']
  %s0 = inlined_call_operand.vmem [shape: f32[2,8,10,128], index: 0, kind: input, shape index: {}, may-alias: {0,1,2}]
  %s1 = inlined_call_operand.vmem [shape: f32[2,8,10,128], index: 1, kind: input, shape index: {}, may-alias: {0,1,2}]
  %s2 = inlined_call_operand.vmem [shape: f32[2,8,10,128], index: 2, kind: input, shape index: {}, may-alias: {0,1,2}]
  %s3 = inlined_call_operand.vmem [shape: f32[4,128], index: 3, kind: input, shape index: {}]
  %s4 = inlined_call_operand.vmem [shape: f32[2,1152,128], index: 4, kind: input, shape index: {}]
  %s5 = inlined_call_operand.vmem [shape: f32[2,8,8,128], index: 5, kind: output, shape index: {}]
  %s6 = sld [smem:[#allocation0]]
  $region53: #{preact_basic_block.1} parent=0
    _
  %s8 = ssub.s32 1, %s6
  %s9 = scalar_select 0, %s8, %s6
  loop: start=0, step=1, limit=4
  $region2: #{preact_basic_block.1} parent=0 // loop_pre_header
    _
  $region3: #{preact_basic_block.1} parent=0 // loop_header
    %s11 = sphi 0, %s15
    %p12 = scmp.ge.s32.totalorder %s11, 4
    %s18 = sphi 0, %s30
    %s19 = sphi 0, %s26
    %s20 = sphi 0, %s18
    %s21 = sphi 0, %s19
    %s22 = sphi 0, %s20
    %s23 = sphi 0, %s21
    %s43 = sphi 0, %s45
    %s46 = sphi 0, %s43
    %s47 = sphi 0, %s46
    %s63 = sphi 0, %s47
    %s71 = sphi 0, %s73
    %s74 = sphi 0, %s71
    %s75 = sphi 0, %s74
    %s91 = sphi 0, %s75
    %s107 = sphi 0, %s109
    %s110 = sphi 0, %s107
    %s111 = sphi 0, %s110
    %s127 = sphi 0, %s111
    %s131 = sphi 0, %s131
    %s133 = sphi 0, %s131
    %s134 = sphi 0, %s133
    %s148 = sphi 0, %s134
    %s152 = sphi 0, %s152
    %s154 = sphi 0, %s152
    %s155 = sphi 0, %s154
    %s169 = sphi 0, %s155
    %s177 = sphi 0, %s179
    %s180 = sphi 0, %s177
    %s181 = sphi 0, %s180
    %s197 = sphi 0, %s181
  $region4: #{preact_basic_block.1} parent=0 // loop_header_branch
    %14 = sbr.rel (%p12) target = $region8
  $region5: #{preact_basic_block.1} parent=0 // loop_body
    %s16 = ssub.s32 %s11, 1
    %s17 = ssub.s32 %s11, 2
    %s24 = sadd.s32 1, %s19
    %p25 = scmp.ge.s32.totalorder %s24, 1
    %s26 = scalar_select %p25, 0, %s24
    %s27 = sadd.s32 1, %s18
    %s28 = scalar_select %p25, %s27, %s18
    %p29 = scmp.ge.s32.totalorder %s28, 2
    %s30 = scalar_select %p29, 0, %s28
    %s31 = smul.u32 %s19, 4
    %s32 = ssub.s32 %s31, 1
    %p33 = scmp.gt.s32.totalorder %s32, 0
    %s34 = scalar_select %p33, %s32, 0
    %s35 = smul.u32 %s26, 4
    %s36 = ssub.s32 %s35, 1
    %p37 = scmp.gt.s32.totalorder %s36, 0
    %s38 = scalar_select %p37, %s36, 0
    %s39 = ssub.s32 %s18, %s30
    %s40 = ssub.s32 %s34, %s38
    %s41 = sor.u32 %s39, %s40
    %p42 = scmp.eq.s32.totalorder %s41, 0
    %s44 = sadd.s32 %s43, 1
    %s45 = scalar_select %p42, %s43, %s44
    %p48 = pneg %p42
    %p49 = scmp.eq.s32.totalorder %s11, 1
    %p50 = por %p48, %p49
    %p51 = scmp.ne.s32.totalorder %s43, %s46
    %p52 = scmp.eq.s32.totalorder %s11, 0
    %p53 = por %p51, %p52
    %p54 = scmp.ne.s32.totalorder %s43, %s46
    %p55 = scmp.eq.s32.totalorder %s16, 1
    %p56 = por %p54, %p55
    %p57 = scmp.ne.s32.totalorder %s46, %s47
    %p58 = scmp.eq.s32.totalorder %s16, 0
    %p59 = por %p57, %p58
    %p60 = scmp.ne.s32.totalorder %s46, %s47
    %p61 = scmp.eq.s32.totalorder %s17, 1
    %p62 = por %p60, %p61
    %p64 = scmp.ne.s32.totalorder %s47, %s63
    %p65 = scmp.eq.s32.totalorder %s17, 0
    %p66 = por %p64, %p65
    %s67 = ssub.s32 %s18, %s30
    %s68 = ssub.s32 %s19, %s26
    %s69 = sor.u32 %s67, %s68
    %p70 = scmp.eq.s32.totalorder %s69, 0
    %s72 = sadd.s32 %s71, 1
    %s73 = scalar_select %p70, %s71, %s72
    %p76 = pneg %p70
    %p77 = scmp.eq.s32.totalorder %s11, 1
    %p78 = por %p76, %p77
    %p79 = scmp.ne.s32.totalorder %s71, %s74
    %p80 = scmp.eq.s32.totalorder %s11, 0
    %p81 = por %p79, %p80
    %p82 = scmp.ne.s32.totalorder %s71, %s74
    %p83 = scmp.eq.s32.totalorder %s16, 1
    %p84 = por %p82, %p83
    %p85 = scmp.ne.s32.totalorder %s74, %s75
    %p86 = scmp.eq.s32.totalorder %s16, 0
    %p87 = por %p85, %p86
    %p88 = scmp.ne.s32.totalorder %s74, %s75
    %p89 = scmp.eq.s32.totalorder %s17, 1
    %p90 = por %p88, %p89
    %p92 = scmp.ne.s32.totalorder %s75, %s91
    %p93 = scmp.eq.s32.totalorder %s17, 0
    %p94 = por %p92, %p93
    %s95 = smul.u32 %s19, 4
    %s96 = sadd.s32 %s95, 4
    %p97 = scmp.lt.s32.totalorder %s96, 3
    %s98 = scalar_select %p97, %s96, 3
    %s99 = smul.u32 %s26, 4
    %s100 = sadd.s32 %s99, 4
    %p101 = scmp.lt.s32.totalorder %s100, 3
    %s102 = scalar_select %p101, %s100, 3
    %s103 = ssub.s32 %s18, %s30
    %s104 = ssub.s32 %s98, %s102
    %s105 = sor.u32 %s103, %s104
    %p106 = scmp.eq.s32.totalorder %s105, 0
    %s108 = sadd.s32 %s107, 1
    %s109 = scalar_select %p106, %s107, %s108
    %p112 = pneg %p106
    %p113 = scmp.eq.s32.totalorder %s11, 1
    %p114 = por %p112, %p113
    %p115 = scmp.ne.s32.totalorder %s107, %s110
    %p116 = scmp.eq.s32.totalorder %s11, 0
    %p117 = por %p115, %p116
    %p118 = scmp.ne.s32.totalorder %s107, %s110
    %p119 = scmp.eq.s32.totalorder %s16, 1
    %p120 = por %p118, %p119
    %p121 = scmp.ne.s32.totalorder %s110, %s111
    %p122 = scmp.eq.s32.totalorder %s16, 0
    %p123 = por %p121, %p122
    %p124 = scmp.ne.s32.totalorder %s110, %s111
    %p125 = scmp.eq.s32.totalorder %s17, 1
    %p126 = por %p124, %p125
    %p128 = scmp.ne.s32.totalorder %s111, %s127
    %p129 = scmp.eq.s32.totalorder %s17, 0
    %p130 = por %p128, %p129
    %s132 = sadd.s32 %s131, 1
    %p135 = scmp.eq.s32.totalorder %s11, 1
    %p136 = scmp.ne.s32.totalorder %s131, %s133
    %p137 = scmp.eq.s32.totalorder %s11, 0
    %p138 = por %p136, %p137
    %p139 = scmp.ne.s32.totalorder %s131, %s133
    %p140 = scmp.eq.s32.totalorder %s16, 1
    %p141 = por %p139, %p140
    %p142 = scmp.ne.s32.totalorder %s133, %s134
    %p143 = scmp.eq.s32.totalorder %s16, 0
    %p144 = por %p142, %p143
    %p145 = scmp.ne.s32.totalorder %s133, %s134
    %p146 = scmp.eq.s32.totalorder %s17, 1
    %p147 = por %p145, %p146
    %p149 = scmp.ne.s32.totalorder %s134, %s148
    %p150 = scmp.eq.s32.totalorder %s17, 0
    %p151 = por %p149, %p150
    %s153 = sadd.s32 %s152, 1
    %p156 = scmp.eq.s32.totalorder %s11, 1
    %p157 = scmp.ne.s32.totalorder %s152, %s154
    %p158 = scmp.eq.s32.totalorder %s11, 0
    %p159 = por %p157, %p158
    %p160 = scmp.ne.s32.totalorder %s152, %s154
    %p161 = scmp.eq.s32.totalorder %s16, 1
    %p162 = por %p160, %p161
    %p163 = scmp.ne.s32.totalorder %s154, %s155
    %p164 = scmp.eq.s32.totalorder %s16, 0
    %p165 = por %p163, %p164
    %p166 = scmp.ne.s32.totalorder %s154, %s155
    %p167 = scmp.eq.s32.totalorder %s17, 1
    %p168 = por %p166, %p167
    %p170 = scmp.ne.s32.totalorder %s155, %s169
    %p171 = scmp.eq.s32.totalorder %s17, 0
    %p172 = por %p170, %p171
    %s173 = ssub.s32 %s18, %s30
    %s174 = ssub.s32 %s19, %s26
    %s175 = sor.u32 %s173, %s174
    %p176 = scmp.eq.s32.totalorder %s175, 0
    %s178 = sadd.s32 %s177, 1
    %s179 = scalar_select %p176, %s177, %s178
    %p182 = pneg %p176
    %p183 = scmp.eq.s32.totalorder %s11, 1
    %p184 = por %p182, %p183
    %p185 = scmp.ne.s32.totalorder %s177, %s180
    %p186 = scmp.eq.s32.totalorder %s11, 0
    %p187 = por %p185, %p186
    %p188 = scmp.ne.s32.totalorder %s177, %s180
    %p189 = scmp.eq.s32.totalorder %s16, 1
    %p190 = por %p188, %p189
    %p191 = scmp.ne.s32.totalorder %s180, %s181
    %p192 = scmp.eq.s32.totalorder %s16, 0
    %p193 = por %p191, %p192
    %p194 = scmp.ne.s32.totalorder %s180, %s181
    %p195 = scmp.eq.s32.totalorder %s17, 1
    %p196 = por %p194, %p195
    %p198 = scmp.ne.s32.totalorder %s181, %s197
    %p199 = scmp.eq.s32.totalorder %s17, 0
    %p200 = por %p198, %p199
    %p201 = scmp.le.s32.totalorder 1, %s11
    %p202 = scmp.lt.s32.totalorder %s11, 3
    %p203 = pnand %p201, %p202
    %p204 = pneg %p203
    // Predicated region
    $region9: #{preact_basic_block.1} parent=5 // pred_check
      _
    $region10: #{preact_basic_block.1} parent=5 // pred_check_branch
      %206 = sbr.rel (%p203) target = $region12
    $region11: #{preact_basic_block.1} parent=5 // pred_region
      %s207 = ssub.s32 %s11, 1
      // Predicated region
      $region13: #{preact_basic_block.1} parent=11 // pred_check
        %p208 = pneg %p144
      $region14: #{preact_basic_block.1} parent=11 // pred_check_branch
        %210 = sbr.rel (%p208) target = $region16
      $region15: #{preact_basic_block.1} parent=11 // pred_region
        _
      $region16: #{preact_basic_block.1} parent=11 // pred_fallthru
        _
      // Predicated region
      $region17: #{preact_basic_block.1} parent=11 // pred_check
        %p211 = pneg %p165
      $region18: #{preact_basic_block.1} parent=11 // pred_check_branch
        %213 = sbr.rel (%p211) target = $region20
      $region19: #{preact_basic_block.1} parent=11 // pred_region
        _
      $region20: #{preact_basic_block.1} parent=11 // pred_fallthru
        _
    $region12: #{preact_basic_block.1} parent=5 // pred_fallthru
      _
    %p214 = scmp.lt.s32.totalorder %s11, 2
    // Predicated region
    $region21: #{preact_basic_block.1} parent=5 // pred_check
      %p215 = pneg %p214
    $region22: #{preact_basic_block.1} parent=5 // pred_check_branch
      %217 = sbr.rel (%p215) target = $region24
    $region23: #{preact_basic_block.1} parent=5 // pred_region
      // Predicated region
      $region25: #{preact_basic_block.1} parent=23 // pred_check
        %p218 = pneg %p53
      $region26: #{preact_basic_block.1} parent=23 // pred_check_branch
        %220 = sbr.rel (%p218) target = $region28
      $region27: #{preact_basic_block.1} parent=23 // pred_region
        %s221 = smul.u32 %s19, 4
        %s222 = ssub.s32 %s221, 1
        %p223 = scmp.gt.s32.totalorder %s222, 0
        %s224 = scalar_select %p223, %s222, 0
        %s225 = smul.u32 2, %s224
        %p226 = scmp.lt.s32.totalorder %s18, 1
        %s227 = scalar_select %p226, %s18, 1
        %p228 = scmp.lt.s32.totalorder %s225, 7
        %s229 = scalar_select %p228, %s225, 7
        %s230 = smul.addr %s229, 2
        %s231 = smul.addr %s227, 16
        %s232 = sadd.s32 %s230, %s231
        %s233 = smul.addr %s232, 8
        %s234 = scalar_lea.vmem %s0, %s233
        %s235 = smul.u32 %s19, 4
        %s236 = ssub.s32 %s235, 1
        %p237 = scmp.gt.s32.totalorder %s236, 0
        %s238 = scalar_select %p237, %s236, 0
        %s239 = smul.u32 2, %s238
      $region28: #{preact_basic_block.1} parent=23 // pred_fallthru
        _
      // Predicated region
      $region29: #{preact_basic_block.1} parent=23 // pred_check
        %p240 = pneg %p81
      $region30: #{preact_basic_block.1} parent=23 // pred_check_branch
        %242 = sbr.rel (%p240) target = $region32
      $region31: #{preact_basic_block.1} parent=23 // pred_region
        %s243 = smul.u32 8, %s19
        %p244 = scmp.lt.s32.totalorder %s18, 1
        %s245 = scalar_select %p244, %s18, 1
        %p246 = scmp.lt.s32.totalorder %s243, 7
        %s247 = scalar_select %p246, %s243, 7
        %s248 = smul.addr %s247, 2
        %s249 = smul.addr %s245, 16
        %s250 = sadd.s32 %s248, %s249
        %s251 = smul.addr %s250, 8
        %s252 = scalar_lea.vmem %s1, %s251
        %s253 = smul.u32 8, %s19
      $region32: #{preact_basic_block.1} parent=23 // pred_fallthru
        _
      // Predicated region
      $region33: #{preact_basic_block.1} parent=23 // pred_check
        %p254 = pneg %p117
      $region34: #{preact_basic_block.1} parent=23 // pred_check_branch
        %256 = sbr.rel (%p254) target = $region36
      $region35: #{preact_basic_block.1} parent=23 // pred_region
        %s257 = smul.u32 %s19, 4
        %s258 = sadd.s32 %s257, 4
        %p259 = scmp.lt.s32.totalorder %s258, 3
        %s260 = scalar_select %p259, %s258, 3
        %s261 = smul.u32 2, %s260
        %p262 = scmp.lt.s32.totalorder %s18, 1
        %s263 = scalar_select %p262, %s18, 1
        %p264 = scmp.lt.s32.totalorder %s261, 7
        %s265 = scalar_select %p264, %s261, 7
        %s266 = smul.addr %s265, 2
        %s267 = smul.addr %s263, 16
        %s268 = sadd.s32 %s266, %s267
        %s269 = smul.addr %s268, 8
        %s270 = scalar_lea.vmem %s2, %s269
        %s271 = smul.u32 %s19, 4
        %s272 = sadd.s32 %s271, 4
        %p273 = scmp.lt.s32.totalorder %s272, 3
        %s274 = scalar_select %p273, %s272, 3
        %s275 = smul.u32 2, %s274
      $region36: #{preact_basic_block.1} parent=23 // pred_fallthru
        _
    $region24: #{preact_basic_block.1} parent=5 // pred_fallthru
      _
    %p276 = scmp.le.s32.totalorder 1, %s11
    %p277 = scmp.lt.s32.totalorder %s11, 3
    %p278 = pnand %p276, %p277
    %p279 = pneg %p278
    // Predicated region
    $region37: #{preact_basic_block.1} parent=5 // pred_check
      _
    $region38: #{preact_basic_block.1} parent=5 // pred_check_branch
      %281 = sbr.rel (%p278) target = $region40
    $region39: #{preact_basic_block.1} parent=5 // pred_region
      %s282 = ssub.s32 %s11, 1
      %s283 = smul.u32 %s21, 4
      %s284 = ssub.s32 %s283, 1
      %p285 = scmp.gt.s32.totalorder %s284, 0
      %s286 = scalar_select %p285, %s284, 0
      %s287 = smul.u32 2, %s286
      %p288 = scmp.lt.s32.totalorder %s20, 1
      %s289 = scalar_select %p288, %s20, 1
      %p290 = scmp.lt.s32.totalorder %s287, 7
      %s291 = scalar_select %p290, %s287, 7
      %s292 = smul.addr %s291, 2
      %s293 = smul.addr %s289, 16
      %s294 = sadd.s32 %s292, %s293
      %s295 = smul.addr %s294, 8
      %s296 = scalar_lea.vmem %s0, %s295
      %p297 = pneg %p59
      %p298 = pneg %p56
      %s299 = smul.u32 8, %s21
      %p300 = scmp.lt.s32.totalorder %s20, 1
      %s301 = scalar_select %p300, %s20, 1
      %p302 = scmp.lt.s32.totalorder %s299, 7
      %s303 = scalar_select %p302, %s299, 7
      %s304 = smul.addr %s303, 2
      %s305 = smul.addr %s301, 16
      %s306 = sadd.s32 %s304, %s305
      %s307 = smul.addr %s306, 8
      %s308 = scalar_lea.vmem %s1, %s307
      %p309 = pneg %p87
      %p310 = pneg %p84
      %s311 = smul.u32 %s21, 4
      %s312 = sadd.s32 %s311, 4
      %p313 = scmp.lt.s32.totalorder %s312, 3
      %s314 = scalar_select %p313, %s312, 3
      %s315 = smul.u32 2, %s314
      %p316 = scmp.lt.s32.totalorder %s20, 1
      %s317 = scalar_select %p316, %s20, 1
      %p318 = scmp.lt.s32.totalorder %s315, 7
      %s319 = scalar_select %p318, %s315, 7
      %s320 = smul.addr %s319, 2
      %s321 = smul.addr %s317, 16
      %s322 = sadd.s32 %s320, %s321
      %s323 = smul.addr %s322, 8
      %s324 = scalar_lea.vmem %s2, %s323
      %p325 = pneg %p123
      %p326 = pneg %p120
      %p327 = pneg %p144
      %p328 = pneg %p141
      %p329 = pneg %p165
      %p330 = pneg %p162
      %p331 = pneg %p193
      %p332 = pneg %p190
      %s333 = smul.u32 8, %s21
      %p334 = scmp.lt.s32.totalorder %s20, 1
      %s335 = scalar_select %p334, %s20, 1
      %p336 = scmp.lt.s32.totalorder %s333, 7
      %s337 = scalar_select %p336, %s333, 7
      %s338 = smul.addr %s335, 8
      %s339 = sadd.s32 %s337, %s338
      %s340 = smul.addr %s339, 8
      %s341 = scalar_lea.vmem %s5, %s340
      %s342 = smul.u32 %s21, 4
      %s343 = ssub.s32 %s342, 1
      %p344 = scmp.gt.s32.totalorder %s343, 0
      %s345 = scalar_select %p344, %s343, 0
      %s346 = smul.u32 2, %s345
      %p347 = scmp.lt.s32.totalorder %s20, 1
      %s348 = scalar_select %p347, %s20, 1
      %p349 = scmp.lt.s32.totalorder %s346, 7
      %s350 = scalar_select %p349, %s346, 7
      %s351 = smul.addr %s350, 2
      %s352 = smul.addr %s348, 16
      %s353 = sadd.s32 %s351, %s352
      %s354 = smul.addr %s353, 8
      %s355 = scalar_lea.vmem %s0, %s354
      %s356 = smul.u32 %s21, 4
      %s357 = ssub.s32 %s356, 1
      %p358 = scmp.gt.s32.totalorder %s357, 0
      %s359 = scalar_select %p358, %s357, 0
      %s360 = smul.u32 2, %s359
      %s361 = smul.u32 8, %s21
      %p362 = scmp.lt.s32.totalorder %s20, 1
      %s363 = scalar_select %p362, %s20, 1
      %p364 = scmp.lt.s32.totalorder %s361, 7
      %s365 = scalar_select %p364, %s361, 7
      %s366 = smul.addr %s365, 2
      %s367 = smul.addr %s363, 16
      %s368 = sadd.s32 %s366, %s367
      %s369 = smul.addr %s368, 8
      %s370 = scalar_lea.vmem %s1, %s369
      %s371 = smul.u32 8, %s21
      %s372 = smul.u32 %s21, 4
      %s373 = sadd.s32 %s372, 4
      %p374 = scmp.lt.s32.totalorder %s373, 3
      %s375 = scalar_select %p374, %s373, 3
      %s376 = smul.u32 2, %s375
      %p377 = scmp.lt.s32.totalorder %s20, 1
      %s378 = scalar_select %p377, %s20, 1
      %p379 = scmp.lt.s32.totalorder %s376, 7
      %s380 = scalar_select %p379, %s376, 7
      %s381 = smul.addr %s380, 2
      %s382 = smul.addr %s378, 16
      %s383 = sadd.s32 %s381, %s382
      %s384 = smul.addr %s383, 8
      %s385 = scalar_lea.vmem %s2, %s384
      %s386 = smul.u32 %s21, 4
      %s387 = sadd.s32 %s386, 4
      %p388 = scmp.lt.s32.totalorder %s387, 3
      %s389 = scalar_select %p388, %s387, 3
      %s390 = smul.u32 2, %s389
      %s391 = smul.u32 8, %s21
      %p392 = scmp.lt.s32.totalorder %s20, 1
      %s393 = scalar_select %p392, %s20, 1
      %p394 = scmp.lt.s32.totalorder %s391, 7
      %s395 = scalar_select %p394, %s391, 7
      %s396 = smul.addr %s393, 8
      %s397 = sadd.s32 %s395, %s396
      %s398 = smul.addr %s397, 8
      %s399 = scalar_lea.vmem %s5, %s398
      %s400 = smul.u32 8, %s21
      %s401 = smul.u32 %s21, 8
      %v402 = vld [vmem:[%s3] sm:$0xf]
      %v403 = vld [vmem:[%s4] sm:$0xff]
      %v404 = vld [vmem:[%s4 + $0x8] sm:$0xff]
      %v405 = vld [vmem:[%s4 + $0x10] sm:$0xff]
      %v406 = vld [vmem:[%s4 + $0x18] sm:$0xff]
      %v407 = vld [vmem:[%s4 + $0x20] sm:$0xff]
      %v408 = vld [vmem:[%s4 + $0x28] sm:$0xff]
      %v409 = vld [vmem:[%s4 + $0x30] sm:$0xff]
      %v410 = vld [vmem:[%s4 + $0x38] sm:$0xff]
      %v411 = vld [vmem:[%s4 + $0x40] sm:$0xff]
      %v412 = vld [vmem:[%s4 + $0x48] sm:$0xff]
      %v413 = vld [vmem:[%s4 + $0x50] sm:$0xff]
      %v414 = vld [vmem:[%s4 + $0x58] sm:$0xff]
      %v415 = vld [vmem:[%s4 + $0x60] sm:$0xff]
      %v416 = vld [vmem:[%s4 + $0x68] sm:$0xff]
      %v417 = vld [vmem:[%s4 + $0x70] sm:$0xff]
      %v418 = vld [vmem:[%s4 + $0x78] sm:$0xff]
      %v419 = vld [vmem:[%s4 + $0x80] sm:$0xff]
      %v420 = vld [vmem:[%s4 + $0x88] sm:$0xff]
      %v421 = vld [vmem:[%s4 + $0x90] sm:$0xff]
      %v422 = vld [vmem:[%s4 + $0x98] sm:$0xff]
      %v423 = vld [vmem:[%s4 + $0xa0] sm:$0xff]
      %v424 = vld [vmem:[%s4 + $0xa8] sm:$0xff]
      %v425 = vld [vmem:[%s4 + $0xb0] sm:$0xff]
      %v426 = vld [vmem:[%s4 + $0xb8] sm:$0xff]
      %v427 = vld [vmem:[%s4 + $0xc0] sm:$0xff]
      %v428 = vld [vmem:[%s4 + $0xc8] sm:$0xff]
      %v429 = vld [vmem:[%s4 + $0xd0] sm:$0xff]
      %v430 = vld [vmem:[%s4 + $0xd8] sm:$0xff]
      %v431 = vld [vmem:[%s4 + $0xe0] sm:$0xff]
      %v432 = vld [vmem:[%s4 + $0xe8] sm:$0xff]
      %v433 = vld [vmem:[%s4 + $0xf0] sm:$0xff]
      %v434 = vld [vmem:[%s4 + $0xf8] sm:$0xff]
      %v435 = vld [vmem:[%s4 + $0x100] sm:$0xff]
      %v436 = vld [vmem:[%s4 + $0x108] sm:$0xff]
      %v437 = vld [vmem:[%s4 + $0x110] sm:$0xff]
      %v438 = vld [vmem:[%s4 + $0x118] sm:$0xff]
      %v439 = vld [vmem:[%s4 + $0x120] sm:$0xff]
      %v440 = vld [vmem:[%s4 + $0x128] sm:$0xff]
      %v441 = vld [vmem:[%s4 + $0x130] sm:$0xff]
      %v442 = vld [vmem:[%s4 + $0x138] sm:$0xff]
      %v443 = vld [vmem:[%s4 + $0x140] sm:$0xff]
      %v444 = vld [vmem:[%s4 + $0x148] sm:$0xff]
      %v445 = vld [vmem:[%s4 + $0x150] sm:$0xff]
      %v446 = vld [vmem:[%s4 + $0x158] sm:$0xff]
      %v447 = vld [vmem:[%s4 + $0x160] sm:$0xff]
      %v448 = vld [vmem:[%s4 + $0x168] sm:$0xff]
      %v449 = vld [vmem:[%s4 + $0x170] sm:$0xff]
      %v450 = vld [vmem:[%s4 + $0x178] sm:$0xff]
      %v451 = vld [vmem:[%s4 + $0x180] sm:$0xff]
      %v452 = vld [vmem:[%s4 + $0x188] sm:$0xff]
      %v453 = vld [vmem:[%s4 + $0x190] sm:$0xff]
      %v454 = vld [vmem:[%s4 + $0x198] sm:$0xff]
      %v455 = vld [vmem:[%s4 + $0x1a0] sm:$0xff]
      %v456 = vld [vmem:[%s4 + $0x1a8] sm:$0xff]
      %v457 = vld [vmem:[%s4 + $0x1b0] sm:$0xff]
      %v458 = vld [vmem:[%s4 + $0x1b8] sm:$0xff]
      %v459 = vld [vmem:[%s4 + $0x1c0] sm:$0xff]
      %v460 = vld [vmem:[%s4 + $0x1c8] sm:$0xff]
      %v461 = vld [vmem:[%s4 + $0x1d0] sm:$0xff]
      %v462 = vld [vmem:[%s4 + $0x1d8] sm:$0xff]
      %v463 = vld [vmem:[%s4 + $0x1e0] sm:$0xff]
      %v464 = vld [vmem:[%s4 + $0x1e8] sm:$0xff]
      %v465 = vld [vmem:[%s4 + $0x1f0] sm:$0xff]
      %v466 = vld [vmem:[%s4 + $0x1f8] sm:$0xff]
      %v467 = vld [vmem:[%s4 + $0x200] sm:$0xff]
      %v468 = vld [vmem:[%s4 + $0x208] sm:$0xff]
      %v469 = vld [vmem:[%s4 + $0x210] sm:$0xff]
      %v470 = vld [vmem:[%s4 + $0x218] sm:$0xff]
      %v471 = vld [vmem:[%s4 + $0x220] sm:$0xff]
      %v472 = vld [vmem:[%s4 + $0x228] sm:$0xff]
      %v473 = vld [vmem:[%s4 + $0x230] sm:$0xff]
      %v474 = vld [vmem:[%s4 + $0x238] sm:$0xff]
      %v475 = vld [vmem:[%s4 + $0x240] sm:$0xff]
      %v476 = vld [vmem:[%s4 + $0x248] sm:$0xff]
      %v477 = vld [vmem:[%s4 + $0x250] sm:$0xff]
      %v478 = vld [vmem:[%s4 + $0x258] sm:$0xff]
      %v479 = vld [vmem:[%s4 + $0x260] sm:$0xff]
      %v480 = vld [vmem:[%s4 + $0x268] sm:$0xff]
      %v481 = vld [vmem:[%s4 + $0x270] sm:$0xff]
      %v482 = vld [vmem:[%s4 + $0x278] sm:$0xff]
      %v483 = vld [vmem:[%s4 + $0x280] sm:$0xff]
      %v484 = vld [vmem:[%s4 + $0x288] sm:$0xff]
      %v485 = vld [vmem:[%s4 + $0x290] sm:$0xff]
      %v486 = vld [vmem:[%s4 + $0x298] sm:$0xff]
      %v487 = vld [vmem:[%s4 + $0x2a0] sm:$0xff]
      %v488 = vld [vmem:[%s4 + $0x2a8] sm:$0xff]
      %v489 = vld [vmem:[%s4 + $0x2b0] sm:$0xff]
      %v490 = vld [vmem:[%s4 + $0x2b8] sm:$0xff]
      %v491 = vld [vmem:[%s4 + $0x2c0] sm:$0xff]
      %v492 = vld [vmem:[%s4 + $0x2c8] sm:$0xff]
      %v493 = vld [vmem:[%s4 + $0x2d0] sm:$0xff]
      %v494 = vld [vmem:[%s4 + $0x2d8] sm:$0xff]
      %v495 = vld [vmem:[%s4 + $0x2e0] sm:$0xff]
      %v496 = vld [vmem:[%s4 + $0x2e8] sm:$0xff]
      %v497 = vld [vmem:[%s4 + $0x2f0] sm:$0xff]
      %v498 = vld [vmem:[%s4 + $0x2f8] sm:$0xff]
      %v499 = vld [vmem:[%s4 + $0x300] sm:$0xff]
      %v500 = vld [vmem:[%s4 + $0x308] sm:$0xff]
      %v501 = vld [vmem:[%s4 + $0x310] sm:$0xff]
      %v502 = vld [vmem:[%s4 + $0x318] sm:$0xff]
      %v503 = vld [vmem:[%s4 + $0x320] sm:$0xff]
      %v504 = vld [vmem:[%s4 + $0x328] sm:$0xff]
      %v505 = vld [vmem:[%s4 + $0x330] sm:$0xff]
      %v506 = vld [vmem:[%s4 + $0x338] sm:$0xff]
      %v507 = vld [vmem:[%s4 + $0x340] sm:$0xff]
      %v508 = vld [vmem:[%s4 + $0x348] sm:$0xff]
      %v509 = vld [vmem:[%s4 + $0x350] sm:$0xff]
      %v510 = vld [vmem:[%s4 + $0x358] sm:$0xff]
      %v511 = vld [vmem:[%s4 + $0x360] sm:$0xff]
      %v512 = vld [vmem:[%s4 + $0x368] sm:$0xff]
      %v513 = vld [vmem:[%s4 + $0x370] sm:$0xff]
      %v514 = vld [vmem:[%s4 + $0x378] sm:$0xff]
      %v515 = vld [vmem:[%s4 + $0x380] sm:$0xff]
      %v516 = vld [vmem:[%s4 + $0x388] sm:$0xff]
      %v517 = vld [vmem:[%s4 + $0x390] sm:$0xff]
      %v518 = vld [vmem:[%s4 + $0x398] sm:$0xff]
      %v519 = vld [vmem:[%s4 + $0x3a0] sm:$0xff]
      %v520 = vld [vmem:[%s4 + $0x3a8] sm:$0xff]
      %v521 = vld [vmem:[%s4 + $0x3b0] sm:$0xff]
      %v522 = vld [vmem:[%s4 + $0x3b8] sm:$0xff]
      %v523 = vld [vmem:[%s4 + $0x3c0] sm:$0xff]
      %v524 = vld [vmem:[%s4 + $0x3c8] sm:$0xff]
      %v525 = vld [vmem:[%s4 + $0x3d0] sm:$0xff]
      %v526 = vld [vmem:[%s4 + $0x3d8] sm:$0xff]
      %v527 = vld [vmem:[%s4 + $0x3e0] sm:$0xff]
      %v528 = vld [vmem:[%s4 + $0x3e8] sm:$0xff]
      %v529 = vld [vmem:[%s4 + $0x3f0] sm:$0xff]
      %v530 = vld [vmem:[%s4 + $0x3f8] sm:$0xff]
      %v531 = vld [vmem:[%s4 + $0x400] sm:$0xff]
      %v532 = vld [vmem:[%s4 + $0x408] sm:$0xff]
      %v533 = vld [vmem:[%s4 + $0x410] sm:$0xff]
      %v534 = vld [vmem:[%s4 + $0x418] sm:$0xff]
      %v535 = vld [vmem:[%s4 + $0x420] sm:$0xff]
      %v536 = vld [vmem:[%s4 + $0x428] sm:$0xff]
      %v537 = vld [vmem:[%s4 + $0x430] sm:$0xff]
      %v538 = vld [vmem:[%s4 + $0x438] sm:$0xff]
      %v539 = vld [vmem:[%s4 + $0x440] sm:$0xff]
      %v540 = vld [vmem:[%s4 + $0x448] sm:$0xff]
      %v541 = vld [vmem:[%s4 + $0x450] sm:$0xff]
      %v542 = vld [vmem:[%s4 + $0x458] sm:$0xff]
      %v543 = vld [vmem:[%s4 + $0x460] sm:$0xff]
      %v544 = vld [vmem:[%s4 + $0x468] sm:$0xff]
      %v545 = vld [vmem:[%s4 + $0x470] sm:$0xff]
      %v546 = vld [vmem:[%s4 + $0x478] sm:$0xff]
      %s547 = scalar_lea.vmem %s4, 1152
      %v548 = vld [vmem:[%s547] sm:$0xff]
      %v549 = vld [vmem:[%s547 + $0x8] sm:$0xff]
      %v550 = vld [vmem:[%s547 + $0x10] sm:$0xff]
      %v551 = vld [vmem:[%s547 + $0x18] sm:$0xff]
      %v552 = vld [vmem:[%s547 + $0x20] sm:$0xff]
      %v553 = vld [vmem:[%s547 + $0x28] sm:$0xff]
      %v554 = vld [vmem:[%s547 + $0x30] sm:$0xff]
      %v555 = vld [vmem:[%s547 + $0x38] sm:$0xff]
      %v556 = vld [vmem:[%s547 + $0x40] sm:$0xff]
      %v557 = vld [vmem:[%s547 + $0x48] sm:$0xff]
      %v558 = vld [vmem:[%s547 + $0x50] sm:$0xff]
      %v559 = vld [vmem:[%s547 + $0x58] sm:$0xff]
      %v560 = vld [vmem:[%s547 + $0x60] sm:$0xff]
      %v561 = vld [vmem:[%s547 + $0x68] sm:$0xff]
      %v562 = vld [vmem:[%s547 + $0x70] sm:$0xff]
      %v563 = vld [vmem:[%s547 + $0x78] sm:$0xff]
      %v564 = vld [vmem:[%s547 + $0x80] sm:$0xff]
      %v565 = vld [vmem:[%s547 + $0x88] sm:$0xff]
      %v566 = vld [vmem:[%s547 + $0x90] sm:$0xff]
      %v567 = vld [vmem:[%s547 + $0x98] sm:$0xff]
      %v568 = vld [vmem:[%s547 + $0xa0] sm:$0xff]
      %v569 = vld [vmem:[%s547 + $0xa8] sm:$0xff]
      %v570 = vld [vmem:[%s547 + $0xb0] sm:$0xff]
      %v571 = vld [vmem:[%s547 + $0xb8] sm:$0xff]
      %v572 = vld [vmem:[%s547 + $0xc0] sm:$0xff]
      %v573 = vld [vmem:[%s547 + $0xc8] sm:$0xff]
      %v574 = vld [vmem:[%s547 + $0xd0] sm:$0xff]
      %v575 = vld [vmem:[%s547 + $0xd8] sm:$0xff]
      %v576 = vld [vmem:[%s547 + $0xe0] sm:$0xff]
      %v577 = vld [vmem:[%s547 + $0xe8] sm:$0xff]
      %v578 = vld [vmem:[%s547 + $0xf0] sm:$0xff]
      %v579 = vld [vmem:[%s547 + $0xf8] sm:$0xff]
      %v580 = vld [vmem:[%s547 + $0x100] sm:$0xff]
      %v581 = vld [vmem:[%s547 + $0x108] sm:$0xff]
      %v582 = vld [vmem:[%s547 + $0x110] sm:$0xff]
      %v583 = vld [vmem:[%s547 + $0x118] sm:$0xff]
      %v584 = vld [vmem:[%s547 + $0x120] sm:$0xff]
      %v585 = vld [vmem:[%s547 + $0x128] sm:$0xff]
      %v586 = vld [vmem:[%s547 + $0x130] sm:$0xff]
      %v587 = vld [vmem:[%s547 + $0x138] sm:$0xff]
      %v588 = vld [vmem:[%s547 + $0x140] sm:$0xff]
      %v589 = vld [vmem:[%s547 + $0x148] sm:$0xff]
      %v590 = vld [vmem:[%s547 + $0x150] sm:$0xff]
      %v591 = vld [vmem:[%s547 + $0x158] sm:$0xff]
      %v592 = vld [vmem:[%s547 + $0x160] sm:$0xff]
      %v593 = vld [vmem:[%s547 + $0x168] sm:$0xff]
      %v594 = vld [vmem:[%s547 + $0x170] sm:$0xff]
      %v595 = vld [vmem:[%s547 + $0x178] sm:$0xff]
      %v596 = vld [vmem:[%s547 + $0x180] sm:$0xff]
      %v597 = vld [vmem:[%s547 + $0x188] sm:$0xff]
      %v598 = vld [vmem:[%s547 + $0x190] sm:$0xff]
      %v599 = vld [vmem:[%s547 + $0x198] sm:$0xff]
      %v600 = vld [vmem:[%s547 + $0x1a0] sm:$0xff]
      %v601 = vld [vmem:[%s547 + $0x1a8] sm:$0xff]
      %v602 = vld [vmem:[%s547 + $0x1b0] sm:$0xff]
      %v603 = vld [vmem:[%s547 + $0x1b8] sm:$0xff]
      %v604 = vld [vmem:[%s547 + $0x1c0] sm:$0xff]
      %v605 = vld [vmem:[%s547 + $0x1c8] sm:$0xff]
      %v606 = vld [vmem:[%s547 + $0x1d0] sm:$0xff]
      %v607 = vld [vmem:[%s547 + $0x1d8] sm:$0xff]
      %v608 = vld [vmem:[%s547 + $0x1e0] sm:$0xff]
      %v609 = vld [vmem:[%s547 + $0x1e8] sm:$0xff]
      %v610 = vld [vmem:[%s547 + $0x1f0] sm:$0xff]
      %v611 = vld [vmem:[%s547 + $0x1f8] sm:$0xff]
      %v612 = vld [vmem:[%s547 + $0x200] sm:$0xff]
      %v613 = vld [vmem:[%s547 + $0x208] sm:$0xff]
      %v614 = vld [vmem:[%s547 + $0x210] sm:$0xff]
      %v615 = vld [vmem:[%s547 + $0x218] sm:$0xff]
      %v616 = vld [vmem:[%s547 + $0x220] sm:$0xff]
      %v617 = vld [vmem:[%s547 + $0x228] sm:$0xff]
      %v618 = vld [vmem:[%s547 + $0x230] sm:$0xff]
      %v619 = vld [vmem:[%s547 + $0x238] sm:$0xff]
      %v620 = vld [vmem:[%s547 + $0x240] sm:$0xff]
      %v621 = vld [vmem:[%s547 + $0x248] sm:$0xff]
      %v622 = vld [vmem:[%s547 + $0x250] sm:$0xff]
      %v623 = vld [vmem:[%s547 + $0x258] sm:$0xff]
      %v624 = vld [vmem:[%s547 + $0x260] sm:$0xff]
      %v625 = vld [vmem:[%s547 + $0x268] sm:$0xff]
      %v626 = vld [vmem:[%s547 + $0x270] sm:$0xff]
      %v627 = vld [vmem:[%s547 + $0x278] sm:$0xff]
      %v628 = vld [vmem:[%s547 + $0x280] sm:$0xff]
      %v629 = vld [vmem:[%s547 + $0x288] sm:$0xff]
      %v630 = vld [vmem:[%s547 + $0x290] sm:$0xff]
      %v631 = vld [vmem:[%s547 + $0x298] sm:$0xff]
      %v632 = vld [vmem:[%s547 + $0x2a0] sm:$0xff]
      %v633 = vld [vmem:[%s547 + $0x2a8] sm:$0xff]
      %v634 = vld [vmem:[%s547 + $0x2b0] sm:$0xff]
      %v635 = vld [vmem:[%s547 + $0x2b8] sm:$0xff]
      %v636 = vld [vmem:[%s547 + $0x2c0] sm:$0xff]
      %v637 = vld [vmem:[%s547 + $0x2c8] sm:$0xff]
      %v638 = vld [vmem:[%s547 + $0x2d0] sm:$0xff]
      %v639 = vld [vmem:[%s547 + $0x2d8] sm:$0xff]
      %v640 = vld [vmem:[%s547 + $0x2e0] sm:$0xff]
      %v641 = vld [vmem:[%s547 + $0x2e8] sm:$0xff]
      %v642 = vld [vmem:[%s547 + $0x2f0] sm:$0xff]
      %v643 = vld [vmem:[%s547 + $0x2f8] sm:$0xff]
      %v644 = vld [vmem:[%s547 + $0x300] sm:$0xff]
      %v645 = vld [vmem:[%s547 + $0x308] sm:$0xff]
      %v646 = vld [vmem:[%s547 + $0x310] sm:$0xff]
      %v647 = vld [vmem:[%s547 + $0x318] sm:$0xff]
      %v648 = vld [vmem:[%s547 + $0x320] sm:$0xff]
      %v649 = vld [vmem:[%s547 + $0x328] sm:$0xff]
      %v650 = vld [vmem:[%s547 + $0x330] sm:$0xff]
      %v651 = vld [vmem:[%s547 + $0x338] sm:$0xff]
      %v652 = vld [vmem:[%s547 + $0x340] sm:$0xff]
      %v653 = vld [vmem:[%s547 + $0x348] sm:$0xff]
      %v654 = vld [vmem:[%s547 + $0x350] sm:$0xff]
      %v655 = vld [vmem:[%s547 + $0x358] sm:$0xff]
      %v656 = vld [vmem:[%s547 + $0x360] sm:$0xff]
      %v657 = vld [vmem:[%s547 + $0x368] sm:$0xff]
      %v658 = vld [vmem:[%s547 + $0x370] sm:$0xff]
      %v659 = vld [vmem:[%s547 + $0x378] sm:$0xff]
      %v660 = vld [vmem:[%s547 + $0x380] sm:$0xff]
      %v661 = vld [vmem:[%s547 + $0x388] sm:$0xff]
      %v662 = vld [vmem:[%s547 + $0x390] sm:$0xff]
      %v663 = vld [vmem:[%s547 + $0x398] sm:$0xff]
      %v664 = vld [vmem:[%s547 + $0x3a0] sm:$0xff]
      %v665 = vld [vmem:[%s547 + $0x3a8] sm:$0xff]
      %v666 = vld [vmem:[%s547 + $0x3b0] sm:$0xff]
      %v667 = vld [vmem:[%s547 + $0x3b8] sm:$0xff]
      %v668 = vld [vmem:[%s547 + $0x3c0] sm:$0xff]
      %v669 = vld [vmem:[%s547 + $0x3c8] sm:$0xff]
      %v670 = vld [vmem:[%s547 + $0x3d0] sm:$0xff]
      %v671 = vld [vmem:[%s547 + $0x3d8] sm:$0xff]
      %v672 = vld [vmem:[%s547 + $0x3e0] sm:$0xff]
      %v673 = vld [vmem:[%s547 + $0x3e8] sm:$0xff]
      %v674 = vld [vmem:[%s547 + $0x3f0] sm:$0xff]
      %v675 = vld [vmem:[%s547 + $0x3f8] sm:$0xff]
      %v676 = vld [vmem:[%s547 + $0x400] sm:$0xff]
      %v677 = vld [vmem:[%s547 + $0x408] sm:$0xff]
      %v678 = vld [vmem:[%s547 + $0x410] sm:$0xff]
      %v679 = vld [vmem:[%s547 + $0x418] sm:$0xff]
      %v680 = vld [vmem:[%s547 + $0x420] sm:$0xff]
      %v681 = vld [vmem:[%s547 + $0x428] sm:$0xff]
      %v682 = vld [vmem:[%s547 + $0x430] sm:$0xff]
      %v683 = vld [vmem:[%s547 + $0x438] sm:$0xff]
      %v684 = vld [vmem:[%s547 + $0x440] sm:$0xff]
      %v685 = vld [vmem:[%s547 + $0x448] sm:$0xff]
      %v686 = vld [vmem:[%s547 + $0x450] sm:$0xff]
      %v687 = vld [vmem:[%s547 + $0x458] sm:$0xff]
      %v688 = vld [vmem:[%s547 + $0x460] sm:$0xff]
      %v689 = vld [vmem:[%s547 + $0x468] sm:$0xff]
      %v690 = vld [vmem:[%s547 + $0x470] sm:$0xff]
      %v691 = vld [vmem:[%s547 + $0x478] sm:$0xff]
      %v692 = vld [vmem:[%s370] sm:$0xff]
      %v693 = vld [vmem:[%s370 + $0x8] sm:$0x3]
      %v694 = vld [vmem:[%s370 + $0x10] sm:$0xff]
      %v695 = vld [vmem:[%s370 + $0x18] sm:$0x3]
      %v696 = vld [vmem:[%s370 + $0x20] sm:$0xff]
      %v697 = vld [vmem:[%s370 + $0x28] sm:$0x3]
      %v698 = vld [vmem:[%s370 + $0x30] sm:$0xff]
      %v699 = vld [vmem:[%s370 + $0x38] sm:$0x3]
      %v700 = vld [vmem:[%s370 + $0x40] sm:$0xff]
      %v701 = vld [vmem:[%s370 + $0x48] sm:$0x3]
      %v702 = vld [vmem:[%s370 + $0x50] sm:$0xff]
      %v703 = vld [vmem:[%s370 + $0x58] sm:$0x3]
      %v704 = vld [vmem:[%s370 + $0x60] sm:$0xff]
      %v705 = vld [vmem:[%s370 + $0x68] sm:$0x3]
      %v706 = vld [vmem:[%s370 + $0x70] sm:$0xff]
      %v707 = vld [vmem:[%s370 + $0x78] sm:$0x3]
      %v708 = vld [vmem:[%s355] sm:$0xff]
      %v709 = vld [vmem:[%s355 + $0x8] sm:$0x3]
      %v710 = vld [vmem:[%s355 + $0x10] sm:$0xff]
      %v711 = vld [vmem:[%s355 + $0x18] sm:$0x3]
      %v712 = vld [vmem:[%s385] sm:$0xff]
      %v713 = vld [vmem:[%s385 + $0x8] sm:$0x3]
      %v714 = vld [vmem:[%s385 + $0x10] sm:$0xff]
      %v715 = vld [vmem:[%s385 + $0x18] sm:$0x3]
      %s716 = ssub.s32 %s401, 2
      %v717 = vstv %s716
      %v718 = vadd.s32 %v717, 1
      %v719 = vadd.s32 %v717, 2
      %v720 = vadd.s32 %v717, 3
      %v721 = vadd.s32 %v717, 4
      %v722 = vadd.s32 %v717, 5
      %v723 = vadd.s32 %v717, 6
      %v724 = vadd.s32 %v717, 7
      %v725 = vadd.s32 %v717, 8
      %v726 = vadd.s32 %v717, 9
      %v727 = vadd.s32 %v717, 10
      %v728 = vadd.s32 %v717, 11
      %vm729 = vcmp.ge.s32.totalorder %v717, 0
      %vm730 = vcmp.ge.s32.totalorder %v718, 0
      %vm731 = vcmp.ge.s32.totalorder %v719, 0
      %vm732 = vcmp.ge.s32.totalorder %v720, 0
      %vm733 = vcmp.ge.s32.totalorder %v721, 0
      %vm734 = vcmp.ge.s32.totalorder %v722, 0
      %vm735 = vcmp.ge.s32.totalorder %v723, 0
      %vm736 = vcmp.ge.s32.totalorder %v724, 0
      %vm737 = vcmp.ge.s32.totalorder %v725, 0
      %vm738 = vcmp.ge.s32.totalorder %v726, 0
      %vm739 = vcmp.ge.s32.totalorder %v727, 0
      %vm740 = vcmp.ge.s32.totalorder %v728, 0
      %vm741 = vcmp.lt.s32.totalorder %v717, 8
      %vm742 = vcmp.lt.s32.totalorder %v718, 8
      %vm743 = vcmp.lt.s32.totalorder %v719, 8
      %vm744 = vcmp.lt.s32.totalorder %v720, 8
      %vm745 = vcmp.lt.s32.totalorder %v721, 8
      %vm746 = vcmp.lt.s32.totalorder %v722, 8
      %vm747 = vcmp.lt.s32.totalorder %v723, 8
      %vm748 = vcmp.lt.s32.totalorder %v724, 8
      %vm749 = vcmp.lt.s32.totalorder %v725, 8
      %vm750 = vcmp.lt.s32.totalorder %v726, 8
      %vm751 = vcmp.lt.s32.totalorder %v727, 8
      %vm752 = vcmp.lt.s32.totalorder %v728, 8
      %vm753 = vmand %vm729, %vm741
      %vm754 = vmand %vm730, %vm742
      %vm755 = vmand %vm731, %vm743
      %vm756 = vmand %vm732, %vm744
      %vm757 = vmand %vm733, %vm745
      %vm758 = vmand %vm734, %vm746
      %vm759 = vmand %vm735, %vm747
      %vm760 = vmand %vm736, %vm748
      %vm761 = vmand %vm737, %vm749
      %vm762 = vmand %vm738, %vm750
      %vm763 = vmand %vm739, %vm751
      %vm764 = vmand %vm740, %vm752
      %v765 = vsel %vm753, 1, 0
      %v766 = vsel %vm754, 1, 0
      %v767 = vsel %vm755, 1, 0
      %v768 = vsel %vm756, 1, 0
      %v769 = vsel %vm757, 1, 0
      %v770 = vsel %vm758, 1, 0
      %v771 = vsel %vm759, 1, 0
      %v772 = vsel %vm760, 1, 0
      %v773 = vsel %vm761, 1, 0
      %v774 = vsel %vm762, 1, 0
      %v775 = vsel %vm763, 1, 0
      %v776 = vsel %vm764, 1, 0
      %v777 = vcvt.s32.f32 %v765
      %v778 = vcvt.s32.f32 %v766
      %v779 = vcvt.s32.f32 %v767
      %v780 = vcvt.s32.f32 %v768
      %v781 = vcvt.s32.f32 %v769
      %v782 = vcvt.s32.f32 %v770
      %v783 = vcvt.s32.f32 %v771
      %v784 = vcvt.s32.f32 %v772
      %v785 = vcvt.s32.f32 %v773
      %v786 = vcvt.s32.f32 %v774
      %v787 = vcvt.s32.f32 %v775
      %v788 = vcvt.s32.f32 %v776
      %v789 = vlaneseq
      %v790 = vshrl.u32 %v789, 7
      %v791 = vadd.s32 %v790, 8
      %vm792 = vcmp.ge.s32.totalorder %v790, 1
      %vm793 = vcmp.ge.s32.totalorder %v791, 1
      %vm794 = vcmp.le.s32.totalorder %v790, 8
      %vm795 = vcmp.le.s32.totalorder %v791, 8
      %vm796 = vmand %vm792, %vm794
      %vm797 = vmand %vm793, %vm795
      %v798 = vsel %vm796, 1, 0
      %v799 = vsel %vm797, 1, 0
      %v800 = vcvt.s32.f32 %v798
      %v801 = vcvt.s32.f32 %v799
      %v802 = vlaneseq
      %v803 = vshrl.u32 %v802, 7
      %v804 = vsub.s32 0, %v803
      %v805 = vrot.slane %v402, %v804
      %v806 = vmul.f32 %v708, %v805
      %v807 = vmul.f32 %v709, %v805
      %v808 = vmul.f32 %v710, %v805
      %v809 = vmul.f32 %v711, %v805
      %v810 = vmul.f32 %v692, %v805
      %v811 = vmul.f32 %v693, %v805
      %v812 = vmul.f32 %v694, %v805
      %v813 = vmul.f32 %v695, %v805
      %v814 = vmul.f32 %v696, %v805
      %v815 = vmul.f32 %v697, %v805
      %v816 = vmul.f32 %v698, %v805
      %v817 = vmul.f32 %v699, %v805
      %v818 = vmul.f32 %v700, %v805
      %v819 = vmul.f32 %v701, %v805
      %v820 = vmul.f32 %v702, %v805
      %v821 = vmul.f32 %v703, %v805
      %v822 = vmul.f32 %v704, %v805
      %v823 = vmul.f32 %v705, %v805
      %v824 = vmul.f32 %v706, %v805
      %v825 = vmul.f32 %v707, %v805
      %v826 = vmul.f32 %v712, %v805
      %v827 = vmul.f32 %v713, %v805
      %v828 = vmul.f32 %v714, %v805
      %v829 = vmul.f32 %v715, %v805
      %v830 = vlaneseq
      %v831 = vshrl.u32 %v830, 7
      %v832 = vsub.s32 1, %v831
      %v833 = vrot.slane %v402, %v832
      %v834 = vadd.f32 %v806, %v833
      %v835 = vadd.f32 %v807, %v833
      %v836 = vadd.f32 %v808, %v833
      %v837 = vadd.f32 %v809, %v833
      %v838 = vadd.f32 %v810, %v833
      %v839 = vadd.f32 %v811, %v833
      %v840 = vadd.f32 %v812, %v833
      %v841 = vadd.f32 %v813, %v833
      %v842 = vadd.f32 %v814, %v833
      %v843 = vadd.f32 %v815, %v833
      %v844 = vadd.f32 %v816, %v833
      %v845 = vadd.f32 %v817, %v833
      %v846 = vadd.f32 %v818, %v833
      %v847 = vadd.f32 %v819, %v833
      %v848 = vadd.f32 %v820, %v833
      %v849 = vadd.f32 %v821, %v833
      %v850 = vadd.f32 %v822, %v833
      %v851 = vadd.f32 %v823, %v833
      %v852 = vadd.f32 %v824, %v833
      %v853 = vadd.f32 %v825, %v833
      %v854 = vadd.f32 %v826, %v833
      %v855 = vadd.f32 %v827, %v833
      %v856 = vadd.f32 %v828, %v833
      %v857 = vadd.f32 %v829, %v833
      %v858 = vmax.f32 %v834, 0.0
      %v859 = vmax.f32 %v835, 0.0
      %v860 = vmax.f32 %v836, 0.0
      %v861 = vmax.f32 %v837, 0.0
      %v862 = vmax.f32 %v838, 0.0
      %v863 = vmax.f32 %v839, 0.0
      %v864 = vmax.f32 %v840, 0.0
      %v865 = vmax.f32 %v841, 0.0
      %v866 = vmax.f32 %v842, 0.0
      %v867 = vmax.f32 %v843, 0.0
      %v868 = vmax.f32 %v844, 0.0
      %v869 = vmax.f32 %v845, 0.0
      %v870 = vmax.f32 %v846, 0.0
      %v871 = vmax.f32 %v847, 0.0
      %v872 = vmax.f32 %v848, 0.0
      %v873 = vmax.f32 %v849, 0.0
      %v874 = vmax.f32 %v850, 0.0
      %v875 = vmax.f32 %v851, 0.0
      %v876 = vmax.f32 %v852, 0.0
      %v877 = vmax.f32 %v853, 0.0
      %v878 = vmax.f32 %v854, 0.0
      %v879 = vmax.f32 %v855, 0.0
      %v880 = vmax.f32 %v856, 0.0
      %v881 = vmax.f32 %v857, 0.0
      %v882 = vmul.f32 %v777, %v800
      %v883 = vmul.f32 %v777, %v801
      %v884 = vmul.f32 %v778, %v800
      %v885 = vmul.f32 %v778, %v801
      %v886 = vmul.f32 %v779, %v800
      %v887 = vmul.f32 %v779, %v801
      %v888 = vmul.f32 %v780, %v800
      %v889 = vmul.f32 %v780, %v801
      %v890 = vmul.f32 %v781, %v800
      %v891 = vmul.f32 %v781, %v801
      %v892 = vmul.f32 %v782, %v800
      %v893 = vmul.f32 %v782, %v801
      %v894 = vmul.f32 %v783, %v800
      %v895 = vmul.f32 %v783, %v801
      %v896 = vmul.f32 %v784, %v800
      %v897 = vmul.f32 %v784, %v801
      %v898 = vmul.f32 %v785, %v800
      %v899 = vmul.f32 %v785, %v801
      %v900 = vmul.f32 %v786, %v800
      %v901 = vmul.f32 %v786, %v801
      %v902 = vmul.f32 %v787, %v800
      %v903 = vmul.f32 %v787, %v801
      %v904 = vmul.f32 %v788, %v800
      %v905 = vmul.f32 %v788, %v801
      %v906 = vmul.f32 %v858, %v882
      %v907 = vmul.f32 %v859, %v883
      %v908 = vmul.f32 %v860, %v884
      %v909 = vmul.f32 %v861, %v885
      %v910 = vmul.f32 %v862, %v886
      %v911 = vmul.f32 %v863, %v887
      %v912 = vmul.f32 %v864, %v888
      %v913 = vmul.f32 %v865, %v889
      %v914 = vmul.f32 %v866, %v890
      %v915 = vmul.f32 %v867, %v891
      %v916 = vmul.f32 %v868, %v892
      %v917 = vmul.f32 %v869, %v893
      %v918 = vmul.f32 %v870, %v894
      %v919 = vmul.f32 %v871, %v895
      %v920 = vmul.f32 %v872, %v896
      %v921 = vmul.f32 %v873, %v897
      %v922 = vmul.f32 %v874, %v898
      %v923 = vmul.f32 %v875, %v899
      %v924 = vmul.f32 %v876, %v900
      %v925 = vmul.f32 %v877, %v901
      %v926 = vmul.f32 %v878, %v902
      %v927 = vmul.f32 %v879, %v903
      %v928 = vmul.f32 %v880, %v904
      %v929 = vmul.f32 %v881, %v905
      %vm932 = vcmask 1046528
      %v933 = vrot.slane %v906, 1
      %v934 = vrot.slane %v907, 1
      %v935 = vsel %vm932, %v933, %v934
      %v939 = vrot.slane %v908, 1
      %v940 = vrot.slane %v909, 1
      %v941 = vsel %vm932, %v939, %v940
      %v945 = vrot.slane %v910, 1
      %v946 = vrot.slane %v911, 1
      %v947 = vsel %vm932, %v945, %v946
      %v951 = vrot.slane %v912, 1
      %v952 = vrot.slane %v913, 1
      %v953 = vsel %vm932, %v951, %v952
      %v957 = vrot.slane %v914, 1
      %v958 = vrot.slane %v915, 1
      %v959 = vsel %vm932, %v957, %v958
      %v963 = vrot.slane %v916, 1
      %v964 = vrot.slane %v917, 1
      %v965 = vsel %vm932, %v963, %v964
      %v969 = vrot.slane %v918, 1
      %v970 = vrot.slane %v919, 1
      %v971 = vsel %vm932, %v969, %v970
      %v975 = vrot.slane %v920, 1
      %v976 = vrot.slane %v921, 1
      %v977 = vsel %vm932, %v975, %v976
      %v981 = vrot.slane %v922, 1
      %v982 = vrot.slane %v923, 1
      %v983 = vsel %vm932, %v981, %v982
      %v987 = vrot.slane %v924, 1
      %v988 = vrot.slane %v925, 1
      %v989 = vsel %vm932, %v987, %v988
      %vm991 = vcmask 1045504
      %v992 = vrot.slane %v906, 2
      %v993 = vrot.slane %v907, 2
      %v994 = vsel %vm991, %v992, %v993
      %v996 = vrot.slane %v908, 2
      %v997 = vrot.slane %v909, 2
      %v998 = vsel %vm991, %v996, %v997
      %v1000 = vrot.slane %v910, 2
      %v1001 = vrot.slane %v911, 2
      %v1002 = vsel %vm991, %v1000, %v1001
      %v1004 = vrot.slane %v912, 2
      %v1005 = vrot.slane %v913, 2
      %v1006 = vsel %vm991, %v1004, %v1005
      %v1008 = vrot.slane %v914, 2
      %v1009 = vrot.slane %v915, 2
      %v1010 = vsel %vm991, %v1008, %v1009
      %v1012 = vrot.slane %v916, 2
      %v1013 = vrot.slane %v917, 2
      %v1014 = vsel %vm991, %v1012, %v1013
      %v1016 = vrot.slane %v918, 2
      %v1017 = vrot.slane %v919, 2
      %v1018 = vsel %vm991, %v1016, %v1017
      %v1020 = vrot.slane %v920, 2
      %v1021 = vrot.slane %v921, 2
      %v1022 = vsel %vm991, %v1020, %v1021
      %v1024 = vrot.slane %v922, 2
      %v1025 = vrot.slane %v923, 2
      %v1026 = vsel %vm991, %v1024, %v1025
      %v1028 = vrot.slane %v924, 2
      %v1029 = vrot.slane %v925, 2
      %v1030 = vsel %vm991, %v1028, %v1029
      %v1034 = vrot.slane %v926, 1
      %v1035 = vrot.slane %v927, 1
      %v1036 = vsel %vm932, %v1034, %v1035
      %v1038 = vrot.slane %v926, 2
      %v1039 = vrot.slane %v927, 2
      %v1040 = vsel %vm991, %v1038, %v1039
      %v1044 = vrot.slane %v928, 1
      %v1045 = vrot.slane %v929, 1
      %v1046 = vsel %vm932, %v1044, %v1045
      %v1048 = vrot.slane %v928, 2
      %v1049 = vrot.slane %v929, 2
      %v1050 = vsel %vm991, %v1048, %v1049
      %1052 = vmatprep.subr.mxu0 0.0
      %1053 = vmatpush1.msra.mxu0 %v418
      %1054 = vmatprep.subr.mxu0 0.0
      %1055 = vmatpush1.msra.mxu0 %v417
      %1056 = vmatprep.subr.mxu0 0.0
      %1057 = vmatpush1.msra.mxu0 %v416
      %1058 = vmatprep.subr.mxu0 0.0
      %1059 = vmatpush1.msra.mxu0 %v415
      %1060 = vmatprep.subr.mxu0 0.0
      %1061 = vmatpush1.msra.mxu0 %v414
      %1062 = vmatprep.subr.mxu0 0.0
      %1063 = vmatpush1.msra.mxu0 %v413
      %1064 = vmatprep.subr.mxu0 0.0
      %1065 = vmatpush1.msra.mxu0 %v412
      %1066 = vmatprep.subr.mxu0 0.0
      %1067 = vmatpush1.msra.mxu0 %v411
      %1068 = vmatprep.subr.mxu0 0.0
      %1069 = vmatpush1.msra.mxu0 %v410
      %1070 = vmatprep.subr.mxu0 0.0
      %1071 = vmatpush1.msra.mxu0 %v409
      %1072 = vmatprep.subr.mxu0 0.0
      %1073 = vmatpush1.msra.mxu0 %v408
      %1074 = vmatprep.subr.mxu0 0.0
      %1075 = vmatpush1.msra.mxu0 %v407
      %1076 = vmatprep.subr.mxu0 0.0
      %1077 = vmatpush1.msra.mxu0 %v406
      %1078 = vmatprep.subr.mxu0 0.0
      %1079 = vmatpush1.msra.mxu0 %v405
      %1080 = vmatprep.subr.mxu0 0.0
      %1081 = vmatpush1.msra.mxu0 %v404
      %1082 = vmatprep.subr.mxu0 0.0
      %1083 = vmatpush1.msra.mxu0 %v403
      %1084 = vmatprep.subr.mxu0 0.0
      %1085 = vmatpush2.msra.mxu0 %v434
      %1086 = vmatprep.subr.mxu0 0.0
      %1087 = vmatpush2.msra.mxu0 %v433
      %1088 = vmatprep.subr.mxu0 0.0
      %1089 = vmatpush2.msra.mxu0 %v432
      %1090 = vmatprep.subr.mxu0 0.0
      %1091 = vmatpush2.msra.mxu0 %v431
      %1092 = vmatprep.subr.mxu0 0.0
      %1093 = vmatpush2.msra.mxu0 %v430
      %1094 = vmatprep.subr.mxu0 0.0
      %1095 = vmatpush2.msra.mxu0 %v429
      %1096 = vmatprep.subr.mxu0 0.0
      %1097 = vmatpush2.msra.mxu0 %v428
      %1098 = vmatprep.subr.mxu0 0.0
      %1099 = vmatpush2.msra.mxu0 %v427
      %1100 = vmatprep.subr.mxu0 0.0
      %1101 = vmatpush2.msra.mxu0 %v426
      %1102 = vmatprep.subr.mxu0 0.0
      %1103 = vmatpush2.msra.mxu0 %v425
      %1104 = vmatprep.subr.mxu0 0.0
      %1105 = vmatpush2.msra.mxu0 %v424
      %1106 = vmatprep.subr.mxu0 0.0
      %1107 = vmatpush2.msra.mxu0 %v423
      %1108 = vmatprep.subr.mxu0 0.0
      %1109 = vmatpush2.msra.mxu0 %v422
      %1110 = vmatprep.subr.mxu0 0.0
      %1111 = vmatpush2.msra.mxu0 %v421
      %1112 = vmatprep.subr.mxu0 0.0
      %1113 = vmatpush2.msra.mxu0 %v420
      %1114 = vmatprep.subr.mxu0 0.0
      %1115 = vmatpush2.msra.mxu0 %v419
      %1116 = vmatprep.mubr.f32.mxu0 %v935
      %1117 = vmatmul.mubr.f32.gmra.mxu0 %v906
      %v1118 = vpop.f32.mrf.mxu0
      %v1119 = vadd.f32 0.0, %v1118
      %v1120 = vpop.f32.mrf.mxu0
      %1121 = vmatprep.mubr.f32.mxu0 %v941
      %1122 = vmatmul.mubr.f32.gmra.mxu0 %v908
      %v1123 = vpop.f32.mrf.mxu0
      %v1124 = vadd.f32 0.0, %v1123
      %v1125 = vpop.f32.mrf.mxu0
      %1126 = vmatprep.mubr.f32.mxu0 %v947
      %1127 = vmatmul.mubr.f32.gmra.mxu0 %v910
      %v1128 = vpop.f32.mrf.mxu0
      %v1129 = vadd.f32 0.0, %v1128
      %v1130 = vpop.f32.mrf.mxu0
      %1131 = vmatprep.mubr.f32.mxu0 %v953
      %1132 = vmatmul.mubr.f32.gmra.mxu0 %v912
      %v1133 = vpop.f32.mrf.mxu0
      %v1134 = vadd.f32 0.0, %v1133
      %v1135 = vpop.f32.mrf.mxu0
      %1136 = vmatprep.mubr.f32.mxu0 %v959
      %1137 = vmatmul.mubr.f32.gmra.mxu0 %v914
      %v1138 = vpop.f32.mrf.mxu0
      %v1139 = vadd.f32 0.0, %v1138
      %v1140 = vpop.f32.mrf.mxu0
      %1141 = vmatprep.mubr.f32.mxu0 %v965
      %1142 = vmatmul.mubr.f32.gmra.mxu0 %v916
      %v1143 = vpop.f32.mrf.mxu0
      %v1144 = vadd.f32 0.0, %v1143
      %v1145 = vpop.f32.mrf.mxu0
      %1146 = vmatprep.mubr.f32.mxu0 %v971
      %1147 = vmatmul.mubr.f32.gmra.mxu0 %v918
      %v1148 = vpop.f32.mrf.mxu0
      %v1149 = vadd.f32 0.0, %v1148
      %v1150 = vpop.f32.mrf.mxu0
      %1151 = vmatprep.mubr.f32.mxu0 %v977
      %1152 = vmatmul.mubr.f32.gmra.mxu0 %v920
      %v1153 = vpop.f32.mrf.mxu0
      %v1154 = vadd.f32 0.0, %v1153
      %v1155 = vpop.f32.mrf.mxu0
      %1156 = vmatprep.mubr.f32.mxu0 %v983
      %1157 = vmatmul.mubr.f32.gmra.mxu0 %v922
      %v1158 = vpop.f32.mrf.mxu0
      %v1159 = vadd.f32 0.0, %v1158
      %v1160 = vpop.f32.mrf.mxu0
      %1161 = vmatprep.mubr.f32.mxu0 %v989
      %1162 = vmatmul.mubr.f32.gmra.mxu0 %v924
      %v1163 = vpop.f32.mrf.mxu0
      %v1164 = vadd.f32 0.0, %v1163
      %v1165 = vpop.f32.mrf.mxu0
      %1166 = vdwg.mxu0
      %1167 = vmatprep.subr.mxu0 0.0
      %1168 = vmatpush1.msra.mxu0 %v450
      %1169 = vmatprep.subr.mxu0 0.0
      %1170 = vmatpush1.msra.mxu0 %v449
      %1171 = vmatprep.subr.mxu0 0.0
      %1172 = vmatpush1.msra.mxu0 %v448
      %1173 = vmatprep.subr.mxu0 0.0
      %1174 = vmatpush1.msra.mxu0 %v447
      %1175 = vmatprep.subr.mxu0 0.0
      %1176 = vmatpush1.msra.mxu0 %v446
      %1177 = vmatprep.subr.mxu0 0.0
      %1178 = vmatpush1.msra.mxu0 %v445
      %1179 = vmatprep.subr.mxu0 0.0
      %1180 = vmatpush1.msra.mxu0 %v444
      %1181 = vmatprep.subr.mxu0 0.0
      %1182 = vmatpush1.msra.mxu0 %v443
      %1183 = vmatprep.subr.mxu0 0.0
      %1184 = vmatpush1.msra.mxu0 %v442
      %1185 = vmatprep.subr.mxu0 0.0
      %1186 = vmatpush1.msra.mxu0 %v441
      %1187 = vmatprep.subr.mxu0 0.0
      %1188 = vmatpush1.msra.mxu0 %v440
      %1189 = vmatprep.subr.mxu0 0.0
      %1190 = vmatpush1.msra.mxu0 %v439
      %1191 = vmatprep.subr.mxu0 0.0
      %1192 = vmatpush1.msra.mxu0 %v438
      %1193 = vmatprep.subr.mxu0 0.0
      %1194 = vmatpush1.msra.mxu0 %v437
      %1195 = vmatprep.subr.mxu0 0.0
      %1196 = vmatpush1.msra.mxu0 %v436
      %1197 = vmatprep.subr.mxu0 0.0
      %1198 = vmatpush1.msra.mxu0 %v435
      %1199 = vmatprep.subr.mxu0 0.0
      %1200 = vmatpush2.msra.mxu0 %v466
      %1201 = vmatprep.subr.mxu0 0.0
      %1202 = vmatpush2.msra.mxu0 %v465
      %1203 = vmatprep.subr.mxu0 0.0
      %1204 = vmatpush2.msra.mxu0 %v464
      %1205 = vmatprep.subr.mxu0 0.0
      %1206 = vmatpush2.msra.mxu0 %v463
      %1207 = vmatprep.subr.mxu0 0.0
      %1208 = vmatpush2.msra.mxu0 %v462
      %1209 = vmatprep.subr.mxu0 0.0
      %1210 = vmatpush2.msra.mxu0 %v461
      %1211 = vmatprep.subr.mxu0 0.0
      %1212 = vmatpush2.msra.mxu0 %v460
      %1213 = vmatprep.subr.mxu0 0.0
      %1214 = vmatpush2.msra.mxu0 %v459
      %1215 = vmatprep.subr.mxu0 0.0
      %1216 = vmatpush2.msra.mxu0 %v458
      %1217 = vmatprep.subr.mxu0 0.0
      %1218 = vmatpush2.msra.mxu0 %v457
      %1219 = vmatprep.subr.mxu0 0.0
      %1220 = vmatpush2.msra.mxu0 %v456
      %1221 = vmatprep.subr.mxu0 0.0
      %1222 = vmatpush2.msra.mxu0 %v455
      %1223 = vmatprep.subr.mxu0 0.0
      %1224 = vmatpush2.msra.mxu0 %v454
      %1225 = vmatprep.subr.mxu0 0.0
      %1226 = vmatpush2.msra.mxu0 %v453
      %1227 = vmatprep.subr.mxu0 0.0
      %1228 = vmatpush2.msra.mxu0 %v452
      %1229 = vmatprep.subr.mxu0 0.0
      %1230 = vmatpush2.msra.mxu0 %v451
      %1231 = vmatprep.mubr.f32.mxu0 %v908
      %1232 = vmatmul.mubr.f32.gmra.mxu0 %v994
      %v1233 = vpop.f32.mrf.mxu0
      %v1234 = vadd.f32 %v1119, %v1233
      %v1235 = vpop.f32.mrf.mxu0
      %1236 = vmatprep.mubr.f32.mxu0 %v910
      %1237 = vmatmul.mubr.f32.gmra.mxu0 %v998
      %v1238 = vpop.f32.mrf.mxu0
      %v1239 = vadd.f32 %v1124, %v1238
      %v1240 = vpop.f32.mrf.mxu0
      %1241 = vmatprep.mubr.f32.mxu0 %v912
      %1242 = vmatmul.mubr.f32.gmra.mxu0 %v1002
      %v1243 = vpop.f32.mrf.mxu0
      %v1244 = vadd.f32 %v1129, %v1243
      %v1245 = vpop.f32.mrf.mxu0
      %1246 = vmatprep.mubr.f32.mxu0 %v914
      %1247 = vmatmul.mubr.f32.gmra.mxu0 %v1006
      %v1248 = vpop.f32.mrf.mxu0
      %v1249 = vadd.f32 %v1134, %v1248
      %v1250 = vpop.f32.mrf.mxu0
      %1251 = vmatprep.mubr.f32.mxu0 %v916
      %1252 = vmatmul.mubr.f32.gmra.mxu0 %v1010
      %v1253 = vpop.f32.mrf.mxu0
      %v1254 = vadd.f32 %v1139, %v1253
      %v1255 = vpop.f32.mrf.mxu0
      %1256 = vmatprep.mubr.f32.mxu0 %v918
      %1257 = vmatmul.mubr.f32.gmra.mxu0 %v1014
      %v1258 = vpop.f32.mrf.mxu0
      %v1259 = vadd.f32 %v1144, %v1258
      %v1260 = vpop.f32.mrf.mxu0
      %1261 = vmatprep.mubr.f32.mxu0 %v920
      %1262 = vmatmul.mubr.f32.gmra.mxu0 %v1018
      %v1263 = vpop.f32.mrf.mxu0
      %v1264 = vadd.f32 %v1149, %v1263
      %v1265 = vpop.f32.mrf.mxu0
      %1266 = vmatprep.mubr.f32.mxu0 %v922
      %1267 = vmatmul.mubr.f32.gmra.mxu0 %v1022
      %v1268 = vpop.f32.mrf.mxu0
      %v1269 = vadd.f32 %v1154, %v1268
      %v1270 = vpop.f32.mrf.mxu0
      %1271 = vmatprep.mubr.f32.mxu0 %v924
      %1272 = vmatmul.mubr.f32.gmra.mxu0 %v1026
      %v1273 = vpop.f32.mrf.mxu0
      %v1274 = vadd.f32 %v1159, %v1273
      %v1275 = vpop.f32.mrf.mxu0
      %1276 = vmatprep.mubr.f32.mxu0 %v926
      %1277 = vmatmul.mubr.f32.gmra.mxu0 %v1030
      %v1278 = vpop.f32.mrf.mxu0
      %v1279 = vadd.f32 %v1164, %v1278
      %v1280 = vpop.f32.mrf.mxu0
      %1281 = vdwg.mxu0
      %1282 = vmatprep.subr.mxu0 0.0
      %1283 = vmatpush1.msra.mxu0 %v482
      %1284 = vmatprep.subr.mxu0 0.0
      %1285 = vmatpush1.msra.mxu0 %v481
      %1286 = vmatprep.subr.mxu0 0.0
      %1287 = vmatpush1.msra.mxu0 %v480
      %1288 = vmatprep.subr.mxu0 0.0
      %1289 = vmatpush1.msra.mxu0 %v479
      %1290 = vmatprep.subr.mxu0 0.0
      %1291 = vmatpush1.msra.mxu0 %v478
      %1292 = vmatprep.subr.mxu0 0.0
      %1293 = vmatpush1.msra.mxu0 %v477
      %1294 = vmatprep.subr.mxu0 0.0
      %1295 = vmatpush1.msra.mxu0 %v476
      %1296 = vmatprep.subr.mxu0 0.0
      %1297 = vmatpush1.msra.mxu0 %v475
      %1298 = vmatprep.subr.mxu0 0.0
      %1299 = vmatpush1.msra.mxu0 %v474
      %1300 = vmatprep.subr.mxu0 0.0
      %1301 = vmatpush1.msra.mxu0 %v473
      %1302 = vmatprep.subr.mxu0 0.0
      %1303 = vmatpush1.msra.mxu0 %v472
      %1304 = vmatprep.subr.mxu0 0.0
      %1305 = vmatpush1.msra.mxu0 %v471
      %1306 = vmatprep.subr.mxu0 0.0
      %1307 = vmatpush1.msra.mxu0 %v470
      %1308 = vmatprep.subr.mxu0 0.0
      %1309 = vmatpush1.msra.mxu0 %v469
      %1310 = vmatprep.subr.mxu0 0.0
      %1311 = vmatpush1.msra.mxu0 %v468
      %1312 = vmatprep.subr.mxu0 0.0
      %1313 = vmatpush1.msra.mxu0 %v467
      %1314 = vmatprep.subr.mxu0 0.0
      %1315 = vmatpush2.msra.mxu0 %v498
      %1316 = vmatprep.subr.mxu0 0.0
      %1317 = vmatpush2.msra.mxu0 %v497
      %1318 = vmatprep.subr.mxu0 0.0
      %1319 = vmatpush2.msra.mxu0 %v496
      %1320 = vmatprep.subr.mxu0 0.0
      %1321 = vmatpush2.msra.mxu0 %v495
      %1322 = vmatprep.subr.mxu0 0.0
      %1323 = vmatpush2.msra.mxu0 %v494
      %1324 = vmatprep.subr.mxu0 0.0
      %1325 = vmatpush2.msra.mxu0 %v493
      %1326 = vmatprep.subr.mxu0 0.0
      %1327 = vmatpush2.msra.mxu0 %v492
      %1328 = vmatprep.subr.mxu0 0.0
      %1329 = vmatpush2.msra.mxu0 %v491
      %1330 = vmatprep.subr.mxu0 0.0
      %1331 = vmatpush2.msra.mxu0 %v490
      %1332 = vmatprep.subr.mxu0 0.0
      %1333 = vmatpush2.msra.mxu0 %v489
      %1334 = vmatprep.subr.mxu0 0.0
      %1335 = vmatpush2.msra.mxu0 %v488
      %1336 = vmatprep.subr.mxu0 0.0
      %1337 = vmatpush2.msra.mxu0 %v487
      %1338 = vmatprep.subr.mxu0 0.0
      %1339 = vmatpush2.msra.mxu0 %v486
      %1340 = vmatprep.subr.mxu0 0.0
      %1341 = vmatpush2.msra.mxu0 %v485
      %1342 = vmatprep.subr.mxu0 0.0
      %1343 = vmatpush2.msra.mxu0 %v484
      %1344 = vmatprep.subr.mxu0 0.0
      %1345 = vmatpush2.msra.mxu0 %v483
      %1346 = vmatprep.mubr.f32.mxu0 %v998
      %1347 = vmatmul.mubr.f32.gmra.mxu0 %v941
      %v1348 = vpop.f32.mrf.mxu0
      %v1349 = vadd.f32 %v1234, %v1348
      %v1350 = vpop.f32.mrf.mxu0
      %1351 = vmatprep.mubr.f32.mxu0 %v1002
      %1352 = vmatmul.mubr.f32.gmra.mxu0 %v947
      %v1353 = vpop.f32.mrf.mxu0
      %v1354 = vadd.f32 %v1239, %v1353
      %v1355 = vpop.f32.mrf.mxu0
      %1356 = vmatprep.mubr.f32.mxu0 %v1006
      %1357 = vmatmul.mubr.f32.gmra.mxu0 %v953
      %v1358 = vpop.f32.mrf.mxu0
      %v1359 = vadd.f32 %v1244, %v1358
      %v1360 = vpop.f32.mrf.mxu0
      %1361 = vmatprep.mubr.f32.mxu0 %v1010
      %1362 = vmatmul.mubr.f32.gmra.mxu0 %v959
      %v1363 = vpop.f32.mrf.mxu0
      %v1364 = vadd.f32 %v1249, %v1363
      %v1365 = vpop.f32.mrf.mxu0
      %1366 = vmatprep.mubr.f32.mxu0 %v1014
      %1367 = vmatmul.mubr.f32.gmra.mxu0 %v965
      %v1368 = vpop.f32.mrf.mxu0
      %v1369 = vadd.f32 %v1254, %v1368
      %v1370 = vpop.f32.mrf.mxu0
      %1371 = vmatprep.mubr.f32.mxu0 %v1018
      %1372 = vmatmul.mubr.f32.gmra.mxu0 %v971
      %v1373 = vpop.f32.mrf.mxu0
      %v1374 = vadd.f32 %v1259, %v1373
      %v1375 = vpop.f32.mrf.mxu0
      %1376 = vmatprep.mubr.f32.mxu0 %v1022
      %1377 = vmatmul.mubr.f32.gmra.mxu0 %v977
      %v1378 = vpop.f32.mrf.mxu0
      %v1379 = vadd.f32 %v1264, %v1378
      %v1380 = vpop.f32.mrf.mxu0
      %1381 = vmatprep.mubr.f32.mxu0 %v1026
      %1382 = vmatmul.mubr.f32.gmra.mxu0 %v983
      %v1383 = vpop.f32.mrf.mxu0
      %v1384 = vadd.f32 %v1269, %v1383
      %v1385 = vpop.f32.mrf.mxu0
      %1386 = vmatprep.mubr.f32.mxu0 %v1030
      %1387 = vmatmul.mubr.f32.gmra.mxu0 %v989
      %v1388 = vpop.f32.mrf.mxu0
      %v1389 = vadd.f32 %v1274, %v1388
      %v1390 = vpop.f32.mrf.mxu0
      %1391 = vmatprep.mubr.f32.mxu0 %v1040
      %1392 = vmatmul.mubr.f32.gmra.mxu0 %v1036
      %v1393 = vpop.f32.mrf.mxu0
      %v1394 = vadd.f32 %v1279, %v1393
      %v1395 = vpop.f32.mrf.mxu0
      %1396 = vdwg.mxu0
      %1397 = vmatprep.subr.mxu0 0.0
      %1398 = vmatpush1.msra.mxu0 %v514
      %1399 = vmatprep.subr.mxu0 0.0
      %1400 = vmatpush1.msra.mxu0 %v513
      %1401 = vmatprep.subr.mxu0 0.0
      %1402 = vmatpush1.msra.mxu0 %v512
      %1403 = vmatprep.subr.mxu0 0.0
      %1404 = vmatpush1.msra.mxu0 %v511
      %1405 = vmatprep.subr.mxu0 0.0
      %1406 = vmatpush1.msra.mxu0 %v510
      %1407 = vmatprep.subr.mxu0 0.0
      %1408 = vmatpush1.msra.mxu0 %v509
      %1409 = vmatprep.subr.mxu0 0.0
      %1410 = vmatpush1.msra.mxu0 %v508
      %1411 = vmatprep.subr.mxu0 0.0
      %1412 = vmatpush1.msra.mxu0 %v507
      %1413 = vmatprep.subr.mxu0 0.0
      %1414 = vmatpush1.msra.mxu0 %v506
      %1415 = vmatprep.subr.mxu0 0.0
      %1416 = vmatpush1.msra.mxu0 %v505
      %1417 = vmatprep.subr.mxu0 0.0
      %1418 = vmatpush1.msra.mxu0 %v504
      %1419 = vmatprep.subr.mxu0 0.0
      %1420 = vmatpush1.msra.mxu0 %v503
      %1421 = vmatprep.subr.mxu0 0.0
      %1422 = vmatpush1.msra.mxu0 %v502
      %1423 = vmatprep.subr.mxu0 0.0
      %1424 = vmatpush1.msra.mxu0 %v501
      %1425 = vmatprep.subr.mxu0 0.0
      %1426 = vmatpush1.msra.mxu0 %v500
      %1427 = vmatprep.subr.mxu0 0.0
      %1428 = vmatpush1.msra.mxu0 %v499
      %1429 = vmatprep.subr.mxu0 0.0
      %1430 = vmatpush2.msra.mxu0 %v530
      %1431 = vmatprep.subr.mxu0 0.0
      %1432 = vmatpush2.msra.mxu0 %v529
      %1433 = vmatprep.subr.mxu0 0.0
      %1434 = vmatpush2.msra.mxu0 %v528
      %1435 = vmatprep.subr.mxu0 0.0
      %1436 = vmatpush2.msra.mxu0 %v527
      %1437 = vmatprep.subr.mxu0 0.0
      %1438 = vmatpush2.msra.mxu0 %v526
      %1439 = vmatprep.subr.mxu0 0.0
      %1440 = vmatpush2.msra.mxu0 %v525
      %1441 = vmatprep.subr.mxu0 0.0
      %1442 = vmatpush2.msra.mxu0 %v524
      %1443 = vmatprep.subr.mxu0 0.0
      %1444 = vmatpush2.msra.mxu0 %v523
      %1445 = vmatprep.subr.mxu0 0.0
      %1446 = vmatpush2.msra.mxu0 %v522
      %1447 = vmatprep.subr.mxu0 0.0
      %1448 = vmatpush2.msra.mxu0 %v521
      %1449 = vmatprep.subr.mxu0 0.0
      %1450 = vmatpush2.msra.mxu0 %v520
      %1451 = vmatprep.subr.mxu0 0.0
      %1452 = vmatpush2.msra.mxu0 %v519
      %1453 = vmatprep.subr.mxu0 0.0
      %1454 = vmatpush2.msra.mxu0 %v518
      %1455 = vmatprep.subr.mxu0 0.0
      %1456 = vmatpush2.msra.mxu0 %v517
      %1457 = vmatprep.subr.mxu0 0.0
      %1458 = vmatpush2.msra.mxu0 %v516
      %1459 = vmatprep.subr.mxu0 0.0
      %1460 = vmatpush2.msra.mxu0 %v515
      %1461 = vmatprep.mubr.f32.mxu0 %v947
      %1462 = vmatmul.mubr.f32.gmra.mxu0 %v910
      %v1463 = vpop.f32.mrf.mxu0
      %v1464 = vadd.f32 %v1349, %v1463
      %v1465 = vpop.f32.mrf.mxu0
      %1466 = vmatprep.mubr.f32.mxu0 %v953
      %1467 = vmatmul.mubr.f32.gmra.mxu0 %v912
      %v1468 = vpop.f32.mrf.mxu0
      %v1469 = vadd.f32 %v1354, %v1468
      %v1470 = vpop.f32.mrf.mxu0
      %1471 = vmatprep.mubr.f32.mxu0 %v959
      %1472 = vmatmul.mubr.f32.gmra.mxu0 %v914
      %v1473 = vpop.f32.mrf.mxu0
      %v1474 = vadd.f32 %v1359, %v1473
      %v1475 = vpop.f32.mrf.mxu0
      %1476 = vmatprep.mubr.f32.mxu0 %v965
      %1477 = vmatmul.mubr.f32.gmra.mxu0 %v916
      %v1478 = vpop.f32.mrf.mxu0
      %v1479 = vadd.f32 %v1364, %v1478
      %v1480 = vpop.f32.mrf.mxu0
      %1481 = vmatprep.mubr.f32.mxu0 %v971
      %1482 = vmatmul.mubr.f32.gmra.mxu0 %v918
      %v1483 = vpop.f32.mrf.mxu0
      %v1484 = vadd.f32 %v1369, %v1483
      %v1485 = vpop.f32.mrf.mxu0
      %1486 = vmatprep.mubr.f32.mxu0 %v977
      %1487 = vmatmul.mubr.f32.gmra.mxu0 %v920
      %v1488 = vpop.f32.mrf.mxu0
      %v1489 = vadd.f32 %v1374, %v1488
      %v1490 = vpop.f32.mrf.mxu0
      %1491 = vmatprep.mubr.f32.mxu0 %v983
      %1492 = vmatmul.mubr.f32.gmra.mxu0 %v922
      %v1493 = vpop.f32.mrf.mxu0
      %v1494 = vadd.f32 %v1379, %v1493
      %v1495 = vpop.f32.mrf.mxu0
      %1496 = vmatprep.mubr.f32.mxu0 %v989
      %1497 = vmatmul.mubr.f32.gmra.mxu0 %v924
      %v1498 = vpop.f32.mrf.mxu0
      %v1499 = vadd.f32 %v1384, %v1498
      %v1500 = vpop.f32.mrf.mxu0
      %1501 = vmatprep.mubr.f32.mxu0 %v1036
      %1502 = vmatmul.mubr.f32.gmra.mxu0 %v926
      %v1503 = vpop.f32.mrf.mxu0
      %v1504 = vadd.f32 %v1389, %v1503
      %v1505 = vpop.f32.mrf.mxu0
      %1506 = vmatprep.mubr.f32.mxu0 %v1046
      %1507 = vmatmul.mubr.f32.gmra.mxu0 %v928
      %v1508 = vpop.f32.mrf.mxu0
      %v1509 = vadd.f32 %v1394, %v1508
      %v1510 = vpop.f32.mrf.mxu0
      %1511 = vdwg.mxu0
      %1512 = vmatprep.subr.mxu0 0.0
      %1513 = vmatpush1.msra.mxu0 %v546
      %1514 = vmatprep.subr.mxu0 0.0
      %1515 = vmatpush1.msra.mxu0 %v545
      %1516 = vmatprep.subr.mxu0 0.0
      %1517 = vmatpush1.msra.mxu0 %v544
      %1518 = vmatprep.subr.mxu0 0.0
      %1519 = vmatpush1.msra.mxu0 %v543
      %1520 = vmatprep.subr.mxu0 0.0
      %1521 = vmatpush1.msra.mxu0 %v542
      %1522 = vmatprep.subr.mxu0 0.0
      %1523 = vmatpush1.msra.mxu0 %v541
      %1524 = vmatprep.subr.mxu0 0.0
      %1525 = vmatpush1.msra.mxu0 %v540
      %1526 = vmatprep.subr.mxu0 0.0
      %1527 = vmatpush1.msra.mxu0 %v539
      %1528 = vmatprep.subr.mxu0 0.0
      %1529 = vmatpush1.msra.mxu0 %v538
      %1530 = vmatprep.subr.mxu0 0.0
      %1531 = vmatpush1.msra.mxu0 %v537
      %1532 = vmatprep.subr.mxu0 0.0
      %1533 = vmatpush1.msra.mxu0 %v536
      %1534 = vmatprep.subr.mxu0 0.0
      %1535 = vmatpush1.msra.mxu0 %v535
      %1536 = vmatprep.subr.mxu0 0.0
      %1537 = vmatpush1.msra.mxu0 %v534
      %1538 = vmatprep.subr.mxu0 0.0
      %1539 = vmatpush1.msra.mxu0 %v533
      %1540 = vmatprep.subr.mxu0 0.0
      %1541 = vmatpush1.msra.mxu0 %v532
      %1542 = vmatprep.subr.mxu0 0.0
      %1543 = vmatpush1.msra.mxu0 %v531
      %1544 = vmatprep.subr.mxu0 0.0
      %1545 = vmatpush2.msra.mxu0 0.0
      %1546 = vmatprep.subr.mxu0 0.0
      %1547 = vmatpush2.msra.mxu0 0.0
      %1548 = vmatprep.subr.mxu0 0.0
      %1549 = vmatpush2.msra.mxu0 0.0
      %1550 = vmatprep.subr.mxu0 0.0
      %1551 = vmatpush2.msra.mxu0 0.0
      %1552 = vmatprep.subr.mxu0 0.0
      %1553 = vmatpush2.msra.mxu0 0.0
      %1554 = vmatprep.subr.mxu0 0.0
      %1555 = vmatpush2.msra.mxu0 0.0
      %1556 = vmatprep.subr.mxu0 0.0
      %1557 = vmatpush2.msra.mxu0 0.0
      %1558 = vmatprep.subr.mxu0 0.0
      %1559 = vmatpush2.msra.mxu0 0.0
      %1560 = vmatprep.subr.mxu0 0.0
      %1561 = vmatpush2.msra.mxu0 0.0
      %1562 = vmatprep.subr.mxu0 0.0
      %1563 = vmatpush2.msra.mxu0 0.0
      %1564 = vmatprep.subr.mxu0 0.0
      %1565 = vmatpush2.msra.mxu0 0.0
      %1566 = vmatprep.subr.mxu0 0.0
      %1567 = vmatpush2.msra.mxu0 0.0
      %1568 = vmatprep.subr.mxu0 0.0
      %1569 = vmatpush2.msra.mxu0 0.0
      %1570 = vmatprep.subr.mxu0 0.0
      %1571 = vmatpush2.msra.mxu0 0.0
      %1572 = vmatprep.subr.mxu0 0.0
      %1573 = vmatpush2.msra.mxu0 0.0
      %1574 = vmatprep.subr.mxu0 0.0
      %1575 = vmatpush2.msra.mxu0 0.0
      %1576 = vmatprep.mubr.f32.mxu0 0.0
      %1577 = vmatmul.mubr.f32.gmra.mxu0 %v1002
      %v1578 = vpop.f32.mrf.mxu0
      %v1579 = vadd.f32 %v1464, %v1578
      %v1580 = vpop.f32.mrf.mxu0
      %1581 = vmatprep.mubr.f32.mxu0 0.0
      %1582 = vmatmul.mubr.f32.gmra.mxu0 %v1006
      %v1583 = vpop.f32.mrf.mxu0
      %v1584 = vadd.f32 %v1469, %v1583
      %v1585 = vpop.f32.mrf.mxu0
      %1586 = vmatprep.mubr.f32.mxu0 0.0
      %1587 = vmatmul.mubr.f32.gmra.mxu0 %v1010
      %v1588 = vpop.f32.mrf.mxu0
      %v1589 = vadd.f32 %v1474, %v1588
      %v1590 = vpop.f32.mrf.mxu0
      %1591 = vmatprep.mubr.f32.mxu0 0.0
      %1592 = vmatmul.mubr.f32.gmra.mxu0 %v1014
      %v1593 = vpop.f32.mrf.mxu0
      %v1594 = vadd.f32 %v1479, %v1593
      %v1595 = vpop.f32.mrf.mxu0
      %1596 = vmatprep.mubr.f32.mxu0 0.0
      %1597 = vmatmul.mubr.f32.gmra.mxu0 %v1018
      %v1598 = vpop.f32.mrf.mxu0
      %v1599 = vadd.f32 %v1484, %v1598
      %v1600 = vpop.f32.mrf.mxu0
      %1601 = vmatprep.mubr.f32.mxu0 0.0
      %1602 = vmatmul.mubr.f32.gmra.mxu0 %v1022
      %v1603 = vpop.f32.mrf.mxu0
      %v1604 = vadd.f32 %v1489, %v1603
      %v1605 = vpop.f32.mrf.mxu0
      %1606 = vmatprep.mubr.f32.mxu0 0.0
      %1607 = vmatmul.mubr.f32.gmra.mxu0 %v1026
      %v1608 = vpop.f32.mrf.mxu0
      %v1609 = vadd.f32 %v1494, %v1608
      %v1610 = vpop.f32.mrf.mxu0
      %1611 = vmatprep.mubr.f32.mxu0 0.0
      %1612 = vmatmul.mubr.f32.gmra.mxu0 %v1030
      %v1613 = vpop.f32.mrf.mxu0
      %v1614 = vadd.f32 %v1499, %v1613
      %v1615 = vpop.f32.mrf.mxu0
      %1616 = vmatprep.mubr.f32.mxu0 0.0
      %1617 = vmatmul.mubr.f32.gmra.mxu0 %v1040
      %v1618 = vpop.f32.mrf.mxu0
      %v1619 = vadd.f32 %v1504, %v1618
      %v1620 = vpop.f32.mrf.mxu0
      %1621 = vmatprep.mubr.f32.mxu0 0.0
      %1622 = vmatmul.mubr.f32.gmra.mxu0 %v1050
      %v1623 = vpop.f32.mrf.mxu0
      %v1624 = vadd.f32 %v1509, %v1623
      %v1625 = vpop.f32.mrf.mxu0
      %1626 = vdwg.mxu0
      %s1627 = sadd.s32 %s401, 4294967295
      %p1628 = scmp.ge.s32.totalorder %s1627, 0
      %p1629 = scmp.lt.s32.totalorder %s1627, 8
      %p1630 = pnand %p1628, %p1629
      %p1631 = pneg %p1630
      %s1632 = scalar_select %p1631, 1, 0
      %s1633 = scvt.s32.f32 %s1632
      %v1634 = vlaneseq
      %v1635 = vshrl.u32 %v1634, 7
      %v1636 = vsub.s32 2, %v1635
      %v1637 = vrot.slane %v402, %v1636
      %v1638 = vmul.f32 %v1579, %v1637
      %v1639 = vlaneseq
      %v1640 = vshrl.u32 %v1639, 7
      %v1641 = vsub.s32 3, %v1640
      %v1642 = vrot.slane %v402, %v1641
      %v1643 = vadd.f32 %v1638, %v1642
      %v1644 = vmax.f32 %v1643, 0.0
      %v1645 = vstv %s1633
      %v1646 = vmul.f32 %v1644, %v1645
      %v1648 = vrot.slane %v1646, 7
      %vm1650 = vcmask 1040384
      %v1651 = vsel %vm1650, 0.0, %v1648
      %v1652 = vsel %vm1650, %v1648, 0.0
      %p1653 = scmp.ge.s32.totalorder %s401, 0
      %p1654 = scmp.lt.s32.totalorder %s401, 8
      %p1655 = pnand %p1653, %p1654
      %p1656 = pneg %p1655
      %s1657 = scalar_select %p1656, 1, 0
      %s1658 = scvt.s32.f32 %s1657
      %v1659 = vmul.f32 %v1584, %v1637
      %v1660 = vadd.f32 %v1659, %v1642
      %v1661 = vmax.f32 %v1660, 0.0
      %v1662 = vstv %s1658
      %v1663 = vmul.f32 %v1661, %v1662
      %v1665 = vrot.slane %v1663, 7
      %v1667 = vsel %vm1650, 0.0, %v1665
      %v1668 = vsel %vm1650, %v1665, 0.0
      %s1669 = sadd.s32 %s401, 1
      %p1670 = scmp.ge.s32.totalorder %s1669, 0
      %p1671 = scmp.lt.s32.totalorder %s1669, 8
      %p1672 = pnand %p1670, %p1671
      %p1673 = pneg %p1672
      %s1674 = scalar_select %p1673, 1, 0
      %s1675 = scvt.s32.f32 %s1674
      %v1676 = vmul.f32 %v1589, %v1637
      %v1677 = vadd.f32 %v1676, %v1642
      %v1678 = vmax.f32 %v1677, 0.0
      %v1679 = vstv %s1675
      %v1680 = vmul.f32 %v1678, %v1679
      %v1682 = vrot.slane %v1680, 7
      %v1684 = vsel %vm1650, 0.0, %v1682
      %v1685 = vsel %vm1650, %v1682, 0.0
      %s1686 = sadd.s32 %s401, 2
      %p1687 = scmp.ge.s32.totalorder %s1686, 0
      %p1688 = scmp.lt.s32.totalorder %s1686, 8
      %p1689 = pnand %p1687, %p1688
      %p1690 = pneg %p1689
      %s1691 = scalar_select %p1690, 1, 0
      %s1692 = scvt.s32.f32 %s1691
      %v1693 = vmul.f32 %v1594, %v1637
      %v1694 = vadd.f32 %v1693, %v1642
      %v1695 = vmax.f32 %v1694, 0.0
      %v1696 = vstv %s1692
      %v1697 = vmul.f32 %v1695, %v1696
      %v1699 = vrot.slane %v1697, 7
      %v1701 = vsel %vm1650, 0.0, %v1699
      %v1702 = vsel %vm1650, %v1699, 0.0
      %s1703 = sadd.s32 %s401, 3
      %p1704 = scmp.ge.s32.totalorder %s1703, 0
      %p1705 = scmp.lt.s32.totalorder %s1703, 8
      %p1706 = pnand %p1704, %p1705
      %p1707 = pneg %p1706
      %s1708 = scalar_select %p1707, 1, 0
      %s1709 = scvt.s32.f32 %s1708
      %v1710 = vmul.f32 %v1599, %v1637
      %v1711 = vadd.f32 %v1710, %v1642
      %v1712 = vmax.f32 %v1711, 0.0
      %v1713 = vstv %s1709
      %v1714 = vmul.f32 %v1712, %v1713
      %v1716 = vrot.slane %v1714, 7
      %v1718 = vsel %vm1650, 0.0, %v1716
      %v1719 = vsel %vm1650, %v1716, 0.0
      %s1720 = sadd.s32 %s401, 4
      %p1721 = scmp.ge.s32.totalorder %s1720, 0
      %p1722 = scmp.lt.s32.totalorder %s1720, 8
      %p1723 = pnand %p1721, %p1722
      %p1724 = pneg %p1723
      %s1725 = scalar_select %p1724, 1, 0
      %s1726 = scvt.s32.f32 %s1725
      %v1727 = vmul.f32 %v1604, %v1637
      %v1728 = vadd.f32 %v1727, %v1642
      %v1729 = vmax.f32 %v1728, 0.0
      %v1730 = vstv %s1726
      %v1731 = vmul.f32 %v1729, %v1730
      %v1733 = vrot.slane %v1731, 7
      %v1735 = vsel %vm1650, 0.0, %v1733
      %v1736 = vsel %vm1650, %v1733, 0.0
      %s1737 = sadd.s32 %s401, 5
      %p1738 = scmp.ge.s32.totalorder %s1737, 0
      %p1739 = scmp.lt.s32.totalorder %s1737, 8
      %p1740 = pnand %p1738, %p1739
      %p1741 = pneg %p1740
      %s1742 = scalar_select %p1741, 1, 0
      %s1743 = scvt.s32.f32 %s1742
      %v1744 = vmul.f32 %v1609, %v1637
      %v1745 = vadd.f32 %v1744, %v1642
      %v1746 = vmax.f32 %v1745, 0.0
      %v1747 = vstv %s1743
      %v1748 = vmul.f32 %v1746, %v1747
      %v1750 = vrot.slane %v1748, 7
      %v1752 = vsel %vm1650, 0.0, %v1750
      %v1753 = vsel %vm1650, %v1750, 0.0
      %s1754 = sadd.s32 %s401, 6
      %p1755 = scmp.ge.s32.totalorder %s1754, 0
      %p1756 = scmp.lt.s32.totalorder %s1754, 8
      %p1757 = pnand %p1755, %p1756
      %p1758 = pneg %p1757
      %s1759 = scalar_select %p1758, 1, 0
      %s1760 = scvt.s32.f32 %s1759
      %v1761 = vmul.f32 %v1614, %v1637
      %v1762 = vadd.f32 %v1761, %v1642
      %v1763 = vmax.f32 %v1762, 0.0
      %v1764 = vstv %s1760
      %v1765 = vmul.f32 %v1763, %v1764
      %v1767 = vrot.slane %v1765, 7
      %v1769 = vsel %vm1650, 0.0, %v1767
      %v1770 = vsel %vm1650, %v1767, 0.0
      %s1771 = sadd.s32 %s401, 7
      %p1772 = scmp.ge.s32.totalorder %s1771, 0
      %p1773 = scmp.lt.s32.totalorder %s1771, 8
      %p1774 = pnand %p1772, %p1773
      %p1775 = pneg %p1774
      %s1776 = scalar_select %p1775, 1, 0
      %s1777 = scvt.s32.f32 %s1776
      %v1778 = vmul.f32 %v1619, %v1637
      %v1779 = vadd.f32 %v1778, %v1642
      %v1780 = vmax.f32 %v1779, 0.0
      %v1781 = vstv %s1777
      %v1782 = vmul.f32 %v1780, %v1781
      %v1784 = vrot.slane %v1782, 7
      %v1786 = vsel %vm1650, 0.0, %v1784
      %v1787 = vsel %vm1650, %v1784, 0.0
      %s1788 = sadd.s32 %s401, 8
      %p1789 = scmp.ge.s32.totalorder %s1788, 0
      %p1790 = scmp.lt.s32.totalorder %s1788, 8
      %p1791 = pnand %p1789, %p1790
      %p1792 = pneg %p1791
      %s1793 = scalar_select %p1792, 1, 0
      %s1794 = scvt.s32.f32 %s1793
      %v1795 = vmul.f32 %v1624, %v1637
      %v1796 = vadd.f32 %v1795, %v1642
      %v1797 = vmax.f32 %v1796, 0.0
      %v1798 = vstv %s1794
      %v1799 = vmul.f32 %v1797, %v1798
      %v1801 = vrot.slane %v1799, 7
      %v1803 = vsel %vm1650, 0.0, %v1801
      %v1804 = vsel %vm1650, %v1801, 0.0
      %v1807 = vrot.slane %v1651, 1
      %v1808 = vrot.slane %v1652, 1
      %v1809 = vsel %vm932, %v1807, %v1808
      %v1813 = vrot.slane %v1667, 1
      %v1814 = vrot.slane %v1668, 1
      %v1815 = vsel %vm932, %v1813, %v1814
      %v1819 = vrot.slane %v1684, 1
      %v1820 = vrot.slane %v1685, 1
      %v1821 = vsel %vm932, %v1819, %v1820
      %v1825 = vrot.slane %v1701, 1
      %v1826 = vrot.slane %v1702, 1
      %v1827 = vsel %vm932, %v1825, %v1826
      %v1831 = vrot.slane %v1718, 1
      %v1832 = vrot.slane %v1719, 1
      %v1833 = vsel %vm932, %v1831, %v1832
      %v1837 = vrot.slane %v1735, 1
      %v1838 = vrot.slane %v1736, 1
      %v1839 = vsel %vm932, %v1837, %v1838
      %v1843 = vrot.slane %v1752, 1
      %v1844 = vrot.slane %v1753, 1
      %v1845 = vsel %vm932, %v1843, %v1844
      %v1849 = vrot.slane %v1769, 1
      %v1850 = vrot.slane %v1770, 1
      %v1851 = vsel %vm932, %v1849, %v1850
      %v1853 = vrot.slane %v1651, 2
      %v1854 = vrot.slane %v1652, 2
      %v1855 = vsel %vm991, %v1853, %v1854
      %v1857 = vrot.slane %v1667, 2
      %v1858 = vrot.slane %v1668, 2
      %v1859 = vsel %vm991, %v1857, %v1858
      %v1861 = vrot.slane %v1684, 2
      %v1862 = vrot.slane %v1685, 2
      %v1863 = vsel %vm991, %v1861, %v1862
      %v1865 = vrot.slane %v1701, 2
      %v1866 = vrot.slane %v1702, 2
      %v1867 = vsel %vm991, %v1865, %v1866
      %v1869 = vrot.slane %v1718, 2
      %v1870 = vrot.slane %v1719, 2
      %v1871 = vsel %vm991, %v1869, %v1870
      %v1873 = vrot.slane %v1735, 2
      %v1874 = vrot.slane %v1736, 2
      %v1875 = vsel %vm991, %v1873, %v1874
      %v1877 = vrot.slane %v1752, 2
      %v1878 = vrot.slane %v1753, 2
      %v1879 = vsel %vm991, %v1877, %v1878
      %v1881 = vrot.slane %v1769, 2
      %v1882 = vrot.slane %v1770, 2
      %v1883 = vsel %vm991, %v1881, %v1882
      %v1887 = vrot.slane %v1786, 1
      %v1888 = vrot.slane %v1787, 1
      %v1889 = vsel %vm932, %v1887, %v1888
      %v1891 = vrot.slane %v1786, 2
      %v1892 = vrot.slane %v1787, 2
      %v1893 = vsel %vm991, %v1891, %v1892
      %v1897 = vrot.slane %v1803, 1
      %v1898 = vrot.slane %v1804, 1
      %v1899 = vsel %vm932, %v1897, %v1898
      %v1901 = vrot.slane %v1803, 2
      %v1902 = vrot.slane %v1804, 2
      %v1903 = vsel %vm991, %v1901, %v1902
      %1905 = vmatprep.subr.mxu0 0.0
      %1906 = vmatpush1.msra.mxu0 %v563
      %1907 = vmatprep.subr.mxu0 0.0
      %1908 = vmatpush1.msra.mxu0 %v562
      %1909 = vmatprep.subr.mxu0 0.0
      %1910 = vmatpush1.msra.mxu0 %v561
      %1911 = vmatprep.subr.mxu0 0.0
      %1912 = vmatpush1.msra.mxu0 %v560
      %1913 = vmatprep.subr.mxu0 0.0
      %1914 = vmatpush1.msra.mxu0 %v559
      %1915 = vmatprep.subr.mxu0 0.0
      %1916 = vmatpush1.msra.mxu0 %v558
      %1917 = vmatprep.subr.mxu0 0.0
      %1918 = vmatpush1.msra.mxu0 %v557
      %1919 = vmatprep.subr.mxu0 0.0
      %1920 = vmatpush1.msra.mxu0 %v556
      %1921 = vmatprep.subr.mxu0 0.0
      %1922 = vmatpush1.msra.mxu0 %v555
      %1923 = vmatprep.subr.mxu0 0.0
      %1924 = vmatpush1.msra.mxu0 %v554
      %1925 = vmatprep.subr.mxu0 0.0
      %1926 = vmatpush1.msra.mxu0 %v553
      %1927 = vmatprep.subr.mxu0 0.0
      %1928 = vmatpush1.msra.mxu0 %v552
      %1929 = vmatprep.subr.mxu0 0.0
      %1930 = vmatpush1.msra.mxu0 %v551
      %1931 = vmatprep.subr.mxu0 0.0
      %1932 = vmatpush1.msra.mxu0 %v550
      %1933 = vmatprep.subr.mxu0 0.0
      %1934 = vmatpush1.msra.mxu0 %v549
      %1935 = vmatprep.subr.mxu0 0.0
      %1936 = vmatpush1.msra.mxu0 %v548
      %1937 = vmatprep.subr.mxu0 0.0
      %1938 = vmatpush2.msra.mxu0 %v579
      %1939 = vmatprep.subr.mxu0 0.0
      %1940 = vmatpush2.msra.mxu0 %v578
      %1941 = vmatprep.subr.mxu0 0.0
      %1942 = vmatpush2.msra.mxu0 %v577
      %1943 = vmatprep.subr.mxu0 0.0
      %1944 = vmatpush2.msra.mxu0 %v576
      %1945 = vmatprep.subr.mxu0 0.0
      %1946 = vmatpush2.msra.mxu0 %v575
      %1947 = vmatprep.subr.mxu0 0.0
      %1948 = vmatpush2.msra.mxu0 %v574
      %1949 = vmatprep.subr.mxu0 0.0
      %1950 = vmatpush2.msra.mxu0 %v573
      %1951 = vmatprep.subr.mxu0 0.0
      %1952 = vmatpush2.msra.mxu0 %v572
      %1953 = vmatprep.subr.mxu0 0.0
      %1954 = vmatpush2.msra.mxu0 %v571
      %1955 = vmatprep.subr.mxu0 0.0
      %1956 = vmatpush2.msra.mxu0 %v570
      %1957 = vmatprep.subr.mxu0 0.0
      %1958 = vmatpush2.msra.mxu0 %v569
      %1959 = vmatprep.subr.mxu0 0.0
      %1960 = vmatpush2.msra.mxu0 %v568
      %1961 = vmatprep.subr.mxu0 0.0
      %1962 = vmatpush2.msra.mxu0 %v567
      %1963 = vmatprep.subr.mxu0 0.0
      %1964 = vmatpush2.msra.mxu0 %v566
      %1965 = vmatprep.subr.mxu0 0.0
      %1966 = vmatpush2.msra.mxu0 %v565
      %1967 = vmatprep.subr.mxu0 0.0
      %1968 = vmatpush2.msra.mxu0 %v564
      %1969 = vmatprep.mubr.f32.mxu0 %v1809
      %1970 = vmatmul.mubr.f32.gmra.mxu0 %v1651
      %v1971 = vpop.f32.mrf.mxu0
      %v1972 = vadd.f32 0.0, %v1971
      %v1973 = vpop.f32.mrf.mxu0
      %1974 = vmatprep.mubr.f32.mxu0 %v1815
      %1975 = vmatmul.mubr.f32.gmra.mxu0 %v1667
      %v1976 = vpop.f32.mrf.mxu0
      %v1977 = vadd.f32 0.0, %v1976
      %v1978 = vpop.f32.mrf.mxu0
      %1979 = vmatprep.mubr.f32.mxu0 %v1821
      %1980 = vmatmul.mubr.f32.gmra.mxu0 %v1684
      %v1981 = vpop.f32.mrf.mxu0
      %v1982 = vadd.f32 0.0, %v1981
      %v1983 = vpop.f32.mrf.mxu0
      %1984 = vmatprep.mubr.f32.mxu0 %v1827
      %1985 = vmatmul.mubr.f32.gmra.mxu0 %v1701
      %v1986 = vpop.f32.mrf.mxu0
      %v1987 = vadd.f32 0.0, %v1986
      %v1988 = vpop.f32.mrf.mxu0
      %1989 = vmatprep.mubr.f32.mxu0 %v1833
      %1990 = vmatmul.mubr.f32.gmra.mxu0 %v1718
      %v1991 = vpop.f32.mrf.mxu0
      %v1992 = vadd.f32 0.0, %v1991
      %v1993 = vpop.f32.mrf.mxu0
      %1994 = vmatprep.mubr.f32.mxu0 %v1839
      %1995 = vmatmul.mubr.f32.gmra.mxu0 %v1735
      %v1996 = vpop.f32.mrf.mxu0
      %v1997 = vadd.f32 0.0, %v1996
      %v1998 = vpop.f32.mrf.mxu0
      %1999 = vmatprep.mubr.f32.mxu0 %v1845
      %2000 = vmatmul.mubr.f32.gmra.mxu0 %v1752
      %v2001 = vpop.f32.mrf.mxu0
      %v2002 = vadd.f32 0.0, %v2001
      %v2003 = vpop.f32.mrf.mxu0
      %2004 = vmatprep.mubr.f32.mxu0 %v1851
      %2005 = vmatmul.mubr.f32.gmra.mxu0 %v1769
      %v2006 = vpop.f32.mrf.mxu0
      %v2007 = vadd.f32 0.0, %v2006
      %v2008 = vpop.f32.mrf.mxu0
      %2009 = vdwg.mxu0
      %2010 = vmatprep.subr.mxu0 0.0
      %2011 = vmatpush1.msra.mxu0 %v595
      %2012 = vmatprep.subr.mxu0 0.0
      %2013 = vmatpush1.msra.mxu0 %v594
      %2014 = vmatprep.subr.mxu0 0.0
      %2015 = vmatpush1.msra.mxu0 %v593
      %2016 = vmatprep.subr.mxu0 0.0
      %2017 = vmatpush1.msra.mxu0 %v592
      %2018 = vmatprep.subr.mxu0 0.0
      %2019 = vmatpush1.msra.mxu0 %v591
      %2020 = vmatprep.subr.mxu0 0.0
      %2021 = vmatpush1.msra.mxu0 %v590
      %2022 = vmatprep.subr.mxu0 0.0
      %2023 = vmatpush1.msra.mxu0 %v589
      %2024 = vmatprep.subr.mxu0 0.0
      %2025 = vmatpush1.msra.mxu0 %v588
      %2026 = vmatprep.subr.mxu0 0.0
      %2027 = vmatpush1.msra.mxu0 %v587
      %2028 = vmatprep.subr.mxu0 0.0
      %2029 = vmatpush1.msra.mxu0 %v586
      %2030 = vmatprep.subr.mxu0 0.0
      %2031 = vmatpush1.msra.mxu0 %v585
      %2032 = vmatprep.subr.mxu0 0.0
      %2033 = vmatpush1.msra.mxu0 %v584
      %2034 = vmatprep.subr.mxu0 0.0
      %2035 = vmatpush1.msra.mxu0 %v583
      %2036 = vmatprep.subr.mxu0 0.0
      %2037 = vmatpush1.msra.mxu0 %v582
      %2038 = vmatprep.subr.mxu0 0.0
      %2039 = vmatpush1.msra.mxu0 %v581
      %2040 = vmatprep.subr.mxu0 0.0
      %2041 = vmatpush1.msra.mxu0 %v580
      %2042 = vmatprep.subr.mxu0 0.0
      %2043 = vmatpush2.msra.mxu0 %v611
      %2044 = vmatprep.subr.mxu0 0.0
      %2045 = vmatpush2.msra.mxu0 %v610
      %2046 = vmatprep.subr.mxu0 0.0
      %2047 = vmatpush2.msra.mxu0 %v609
      %2048 = vmatprep.subr.mxu0 0.0
      %2049 = vmatpush2.msra.mxu0 %v608
      %2050 = vmatprep.subr.mxu0 0.0
      %2051 = vmatpush2.msra.mxu0 %v607
      %2052 = vmatprep.subr.mxu0 0.0
      %2053 = vmatpush2.msra.mxu0 %v606
      %2054 = vmatprep.subr.mxu0 0.0
      %2055 = vmatpush2.msra.mxu0 %v605
      %2056 = vmatprep.subr.mxu0 0.0
      %2057 = vmatpush2.msra.mxu0 %v604
      %2058 = vmatprep.subr.mxu0 0.0
      %2059 = vmatpush2.msra.mxu0 %v603
      %2060 = vmatprep.subr.mxu0 0.0
      %2061 = vmatpush2.msra.mxu0 %v602
      %2062 = vmatprep.subr.mxu0 0.0
      %2063 = vmatpush2.msra.mxu0 %v601
      %2064 = vmatprep.subr.mxu0 0.0
      %2065 = vmatpush2.msra.mxu0 %v600
      %2066 = vmatprep.subr.mxu0 0.0
      %2067 = vmatpush2.msra.mxu0 %v599
      %2068 = vmatprep.subr.mxu0 0.0
      %2069 = vmatpush2.msra.mxu0 %v598
      %2070 = vmatprep.subr.mxu0 0.0
      %2071 = vmatpush2.msra.mxu0 %v597
      %2072 = vmatprep.subr.mxu0 0.0
      %2073 = vmatpush2.msra.mxu0 %v596
      %2074 = vmatprep.mubr.f32.mxu0 %v1667
      %2075 = vmatmul.mubr.f32.gmra.mxu0 %v1855
      %v2076 = vpop.f32.mrf.mxu0
      %v2077 = vadd.f32 %v1972, %v2076
      %v2078 = vpop.f32.mrf.mxu0
      %2079 = vmatprep.mubr.f32.mxu0 %v1684
      %2080 = vmatmul.mubr.f32.gmra.mxu0 %v1859
      %v2081 = vpop.f32.mrf.mxu0
      %v2082 = vadd.f32 %v1977, %v2081
      %v2083 = vpop.f32.mrf.mxu0
      %2084 = vmatprep.mubr.f32.mxu0 %v1701
      %2085 = vmatmul.mubr.f32.gmra.mxu0 %v1863
      %v2086 = vpop.f32.mrf.mxu0
      %v2087 = vadd.f32 %v1982, %v2086
      %v2088 = vpop.f32.mrf.mxu0
      %2089 = vmatprep.mubr.f32.mxu0 %v1718
      %2090 = vmatmul.mubr.f32.gmra.mxu0 %v1867
      %v2091 = vpop.f32.mrf.mxu0
      %v2092 = vadd.f32 %v1987, %v2091
      %v2093 = vpop.f32.mrf.mxu0
      %2094 = vmatprep.mubr.f32.mxu0 %v1735
      %2095 = vmatmul.mubr.f32.gmra.mxu0 %v1871
      %v2096 = vpop.f32.mrf.mxu0
      %v2097 = vadd.f32 %v1992, %v2096
      %v2098 = vpop.f32.mrf.mxu0
      %2099 = vmatprep.mubr.f32.mxu0 %v1752
      %2100 = vmatmul.mubr.f32.gmra.mxu0 %v1875
      %v2101 = vpop.f32.mrf.mxu0
      %v2102 = vadd.f32 %v1997, %v2101
      %v2103 = vpop.f32.mrf.mxu0
      %2104 = vmatprep.mubr.f32.mxu0 %v1769
      %2105 = vmatmul.mubr.f32.gmra.mxu0 %v1879
      %v2106 = vpop.f32.mrf.mxu0
      %v2107 = vadd.f32 %v2002, %v2106
      %v2108 = vpop.f32.mrf.mxu0
      %2109 = vmatprep.mubr.f32.mxu0 %v1786
      %2110 = vmatmul.mubr.f32.gmra.mxu0 %v1883
      %v2111 = vpop.f32.mrf.mxu0
      %v2112 = vadd.f32 %v2007, %v2111
      %v2113 = vpop.f32.mrf.mxu0
      %2114 = vdwg.mxu0
      %2115 = vmatprep.subr.mxu0 0.0
      %2116 = vmatpush1.msra.mxu0 %v627
      %2117 = vmatprep.subr.mxu0 0.0
      %2118 = vmatpush1.msra.mxu0 %v626
      %2119 = vmatprep.subr.mxu0 0.0
      %2120 = vmatpush1.msra.mxu0 %v625
      %2121 = vmatprep.subr.mxu0 0.0
      %2122 = vmatpush1.msra.mxu0 %v624
      %2123 = vmatprep.subr.mxu0 0.0
      %2124 = vmatpush1.msra.mxu0 %v623
      %2125 = vmatprep.subr.mxu0 0.0
      %2126 = vmatpush1.msra.mxu0 %v622
      %2127 = vmatprep.subr.mxu0 0.0
      %2128 = vmatpush1.msra.mxu0 %v621
      %2129 = vmatprep.subr.mxu0 0.0
      %2130 = vmatpush1.msra.mxu0 %v620
      %2131 = vmatprep.subr.mxu0 0.0
      %2132 = vmatpush1.msra.mxu0 %v619
      %2133 = vmatprep.subr.mxu0 0.0
      %2134 = vmatpush1.msra.mxu0 %v618
      %2135 = vmatprep.subr.mxu0 0.0
      %2136 = vmatpush1.msra.mxu0 %v617
      %2137 = vmatprep.subr.mxu0 0.0
      %2138 = vmatpush1.msra.mxu0 %v616
      %2139 = vmatprep.subr.mxu0 0.0
      %2140 = vmatpush1.msra.mxu0 %v615
      %2141 = vmatprep.subr.mxu0 0.0
      %2142 = vmatpush1.msra.mxu0 %v614
      %2143 = vmatprep.subr.mxu0 0.0
      %2144 = vmatpush1.msra.mxu0 %v613
      %2145 = vmatprep.subr.mxu0 0.0
      %2146 = vmatpush1.msra.mxu0 %v612
      %2147 = vmatprep.subr.mxu0 0.0
      %2148 = vmatpush2.msra.mxu0 %v643
      %2149 = vmatprep.subr.mxu0 0.0
      %2150 = vmatpush2.msra.mxu0 %v642
      %2151 = vmatprep.subr.mxu0 0.0
      %2152 = vmatpush2.msra.mxu0 %v641
      %2153 = vmatprep.subr.mxu0 0.0
      %2154 = vmatpush2.msra.mxu0 %v640
      %2155 = vmatprep.subr.mxu0 0.0
      %2156 = vmatpush2.msra.mxu0 %v639
      %2157 = vmatprep.subr.mxu0 0.0
      %2158 = vmatpush2.msra.mxu0 %v638
      %2159 = vmatprep.subr.mxu0 0.0
      %2160 = vmatpush2.msra.mxu0 %v637
      %2161 = vmatprep.subr.mxu0 0.0
      %2162 = vmatpush2.msra.mxu0 %v636
      %2163 = vmatprep.subr.mxu0 0.0
      %2164 = vmatpush2.msra.mxu0 %v635
      %2165 = vmatprep.subr.mxu0 0.0
      %2166 = vmatpush2.msra.mxu0 %v634
      %2167 = vmatprep.subr.mxu0 0.0
      %2168 = vmatpush2.msra.mxu0 %v633
      %2169 = vmatprep.subr.mxu0 0.0
      %2170 = vmatpush2.msra.mxu0 %v632
      %2171 = vmatprep.subr.mxu0 0.0
      %2172 = vmatpush2.msra.mxu0 %v631
      %2173 = vmatprep.subr.mxu0 0.0
      %2174 = vmatpush2.msra.mxu0 %v630
      %2175 = vmatprep.subr.mxu0 0.0
      %2176 = vmatpush2.msra.mxu0 %v629
      %2177 = vmatprep.subr.mxu0 0.0
      %2178 = vmatpush2.msra.mxu0 %v628
      %2179 = vmatprep.mubr.f32.mxu0 %v1859
      %2180 = vmatmul.mubr.f32.gmra.mxu0 %v1815
      %v2181 = vpop.f32.mrf.mxu0
      %v2182 = vadd.f32 %v2077, %v2181
      %v2183 = vpop.f32.mrf.mxu0
      %2184 = vmatprep.mubr.f32.mxu0 %v1863
      %2185 = vmatmul.mubr.f32.gmra.mxu0 %v1821
      %v2186 = vpop.f32.mrf.mxu0
      %v2187 = vadd.f32 %v2082, %v2186
      %v2188 = vpop.f32.mrf.mxu0
      %2189 = vmatprep.mubr.f32.mxu0 %v1867
      %2190 = vmatmul.mubr.f32.gmra.mxu0 %v1827
      %v2191 = vpop.f32.mrf.mxu0
      %v2192 = vadd.f32 %v2087, %v2191
      %v2193 = vpop.f32.mrf.mxu0
      %2194 = vmatprep.mubr.f32.mxu0 %v1871
      %2195 = vmatmul.mubr.f32.gmra.mxu0 %v1833
      %v2196 = vpop.f32.mrf.mxu0
      %v2197 = vadd.f32 %v2092, %v2196
      %v2198 = vpop.f32.mrf.mxu0
      %2199 = vmatprep.mubr.f32.mxu0 %v1875
      %2200 = vmatmul.mubr.f32.gmra.mxu0 %v1839
      %v2201 = vpop.f32.mrf.mxu0
      %v2202 = vadd.f32 %v2097, %v2201
      %v2203 = vpop.f32.mrf.mxu0
      %2204 = vmatprep.mubr.f32.mxu0 %v1879
      %2205 = vmatmul.mubr.f32.gmra.mxu0 %v1845
      %v2206 = vpop.f32.mrf.mxu0
      %v2207 = vadd.f32 %v2102, %v2206
      %v2208 = vpop.f32.mrf.mxu0
      %2209 = vmatprep.mubr.f32.mxu0 %v1883
      %2210 = vmatmul.mubr.f32.gmra.mxu0 %v1851
      %v2211 = vpop.f32.mrf.mxu0
      %v2212 = vadd.f32 %v2107, %v2211
      %v2213 = vpop.f32.mrf.mxu0
      %2214 = vmatprep.mubr.f32.mxu0 %v1893
      %2215 = vmatmul.mubr.f32.gmra.mxu0 %v1889
      %v2216 = vpop.f32.mrf.mxu0
      %v2217 = vadd.f32 %v2112, %v2216
      %v2218 = vpop.f32.mrf.mxu0
      %2219 = vdwg.mxu0
      %2220 = vmatprep.subr.mxu0 0.0
      %2221 = vmatpush1.msra.mxu0 %v659
      %2222 = vmatprep.subr.mxu0 0.0
      %2223 = vmatpush1.msra.mxu0 %v658
      %2224 = vmatprep.subr.mxu0 0.0
      %2225 = vmatpush1.msra.mxu0 %v657
      %2226 = vmatprep.subr.mxu0 0.0
      %2227 = vmatpush1.msra.mxu0 %v656
      %2228 = vmatprep.subr.mxu0 0.0
      %2229 = vmatpush1.msra.mxu0 %v655
      %2230 = vmatprep.subr.mxu0 0.0
      %2231 = vmatpush1.msra.mxu0 %v654
      %2232 = vmatprep.subr.mxu0 0.0
      %2233 = vmatpush1.msra.mxu0 %v653
      %2234 = vmatprep.subr.mxu0 0.0
      %2235 = vmatpush1.msra.mxu0 %v652
      %2236 = vmatprep.subr.mxu0 0.0
      %2237 = vmatpush1.msra.mxu0 %v651
      %2238 = vmatprep.subr.mxu0 0.0
      %2239 = vmatpush1.msra.mxu0 %v650
      %2240 = vmatprep.subr.mxu0 0.0
      %2241 = vmatpush1.msra.mxu0 %v649
      %2242 = vmatprep.subr.mxu0 0.0
      %2243 = vmatpush1.msra.mxu0 %v648
      %2244 = vmatprep.subr.mxu0 0.0
      %2245 = vmatpush1.msra.mxu0 %v647
      %2246 = vmatprep.subr.mxu0 0.0
      %2247 = vmatpush1.msra.mxu0 %v646
      %2248 = vmatprep.subr.mxu0 0.0
      %2249 = vmatpush1.msra.mxu0 %v645
      %2250 = vmatprep.subr.mxu0 0.0
      %2251 = vmatpush1.msra.mxu0 %v644
      %2252 = vmatprep.subr.mxu0 0.0
      %2253 = vmatpush2.msra.mxu0 %v675
      %2254 = vmatprep.subr.mxu0 0.0
      %2255 = vmatpush2.msra.mxu0 %v674
      %2256 = vmatprep.subr.mxu0 0.0
      %2257 = vmatpush2.msra.mxu0 %v673
      %2258 = vmatprep.subr.mxu0 0.0
      %2259 = vmatpush2.msra.mxu0 %v672
      %2260 = vmatprep.subr.mxu0 0.0
      %2261 = vmatpush2.msra.mxu0 %v671
      %2262 = vmatprep.subr.mxu0 0.0
      %2263 = vmatpush2.msra.mxu0 %v670
      %2264 = vmatprep.subr.mxu0 0.0
      %2265 = vmatpush2.msra.mxu0 %v669
      %2266 = vmatprep.subr.mxu0 0.0
      %2267 = vmatpush2.msra.mxu0 %v668
      %2268 = vmatprep.subr.mxu0 0.0
      %2269 = vmatpush2.msra.mxu0 %v667
      %2270 = vmatprep.subr.mxu0 0.0
      %2271 = vmatpush2.msra.mxu0 %v666
      %2272 = vmatprep.subr.mxu0 0.0
      %2273 = vmatpush2.msra.mxu0 %v665
      %2274 = vmatprep.subr.mxu0 0.0
      %2275 = vmatpush2.msra.mxu0 %v664
      %2276 = vmatprep.subr.mxu0 0.0
      %2277 = vmatpush2.msra.mxu0 %v663
      %2278 = vmatprep.subr.mxu0 0.0
      %2279 = vmatpush2.msra.mxu0 %v662
      %2280 = vmatprep.subr.mxu0 0.0
      %2281 = vmatpush2.msra.mxu0 %v661
      %2282 = vmatprep.subr.mxu0 0.0
      %2283 = vmatpush2.msra.mxu0 %v660
      %2284 = vmatprep.mubr.f32.mxu0 %v1821
      %2285 = vmatmul.mubr.f32.gmra.mxu0 %v1684
      %v2286 = vpop.f32.mrf.mxu0
      %v2287 = vadd.f32 %v2182, %v2286
      %v2288 = vpop.f32.mrf.mxu0
      %2289 = vmatprep.mubr.f32.mxu0 %v1827
      %2290 = vmatmul.mubr.f32.gmra.mxu0 %v1701
      %v2291 = vpop.f32.mrf.mxu0
      %v2292 = vadd.f32 %v2187, %v2291
      %v2293 = vpop.f32.mrf.mxu0
      %2294 = vmatprep.mubr.f32.mxu0 %v1833
      %2295 = vmatmul.mubr.f32.gmra.mxu0 %v1718
      %v2296 = vpop.f32.mrf.mxu0
      %v2297 = vadd.f32 %v2192, %v2296
      %v2298 = vpop.f32.mrf.mxu0
      %2299 = vmatprep.mubr.f32.mxu0 %v1839
      %2300 = vmatmul.mubr.f32.gmra.mxu0 %v1735
      %v2301 = vpop.f32.mrf.mxu0
      %v2302 = vadd.f32 %v2197, %v2301
      %v2303 = vpop.f32.mrf.mxu0
      %2304 = vmatprep.mubr.f32.mxu0 %v1845
      %2305 = vmatmul.mubr.f32.gmra.mxu0 %v1752
      %v2306 = vpop.f32.mrf.mxu0
      %v2307 = vadd.f32 %v2202, %v2306
      %v2308 = vpop.f32.mrf.mxu0
      %2309 = vmatprep.mubr.f32.mxu0 %v1851
      %2310 = vmatmul.mubr.f32.gmra.mxu0 %v1769
      %v2311 = vpop.f32.mrf.mxu0
      %v2312 = vadd.f32 %v2207, %v2311
      %v2313 = vpop.f32.mrf.mxu0
      %2314 = vmatprep.mubr.f32.mxu0 %v1889
      %2315 = vmatmul.mubr.f32.gmra.mxu0 %v1786
      %v2316 = vpop.f32.mrf.mxu0
      %v2317 = vadd.f32 %v2212, %v2316
      %v2318 = vpop.f32.mrf.mxu0
      %2319 = vmatprep.mubr.f32.mxu0 %v1899
      %2320 = vmatmul.mubr.f32.gmra.mxu0 %v1803
      %v2321 = vpop.f32.mrf.mxu0
      %v2322 = vadd.f32 %v2217, %v2321
      %v2323 = vpop.f32.mrf.mxu0
      %2324 = vdwg.mxu0
      %2325 = vmatprep.subr.mxu0 0.0
      %2326 = vmatpush1.msra.mxu0 %v691
      %2327 = vmatprep.subr.mxu0 0.0
      %2328 = vmatpush1.msra.mxu0 %v690
      %2329 = vmatprep.subr.mxu0 0.0
      %2330 = vmatpush1.msra.mxu0 %v689
      %2331 = vmatprep.subr.mxu0 0.0
      %2332 = vmatpush1.msra.mxu0 %v688
      %2333 = vmatprep.subr.mxu0 0.0
      %2334 = vmatpush1.msra.mxu0 %v687
      %2335 = vmatprep.subr.mxu0 0.0
      %2336 = vmatpush1.msra.mxu0 %v686
      %2337 = vmatprep.subr.mxu0 0.0
      %2338 = vmatpush1.msra.mxu0 %v685
      %2339 = vmatprep.subr.mxu0 0.0
      %2340 = vmatpush1.msra.mxu0 %v684
      %2341 = vmatprep.subr.mxu0 0.0
      %2342 = vmatpush1.msra.mxu0 %v683
      %2343 = vmatprep.subr.mxu0 0.0
      %2344 = vmatpush1.msra.mxu0 %v682
      %2345 = vmatprep.subr.mxu0 0.0
      %2346 = vmatpush1.msra.mxu0 %v681
      %2347 = vmatprep.subr.mxu0 0.0
      %2348 = vmatpush1.msra.mxu0 %v680
      %2349 = vmatprep.subr.mxu0 0.0
      %2350 = vmatpush1.msra.mxu0 %v679
      %2351 = vmatprep.subr.mxu0 0.0
      %2352 = vmatpush1.msra.mxu0 %v678
      %2353 = vmatprep.subr.mxu0 0.0
      %2354 = vmatpush1.msra.mxu0 %v677
      %2355 = vmatprep.subr.mxu0 0.0
      %2356 = vmatpush1.msra.mxu0 %v676
      %2357 = vmatprep.subr.mxu0 0.0
      %2358 = vmatpush2.msra.mxu0 0.0
      %2359 = vmatprep.subr.mxu0 0.0
      %2360 = vmatpush2.msra.mxu0 0.0
      %2361 = vmatprep.subr.mxu0 0.0
      %2362 = vmatpush2.msra.mxu0 0.0
      %2363 = vmatprep.subr.mxu0 0.0
      %2364 = vmatpush2.msra.mxu0 0.0
      %2365 = vmatprep.subr.mxu0 0.0
      %2366 = vmatpush2.msra.mxu0 0.0
      %2367 = vmatprep.subr.mxu0 0.0
      %2368 = vmatpush2.msra.mxu0 0.0
      %2369 = vmatprep.subr.mxu0 0.0
      %2370 = vmatpush2.msra.mxu0 0.0
      %2371 = vmatprep.subr.mxu0 0.0
      %2372 = vmatpush2.msra.mxu0 0.0
      %2373 = vmatprep.subr.mxu0 0.0
      %2374 = vmatpush2.msra.mxu0 0.0
      %2375 = vmatprep.subr.mxu0 0.0
      %2376 = vmatpush2.msra.mxu0 0.0
      %2377 = vmatprep.subr.mxu0 0.0
      %2378 = vmatpush2.msra.mxu0 0.0
      %2379 = vmatprep.subr.mxu0 0.0
      %2380 = vmatpush2.msra.mxu0 0.0
      %2381 = vmatprep.subr.mxu0 0.0
      %2382 = vmatpush2.msra.mxu0 0.0
      %2383 = vmatprep.subr.mxu0 0.0
      %2384 = vmatpush2.msra.mxu0 0.0
      %2385 = vmatprep.subr.mxu0 0.0
      %2386 = vmatpush2.msra.mxu0 0.0
      %2387 = vmatprep.subr.mxu0 0.0
      %2388 = vmatpush2.msra.mxu0 0.0
      %2389 = vmatprep.mubr.f32.mxu0 0.0
      %2390 = vmatmul.mubr.f32.gmra.mxu0 %v1863
      %v2391 = vpop.f32.mrf.mxu0
      %v2392 = vadd.f32 %v2287, %v2391
      %v2393 = vpop.f32.mrf.mxu0
      %2394 = vmatprep.mubr.f32.mxu0 0.0
      %2395 = vmatmul.mubr.f32.gmra.mxu0 %v1867
      %v2396 = vpop.f32.mrf.mxu0
      %v2397 = vadd.f32 %v2292, %v2396
      %v2398 = vpop.f32.mrf.mxu0
      %2399 = vmatprep.mubr.f32.mxu0 0.0
      %2400 = vmatmul.mubr.f32.gmra.mxu0 %v1871
      %v2401 = vpop.f32.mrf.mxu0
      %v2402 = vadd.f32 %v2297, %v2401
      %v2403 = vpop.f32.mrf.mxu0
      %2404 = vmatprep.mubr.f32.mxu0 0.0
      %2405 = vmatmul.mubr.f32.gmra.mxu0 %v1875
      %v2406 = vpop.f32.mrf.mxu0
      %v2407 = vadd.f32 %v2302, %v2406
      %v2408 = vpop.f32.mrf.mxu0
      %2409 = vmatprep.mubr.f32.mxu0 0.0
      %2410 = vmatmul.mubr.f32.gmra.mxu0 %v1879
      %v2411 = vpop.f32.mrf.mxu0
      %v2412 = vadd.f32 %v2307, %v2411
      %v2413 = vpop.f32.mrf.mxu0
      %2414 = vmatprep.mubr.f32.mxu0 0.0
      %2415 = vmatmul.mubr.f32.gmra.mxu0 %v1883
      %v2416 = vpop.f32.mrf.mxu0
      %v2417 = vadd.f32 %v2312, %v2416
      %v2418 = vpop.f32.mrf.mxu0
      %2419 = vmatprep.mubr.f32.mxu0 0.0
      %2420 = vmatmul.mubr.f32.gmra.mxu0 %v1893
      %v2421 = vpop.f32.mrf.mxu0
      %v2422 = vadd.f32 %v2317, %v2421
      %v2423 = vpop.f32.mrf.mxu0
      %2424 = vmatprep.mubr.f32.mxu0 0.0
      %2425 = vmatmul.mubr.f32.gmra.mxu0 %v1903
      %v2426 = vpop.f32.mrf.mxu0
      %v2427 = vadd.f32 %v2322, %v2426
      %v2428 = vpop.f32.mrf.mxu0
      %2429 = vdwg.mxu0
      %v2432 = vrot.slane %v692, 1
      %v2433 = vrot.slane %v693, 1
      %v2434 = vsel %vm932, %v2432, %v2433
      %v2436 = vadd.f32 %v2392, %v2434
      %2437 = vst [vmem:[%s399] sm:$0xff] %v2436
      %v2440 = vrot.slane %v694, 1
      %v2441 = vrot.slane %v695, 1
      %v2442 = vsel %vm932, %v2440, %v2441
      %v2444 = vadd.f32 %v2397, %v2442
      %s2445 = scalar_lea.vmem %s399, 8
      %2446 = vst [vmem:[%s2445] sm:$0xff] %v2444
      %v2449 = vrot.slane %v696, 1
      %v2450 = vrot.slane %v697, 1
      %v2451 = vsel %vm932, %v2449, %v2450
      %v2453 = vadd.f32 %v2402, %v2451
      %s2454 = scalar_lea.vmem %s399, 16
      %2455 = vst [vmem:[%s2454] sm:$0xff] %v2453
      %v2458 = vrot.slane %v698, 1
      %v2459 = vrot.slane %v699, 1
      %v2460 = vsel %vm932, %v2458, %v2459
      %v2462 = vadd.f32 %v2407, %v2460
      %s2463 = scalar_lea.vmem %s399, 24
      %2464 = vst [vmem:[%s2463] sm:$0xff] %v2462
      %v2467 = vrot.slane %v700, 1
      %v2468 = vrot.slane %v701, 1
      %v2469 = vsel %vm932, %v2467, %v2468
      %v2471 = vadd.f32 %v2412, %v2469
      %s2472 = scalar_lea.vmem %s399, 32
      %2473 = vst [vmem:[%s2472] sm:$0xff] %v2471
      %v2476 = vrot.slane %v702, 1
      %v2477 = vrot.slane %v703, 1
      %v2478 = vsel %vm932, %v2476, %v2477
      %v2480 = vadd.f32 %v2417, %v2478
      %s2481 = scalar_lea.vmem %s399, 40
      %2482 = vst [vmem:[%s2481] sm:$0xff] %v2480
      %v2485 = vrot.slane %v704, 1
      %v2486 = vrot.slane %v705, 1
      %v2487 = vsel %vm932, %v2485, %v2486
      %v2489 = vadd.f32 %v2422, %v2487
      %s2490 = scalar_lea.vmem %s399, 48
      %2491 = vst [vmem:[%s2490] sm:$0xff] %v2489
      %v2494 = vrot.slane %v706, 1
      %v2495 = vrot.slane %v707, 1
      %v2496 = vsel %vm932, %v2494, %v2495
      %v2498 = vadd.f32 %v2427, %v2496
      %s2499 = scalar_lea.vmem %s399, 56
      %2500 = vst [vmem:[%s2499] sm:$0xff] %v2498
      %s2501 = smul.u32 8, %s21
      %p2502 = scmp.lt.s32.totalorder %s20, 1
      %s2503 = scalar_select %p2502, %s20, 1
      %p2504 = scmp.lt.s32.totalorder %s2501, 7
      %s2505 = scalar_select %p2504, %s2501, 7
      %s2506 = smul.addr %s2503, 8
      %s2507 = sadd.s32 %s2505, %s2506
      %s2508 = smul.addr %s2507, 8
      %s2509 = scalar_lea.vmem %s5, %s2508
      // Predicated region
      $region41: #{preact_basic_block.1} parent=39 // pred_check
        %p2510 = pneg %p190
      $region42: #{preact_basic_block.1} parent=39 // pred_check_branch
        %2512 = sbr.rel (%p2510) target = $region44
      $region43: #{preact_basic_block.1} parent=39 // pred_region
        %s2513 = smul.u32 8, %s21
      $region44: #{preact_basic_block.1} parent=39 // pred_fallthru
        _
    $region40: #{preact_basic_block.1} parent=5 // pred_fallthru
      _
    %p2514 = scmp.le.s32.totalorder 2, %s11
    // Predicated region
    $region45: #{preact_basic_block.1} parent=5 // pred_check
      %p2515 = pneg %p2514
    $region46: #{preact_basic_block.1} parent=5 // pred_check_branch
      %2517 = sbr.rel (%p2515) target = $region48
    $region47: #{preact_basic_block.1} parent=5 // pred_region
      %s2518 = ssub.s32 %s11, 2
      // Predicated region
      $region49: #{preact_basic_block.1} parent=47 // pred_check
        %p2519 = pneg %p196
      $region50: #{preact_basic_block.1} parent=47 // pred_check_branch
        %2521 = sbr.rel (%p2519) target = $region52
      $region51: #{preact_basic_block.1} parent=47 // pred_region
        %s2522 = smul.u32 8, %s23
        %p2523 = scmp.lt.s32.totalorder %s22, 1
        %s2524 = scalar_select %p2523, %s22, 1
        %p2525 = scmp.lt.s32.totalorder %s2522, 7
        %s2526 = scalar_select %p2525, %s2522, 7
        %s2527 = smul.addr %s2524, 8
        %s2528 = sadd.s32 %s2526, %s2527
        %s2529 = smul.addr %s2528, 8
        %s2530 = scalar_lea.vmem %s5, %s2529
      $region52: #{preact_basic_block.1} parent=47 // pred_fallthru
        _
    $region48: #{preact_basic_block.1} parent=5 // pred_fallthru
      _
  $region6: #{preact_basic_block.1} parent=0 // loop_footer
    %s15 = sadd.s32 1, %s11
  $region7: #{preact_basic_block.1} parent=0 // loop_footer_branch
    %10 = sbr.rel target = $region3
  $region8: #{preact_basic_block.1} parent=0 // loop_exit
    _

</llo_original>
